<compile_context>
chip_gen: v7x
topology: tpu7x:2x2x1
jax: 0.10.0
libtpu: 0.0.40
codegen_flags: <defaults>
</compile_context>

<pallas_src>
import math

import jax
import jax.numpy as jnp
from jax.experimental import pallas as pl
from jax.experimental.pallas import tpu as pltpu


def _attention4_kernel(img_ref, glob_ref, w1s_ref, w2t_ref, w3t_ref, b3_ref, out_ref):
    """One grid step processes TB batch elements.

    Per-step shapes:
      img_ref  : (TB, R, D)  bf16   region/layer features
      glob_ref : (TB, D)     f32    global features
      w1s_ref  : (1, D)      bf16   column-sum of w1, pre-scaled by 1/sqrt(D)
      w2t_ref  : (D, A)      bf16   w2 pre-transposed
      w3t_ref  : (D, E)      bf16   w3 pre-transposed
      b3_ref   : (1, E)      f32    w3 bias
      out_ref  : (TB*A, E)          sigmoid(w3(l2norm(attn @ images)))
    """
    imgs = img_ref[...]                                      # (TB, R, D) bf16
    glob = glob_ref[...]                                     # (TB, D)    f32
    w1s = w1s_ref[...]                                       # (1, D)     bf16
    w2t = w2t_ref[...]                                       # (D, A)     bf16
    w3t = w3t_ref[...]                                       # (D, E)     bf16
    b3 = b3_ref[...]                                         # (1, E)     f32

    tb, r, d = imgs.shape
    a = w2t.shape[1]

    # q[b, a] = glob[b] @ w2^T   (MXU, f32 accumulate)
    q = jnp.dot(glob.astype(w2t.dtype), w2t,
                preferred_element_type=jnp.float32)                       # (TB, A)

    # Collapsed logits: logits[b, a, r] = q[b, a] * s[b, r], where
    # s[b, r] = images[b, r, :] . (colsum(w1) / sqrt(D)).
    # s is routed to the MXU (K = D contraction) instead of a VPU broadcast+reduce.
    w1s_b = jnp.broadcast_to(w1s.reshape(1, 1, d), (tb, 1, d))            # (TB, 1, D)
    s = jnp.einsum("bxd,brd->bxr", w1s_b, imgs,
                   preferred_element_type=jnp.float32)                    # (TB, 1, R)
    logits = q[:, :, None] * s                                            # (TB, A, R)

    # Softmax over regions (last axis) — approx reciprocal uses the EUP slot.
    m = jnp.max(logits, axis=-1, keepdims=True)
    e = jnp.exp(logits - m)
    denom = jnp.sum(e, axis=-1, keepdims=True)
    attn = (e * pl.reciprocal(denom, approx=True)).astype(imgs.dtype)     # (TB, A, R) bf16

    # feat = attention @ images   (batched MXU matmul, f32 accumulate)
    feat = jnp.einsum("bar,brd->bad", attn, imgs,
                      preferred_element_type=jnp.float32)                 # (TB, A, D) f32

    # Collapse to 2D while still f32 (A matches the f32 sublane tile => free reshape);
    # then l2-normalize (eps outside the sqrt, matching the reference l2norm) and cast
    # to bf16 in a lane/sublane-dense layout that feeds the MXU directly.
    feat2d = feat.reshape(tb * a, d)                                      # (TB*A, D) f32
    ssq = jnp.sum(feat2d * feat2d, axis=-1, keepdims=True)
    inv_norm = pl.reciprocal(jnp.sqrt(ssq) + 1e-8, approx=False)          # exact: feeds logits
    featn = (feat2d * inv_norm).astype(w3t.dtype)                         # (TB*A, D) bf16

    # Dominant stacked projection: (TB*A, D) @ (D, E) + b3, then sigmoid.
    out = jnp.dot(featn, w3t, preferred_element_type=jnp.float32) + b3
    out_ref[...] = jax.nn.sigmoid(out).astype(out_ref.dtype)


def _pick_tb(B, A, out_align, target_rows=256, min_steps=2):
    """Pick a batch tile: fill the MXU M dim (tb*A >= target_rows) with the smallest
    valid tile, keeping >= min_steps grid steps when possible (v7x 2-TC sharding).
    Alignment: tb == B (full-array blocks are exempt) or tb % 8 == 0 (glob sublane)
    and (tb*A) % out_align == 0 (output sublane)."""
    def ok(t):
        return t == B or (t % 8 == 0 and (t * A) % out_align == 0)

    cands = [t for t in range(1, B + 1) if B % t == 0 and ok(t)]
    good = [t for t in cands if t * A >= target_rows and B // t >= min_steps]
    if good:
        return min(good)
    good = [t for t in cands if B // t >= min_steps]
    if good:
        return max(good)
    # Degenerate batch (e.g. B == 1 or prime B): single grid step over the full batch.
    return max(cands)


def encoder_image_attention4(images, glob_features, w1, w2, w3, b3, *,
                             tb=None, param_dtype=jnp.bfloat16,
                             out_dtype=jnp.float32,
                             vmem_limit_bytes=48 * 1024 * 1024):
    """Pallas implementation of EncoderImageAttention4.forward."""
    B, R, D = images.shape
    H = D // 2
    A = w2.shape[0]
    E = w3.shape[0]
    assert w1.shape == (H, D) and w2.shape == (A, D) and w3.shape == (E, D)
    assert b3.shape == (E,)

    out_itemsize = jnp.dtype(out_dtype).itemsize
    out_align = 16 if out_itemsize == 2 else 8

    if tb is None:
        tb = _pick_tb(B, A, out_align)
    assert B % tb == 0
    assert tb == B or (tb % 8 == 0 and (tb * A) % out_align == 0), (
        "choose tb so tb % 8 == 0 and tb * n_attention is sublane-aligned")

    # Host-side preprocessing (done once, outside the kernel):
    #   * only the (1/sqrt(D)-scaled) column-sum of w1 is needed (algebraic collapse
    #     of the broadcast-query attention)
    #   * pre-transpose w2/w3 so the kernel does plain row-major dots
    #   * bf16 MXU inputs, f32 accumulation
    w1s = (jnp.sum(w1.astype(jnp.float32), axis=0, keepdims=True)
           / math.sqrt(D)).astype(param_dtype)                     # (1, D)
    w2t = jnp.transpose(w2).astype(param_dtype)                    # (D, A)
    w3t = jnp.transpose(w3).astype(param_dtype)                    # (D, E)
    b3_2d = b3.reshape(1, E).astype(jnp.float32)

    imgs = images.astype(param_dtype)                              # (B, R, D)
    glob2 = glob_features.astype(jnp.float32)                      # (B, D)  (tiny; cast in-kernel)

    # Advisory cost for XLA scheduling of the surrounding graph (backbone ops).
    flops = 2 * B * (R * D + A * D + A * R + A * R * D + A * D * E)
    transcendentals = B * A * (R + 2 + E)
    bytes_accessed = (B * R * D * 2 + B * D * 4 + D * 2 + D * A * 2 + D * E * 2
                      + E * 4 + B * A * E * out_itemsize)
    cost = pl.CostEstimate(flops=flops, transcendentals=transcendentals,
                           bytes_accessed=bytes_accessed)

    def build(single_buffer_weights):
        wkw = {}
        if single_buffer_weights and hasattr(pl, "Buffered"):
            # Grid-invariant (resident) weights: no need to double-buffer them.
            wkw = dict(pipeline_mode=pl.Buffered(1))
        in_specs = [
            pl.BlockSpec((tb, R, D), lambda i: (i, 0, 0)),          # images, per batch tile
            pl.BlockSpec((tb, D), lambda i: (i, 0)),                # glob,   per batch tile
            pl.BlockSpec((1, D), lambda i: (0, 0), **wkw),          # w1 column-sum (resident)
            pl.BlockSpec((D, A), lambda i: (0, 0), **wkw),          # w2^T          (resident)
            pl.BlockSpec((D, E), lambda i: (0, 0), **wkw),          # w3^T          (resident)
            pl.BlockSpec((1, E), lambda i: (0, 0), **wkw),          # b3            (resident)
        ]
        return pl.pallas_call(
            _attention4_kernel,
            out_shape=jax.ShapeDtypeStruct((B * A, E), out_dtype),
            grid=(B // tb,),
            in_specs=in_specs,
            out_specs=pl.BlockSpec((tb * A, E), lambda i: (i, 0)),
            compiler_params=pltpu.CompilerParams(
                dimension_semantics=("parallel",),
                vmem_limit_bytes=vmem_limit_bytes),
            cost_estimate=cost,
        )

    try:
        out_flat = build(True)(imgs, glob2, w1s, w2t, w3t, b3_2d)
    except Exception:
        # Fallback for JAX versions that reject Buffered(1) single-buffering:
        # identical kernel with default (double-buffered) weight blocks.
        out_flat = build(False)(imgs, glob2, w1s, w2t, w3t, b3_2d)

    return out_flat.reshape(B, A, E)


def _xavier_uniform(key, out_f, in_f):
    bound = math.sqrt(6.0 / (in_f + out_f))
    return jax.random.uniform(key, (out_f, in_f), jnp.float32, -bound, bound)


def _ref_forward(images, glob, w1, w2, w3, b3):
    """Pure-JAX reference mirroring the PyTorch forward exactly (f32, no collapse)."""
    D = images.shape[-1]
    H = w1.shape[0]
    keys = images @ w1.T                                     # (B, R, H)
    q = glob @ w2.T                                          # (B, A)
    queries_t = jnp.broadcast_to(q[:, :, None], (q.shape[0], q.shape[1], H))
    logits = jnp.einsum('bah,brh->bar', queries_t, keys) / math.sqrt(D)
    attn = jax.nn.softmax(logits, axis=-1)
    feat = jnp.einsum('bar,brd->bad', attn, images)
    norm = jnp.sqrt(jnp.sum(feat ** 2, axis=-1, keepdims=True)) + 1e-8
    feat = feat / norm
    return jax.nn.sigmoid(feat @ w3.T + b3)


if __name__ == "__main__":
    # Small shapes consistent with the module (real model: R=19 stacked layer
    # features, img_dim=4096, embed_size=1024, n_attention heads).  Chosen
    # lane/sublane-friendly so the auto-tb picks an 8-aligned batch tile with
    # 2 grid steps (as it would at real size).
    B, R = 16, 16
    img_dim = 128
    embed_size = 128
    n_attention = 8
    H = img_dim // 2

    key = jax.random.PRNGKey(0)
    k_img, k_glob, k_w1, k_w2, k_w3, k_b3 = jax.random.split(key, 6)

    images = jax.random.normal(k_img, (B, R, img_dim), jnp.float32)
    glob_features = jax.random.normal(k_glob, (B, img_dim), jnp.float32)

    # Deterministic Xavier-uniform init (matches nn.init.xavier_uniform_ scheme).
    w1 = _xavier_uniform(k_w1, H, img_dim)
    w2 = _xavier_uniform(k_w2, n_attention, img_dim)
    w3 = _xavier_uniform(k_w3, embed_size, img_dim)
    b3_bound = 1.0 / math.sqrt(img_dim)                      # default nn.Linear bias init
    b3 = jax.random.uniform(k_b3, (embed_size,), jnp.float32, -b3_bound, b3_bound)

    out = encoder_image_attention4(images, glob_features, w1, w2, w3, b3)
    out = jax.block_until_ready(out)

    ref = _ref_forward(images, glob_features, w1, w2, w3, b3)
    assert out.shape == (B, n_attention, embed_size)
    assert jnp.allclose(out, ref, rtol=2e-2, atol=2e-2), "mismatch vs reference"

    print("KERNEL_OK")
</pallas_src>

<mosaic_0001>
module attributes {stable_mosaic.version = 11 : i64} {
  func.func @_attention4_kernel(%arg0: i32, %arg1: memref<8x16x128xbf16, #tpu.memory_space<vmem>>, %arg2: memref<8x128xf32, #tpu.memory_space<vmem>>, %arg3: memref<1x128xbf16, #tpu.memory_space<vmem>>, %arg4: memref<128x8xbf16, #tpu.memory_space<vmem>>, %arg5: memref<128x128xbf16, #tpu.memory_space<vmem>>, %arg6: memref<1x128xf32, #tpu.memory_space<vmem>>, %arg7: memref<64x128xf32, #tpu.memory_space<vmem>>) attributes {dimension_semantics = [#tpu.dimension_semantics<parallel>], iteration_bounds = array<i64: 2>, scalar_prefetch = 0 : i64, scratch_operands = 0 : i64, tpu.core_type = #tpu.core_type<tc>, window_params = [{transform_indices = @transform_0, window_bounds = array<i64: 8, 16, 128>}, {transform_indices = @transform_1, window_bounds = array<i64: 8, 128>}, {pipeline_mode = #tpu.pipeline_mode<synchronous>, transform_indices = @transform_2, window_bounds = array<i64: 1, 128>}, {pipeline_mode = #tpu.pipeline_mode<synchronous>, transform_indices = @transform_3, window_bounds = array<i64: 128, 8>}, {pipeline_mode = #tpu.pipeline_mode<synchronous>, transform_indices = @transform_4, window_bounds = array<i64: 128, 128>}, {pipeline_mode = #tpu.pipeline_mode<synchronous>, transform_indices = @transform_5, window_bounds = array<i64: 1, 128>}, {transform_indices = @transform_6, window_bounds = array<i64: 64, 128>}]} {
    %c0 = arith.constant 0 : index
    %c0_0 = arith.constant 0 : index
    %c0_1 = arith.constant 0 : index
    %0 = vector.load %arg1[%c0, %c0_0, %c0_1] : memref<8x16x128xbf16, #tpu.memory_space<vmem>>, vector<8x16x128xbf16>
    %c0_2 = arith.constant 0 : index
    %c0_3 = arith.constant 0 : index
    %1 = vector.load %arg2[%c0_2, %c0_3] : memref<8x128xf32, #tpu.memory_space<vmem>>, vector<8x128xf32>
    %c0_4 = arith.constant 0 : index
    %c0_5 = arith.constant 0 : index
    %2 = vector.load %arg3[%c0_4, %c0_5] : memref<1x128xbf16, #tpu.memory_space<vmem>>, vector<1x128xbf16>
    %c0_6 = arith.constant 0 : index
    %c0_7 = arith.constant 0 : index
    %3 = vector.load %arg4[%c0_6, %c0_7] : memref<128x8xbf16, #tpu.memory_space<vmem>>, vector<128x8xbf16>
    %c0_8 = arith.constant 0 : index
    %c0_9 = arith.constant 0 : index
    %4 = vector.load %arg5[%c0_8, %c0_9] : memref<128x128xbf16, #tpu.memory_space<vmem>>, vector<128x128xbf16>
    %c0_10 = arith.constant 0 : index
    %c0_11 = arith.constant 0 : index
    %5 = vector.load %arg6[%c0_10, %c0_11] : memref<1x128xf32, #tpu.memory_space<vmem>>, vector<1x128xf32>
    %6 = arith.truncf %1 : vector<8x128xf32> to vector<8x128xbf16>
    %cst = arith.constant dense<0.000000e+00> : vector<8x8xf32>
    %7 = tpu.matmul %6, %3, %cst {dimension_numbers = #tpu.dot_dimension_numbers<[1], [0], [0], [1], [0, 0, 1, 1], [], []>} : vector<8x128xbf16>, vector<128x8xbf16>, vector<8x8xf32> -> vector<8x8xf32>
    %8 = vector.shape_cast %2 : vector<1x128xbf16> to vector<1x1x128xbf16>
    %9 = vector.shape_cast %8 : vector<1x1x128xbf16> to vector<1x1x128xbf16>
    %10 = vector.broadcast %9 : vector<1x1x128xbf16> to vector<8x1x128xbf16>
    "tpu.trace_start"() <{level = 10 : i32, message = "bxd,brd->bxr"}> : () -> ()
    %cst_12 = arith.constant dense<0.000000e+00> : vector<8x1x16xf32>
    %11 = tpu.matmul %10, %0, %cst_12 {dimension_numbers = #tpu.dot_dimension_numbers<[2], [2], [1], [1], [0, 0, 0, 1, 1, 1], [0], [0]>} : vector<8x1x128xbf16>, vector<8x16x128xbf16>, vector<8x1x16xf32> -> vector<8x1x16xf32>
    "tpu.trace_stop"() : () -> ()
    %12 = vector.shape_cast %7 : vector<8x8xf32> to vector<8x8x1xf32>
    %13 = vector.broadcast %12 : vector<8x8x1xf32> to vector<8x8x16xf32>
    %14 = vector.broadcast %11 : vector<8x1x16xf32> to vector<8x8x16xf32>
    %15 = arith.mulf %13, %14 : vector<8x8x16xf32>
    %cst_13 = arith.constant dense<0xFF800000> : vector<8x8xf32>
    %16 = vector.multi_reduction <maximumf>, %15, %cst_13 [2] : vector<8x8x16xf32> to vector<8x8xf32>
    %17 = vector.shape_cast %16 : vector<8x8xf32> to vector<8x8x1xf32>
    %18 = vector.broadcast %17 : vector<8x8x1xf32> to vector<8x8x16xf32>
    %19 = arith.subf %15, %18 : vector<8x8x16xf32>
    %20 = math.exp %19 : vector<8x8x16xf32>
    %cst_14 = arith.constant dense<0.000000e+00> : vector<8x8xf32>
    %21 = vector.multi_reduction <add>, %20, %cst_14 [2] : vector<8x8x16xf32> to vector<8x8xf32>
    %22 = vector.shape_cast %21 : vector<8x8xf32> to vector<8x8x1xf32>
    %23 = tpu.reciprocal %22 {approx = true} : vector<8x8x1xf32> -> vector<8x8x1xf32>
    %24 = vector.broadcast %23 : vector<8x8x1xf32> to vector<8x8x16xf32>
    %25 = arith.mulf %20, %24 : vector<8x8x16xf32>
    %26 = arith.truncf %25 : vector<8x8x16xf32> to vector<8x8x16xbf16>
    "tpu.trace_start"() <{level = 10 : i32, message = "bar,brd->bad"}> : () -> ()
    %cst_15 = arith.constant dense<0.000000e+00> : vector<8x8x128xf32>
    %27 = tpu.matmul %26, %0, %cst_15 {dimension_numbers = #tpu.dot_dimension_numbers<[2], [1], [1], [2], [0, 0, 0, 1, 1, 2], [0], [0]>} : vector<8x8x16xbf16>, vector<8x16x128xbf16>, vector<8x8x128xf32> -> vector<8x8x128xf32>
    "tpu.trace_stop"() : () -> ()
    %28 = vector.shape_cast %27 : vector<8x8x128xf32> to vector<64x128xf32>
    %29 = arith.mulf %28, %28 : vector<64x128xf32>
    %cst_16 = arith.constant dense<0.000000e+00> : vector<64xf32>
    %30 = vector.multi_reduction <add>, %29, %cst_16 [1] : vector<64x128xf32> to vector<64xf32>
    %31 = vector.shape_cast %30 : vector<64xf32> to vector<64x1xf32>
    %32 = math.sqrt %31 : vector<64x1xf32>
    %cst_17 = arith.constant 9.99999993E-9 : f32
    %33 = vector.broadcast %cst_17 : f32 to vector<64x1xf32>
    %34 = arith.addf %32, %33 : vector<64x1xf32>
    %35 = tpu.reciprocal %34 : vector<64x1xf32> -> vector<64x1xf32>
    %36 = vector.broadcast %35 : vector<64x1xf32> to vector<64x128xf32>
    %37 = arith.mulf %28, %36 : vector<64x128xf32>
    %38 = arith.truncf %37 : vector<64x128xf32> to vector<64x128xbf16>
    %cst_18 = arith.constant dense<0.000000e+00> : vector<64x128xf32>
    %39 = tpu.matmul %38, %4, %cst_18 {dimension_numbers = #tpu.dot_dimension_numbers<[1], [0], [0], [1], [0, 0, 1, 1], [], []>} : vector<64x128xbf16>, vector<128x128xbf16>, vector<64x128xf32> -> vector<64x128xf32>
    %40 = vector.broadcast %5 : vector<1x128xf32> to vector<64x128xf32>
    %41 = arith.addf %39, %40 : vector<64x128xf32>
    %42 = arith.negf %41 : vector<64x128xf32>
    %43 = math.exp %42 : vector<64x128xf32>
    %cst_19 = arith.constant 1.000000e+00 : f32
    %44 = vector.broadcast %cst_19 : f32 to vector<64x128xf32>
    %45 = arith.addf %44, %43 : vector<64x128xf32>
    %46 = arith.divf %44, %45 : vector<64x128xf32>
    %c0_20 = arith.constant 0 : index
    %c0_21 = arith.constant 0 : index
    %47 = vector.load %arg7[%c0_20, %c0_21] : memref<64x128xf32, #tpu.memory_space<vmem>>, vector<64x128xf32>
    tpu.vector_store %arg7[%c0_20, %c0_21], %46 {strides = array<i32>} : memref<64x128xf32, #tpu.memory_space<vmem>>, vector<64x128xf32>,
    return
  }
  func.func @transform_0(%arg0: i32) -> (i32, i32, i32) {
    %c0_i32 = arith.constant 0 : i32
    %c0_i32_0 = arith.constant 0 : i32
    %c0_i32_1 = arith.constant 0 : i32
    return %arg0, %c0_i32, %c0_i32_0 : i32, i32, i32
  }
  func.func @transform_1(%arg0: i32) -> (i32, i32) {
    %c0_i32 = arith.constant 0 : i32
    %c0_i32_0 = arith.constant 0 : i32
    return %arg0, %c0_i32 : i32, i32
  }
  func.func @transform_2(%arg0: i32) -> (i32, i32) {
    %c0_i32 = arith.constant 0 : i32
    %c0_i32_0 = arith.constant 0 : i32
    %c0_i32_1 = arith.constant 0 : i32
    return %c0_i32, %c0_i32_0 : i32, i32
  }
  func.func @transform_3(%arg0: i32) -> (i32, i32) {
    %c0_i32 = arith.constant 0 : i32
    %c0_i32_0 = arith.constant 0 : i32
    %c0_i32_1 = arith.constant 0 : i32
    return %c0_i32, %c0_i32_0 : i32, i32
  }
  func.func @transform_4(%arg0: i32) -> (i32, i32) {
    %c0_i32 = arith.constant 0 : i32
    %c0_i32_0 = arith.constant 0 : i32
    %c0_i32_1 = arith.constant 0 : i32
    return %c0_i32, %c0_i32_0 : i32, i32
  }
  func.func @transform_5(%arg0: i32) -> (i32, i32) {
    %c0_i32 = arith.constant 0 : i32
    %c0_i32_0 = arith.constant 0 : i32
    %c0_i32_1 = arith.constant 0 : i32
    return %c0_i32, %c0_i32_0 : i32, i32
  }
  func.func @transform_6(%arg0: i32) -> (i32, i32) {
    %c0_i32 = arith.constant 0 : i32
    %c0_i32_0 = arith.constant 0 : i32
    return %arg0, %c0_i32 : i32, i32
  }
}

module attributes {stable_mosaic.version = 11 : i64} {
  func.func @_attention4_kernel(%arg0: i32, %arg1: memref<8x16x128xbf16, #tpu.memory_space<vmem>>, %arg2: memref<8x128xf32, #tpu.memory_space<vmem>>, %arg3: memref<1x128xbf16, #tpu.memory_space<vmem>>, %arg4: memref<128x8xbf16, #tpu.memory_space<vmem>>, %arg5: memref<128x128xbf16, #tpu.memory_space<vmem>>, %arg6: memref<1x128xf32, #tpu.memory_space<vmem>>, %arg7: memref<64x128xf32, #tpu.memory_space<vmem>>) attributes {dimension_semantics = [#tpu.dimension_semantics<parallel>], iteration_bounds = array<i64: 2>, scalar_prefetch = 0 : i64, scratch_operands = 0 : i64, tpu.core_type = #tpu.core_type<tc>, window_params = [{transform_indices = @transform_0, window_bounds = array<i64: 8, 16, 128>}, {transform_indices = @transform_1, window_bounds = array<i64: 8, 128>}, {pipeline_mode = #tpu.pipeline_mode<synchronous>, transform_indices = @transform_2, window_bounds = array<i64: 1, 128>}, {pipeline_mode = #tpu.pipeline_mode<synchronous>, transform_indices = @transform_3, window_bounds = array<i64: 128, 8>}, {pipeline_mode = #tpu.pipeline_mode<synchronous>, transform_indices = @transform_4, window_bounds = array<i64: 128, 128>}, {pipeline_mode = #tpu.pipeline_mode<synchronous>, transform_indices = @transform_5, window_bounds = array<i64: 1, 128>}, {transform_indices = @transform_6, window_bounds = array<i64: 64, 128>}]} {
    %c0 = arith.constant 0 : index
    %c0_0 = arith.constant 0 : index
    %c0_1 = arith.constant 0 : index
    %0 = vector.load %arg1[%c0, %c0_0, %c0_1] : memref<8x16x128xbf16, #tpu.memory_space<vmem>>, vector<8x16x128xbf16>
    %c0_2 = arith.constant 0 : index
    %c0_3 = arith.constant 0 : index
    %1 = vector.load %arg2[%c0_2, %c0_3] : memref<8x128xf32, #tpu.memory_space<vmem>>, vector<8x128xf32>
    %c0_4 = arith.constant 0 : index
    %c0_5 = arith.constant 0 : index
    %2 = vector.load %arg3[%c0_4, %c0_5] : memref<1x128xbf16, #tpu.memory_space<vmem>>, vector<1x128xbf16>
    %c0_6 = arith.constant 0 : index
    %c0_7 = arith.constant 0 : index
    %3 = vector.load %arg4[%c0_6, %c0_7] : memref<128x8xbf16, #tpu.memory_space<vmem>>, vector<128x8xbf16>
    %c0_8 = arith.constant 0 : index
    %c0_9 = arith.constant 0 : index
    %4 = vector.load %arg5[%c0_8, %c0_9] : memref<128x128xbf16, #tpu.memory_space<vmem>>, vector<128x128xbf16>
    %c0_10 = arith.constant 0 : index
    %c0_11 = arith.constant 0 : index
    %5 = vector.load %arg6[%c0_10, %c0_11] : memref<1x128xf32, #tpu.memory_space<vmem>>, vector<1x128xf32>
    %6 = arith.truncf %1 : vector<8x128xf32> to vector<8x128xbf16>
    %cst = arith.constant dense<0.000000e+00> : vector<8x8xf32>
    %7 = tpu.matmul %6, %3, %cst {dimension_numbers = #tpu.dot_dimension_numbers<[1], [0], [0], [1], [0, 0, 1, 1], [], []>} : vector<8x128xbf16>, vector<128x8xbf16>, vector<8x8xf32> -> vector<8x8xf32>
    %8 = vector.shape_cast %2 : vector<1x128xbf16> to vector<1x1x128xbf16>
    %9 = vector.shape_cast %8 : vector<1x1x128xbf16> to vector<1x1x128xbf16>
    %10 = vector.broadcast %9 : vector<1x1x128xbf16> to vector<8x1x128xbf16>
    "tpu.trace_start"() <{level = 10 : i32, message = "bxd,brd->bxr"}> : () -> ()
    %cst_12 = arith.constant dense<0.000000e+00> : vector<8x1x16xf32>
    %11 = tpu.matmul %10, %0, %cst_12 {dimension_numbers = #tpu.dot_dimension_numbers<[2], [2], [1], [1], [0, 0, 0, 1, 1, 1], [0], [0]>} : vector<8x1x128xbf16>, vector<8x16x128xbf16>, vector<8x1x16xf32> -> vector<8x1x16xf32>
    "tpu.trace_stop"() : () -> ()
    %12 = vector.shape_cast %7 : vector<8x8xf32> to vector<8x8x1xf32>
    %13 = vector.broadcast %12 : vector<8x8x1xf32> to vector<8x8x16xf32>
    %14 = vector.broadcast %11 : vector<8x1x16xf32> to vector<8x8x16xf32>
    %15 = arith.mulf %13, %14 : vector<8x8x16xf32>
    %cst_13 = arith.constant dense<0xFF800000> : vector<8x8xf32>
    %16 = vector.multi_reduction <maximumf>, %15, %cst_13 [2] : vector<8x8x16xf32> to vector<8x8xf32>
    %17 = vector.shape_cast %16 : vector<8x8xf32> to vector<8x8x1xf32>
    %18 = vector.broadcast %17 : vector<8x8x1xf32> to vector<8x8x16xf32>
    %19 = arith.subf %15, %18 : vector<8x8x16xf32>
    %20 = math.exp %19 : vector<8x8x16xf32>
    %cst_14 = arith.constant dense<0.000000e+00> : vector<8x8xf32>
    %21 = vector.multi_reduction <add>, %20, %cst_14 [2] : vector<8x8x16xf32> to vector<8x8xf32>
    %22 = vector.shape_cast %21 : vector<8x8xf32> to vector<8x8x1xf32>
    %23 = tpu.reciprocal %22 {approx = true} : vector<8x8x1xf32> -> vector<8x8x1xf32>
    %24 = vector.broadcast %23 : vector<8x8x1xf32> to vector<8x8x16xf32>
    %25 = arith.mulf %20, %24 : vector<8x8x16xf32>
    %26 = arith.truncf %25 : vector<8x8x16xf32> to vector<8x8x16xbf16>
    "tpu.trace_start"() <{level = 10 : i32, message = "bar,brd->bad"}> : () -> ()
    %cst_15 = arith.constant dense<0.000000e+00> : vector<8x8x128xf32>
    %27 = tpu.matmul %26, %0, %cst_15 {dimension_numbers = #tpu.dot_dimension_numbers<[2], [1], [1], [2], [0, 0, 0, 1, 1, 2], [0], [0]>} : vector<8x8x16xbf16>, vector<8x16x128xbf16>, vector<8x8x128xf32> -> vector<8x8x128xf32>
    "tpu.trace_stop"() : () -> ()
    %28 = vector.shape_cast %27 : vector<8x8x128xf32> to vector<64x128xf32>
    %29 = arith.mulf %28, %28 : vector<64x128xf32>
    %cst_16 = arith.constant dense<0.000000e+00> : vector<64xf32>
    %30 = vector.multi_reduction <add>, %29, %cst_16 [1] : vector<64x128xf32> to vector<64xf32>
    %31 = vector.shape_cast %30 : vector<64xf32> to vector<64x1xf32>
    %32 = math.sqrt %31 : vector<64x1xf32>
    %cst_17 = arith.constant 9.99999993E-9 : f32
    %33 = vector.broadcast %cst_17 : f32 to vector<64x1xf32>
    %34 = arith.addf %32, %33 : vector<64x1xf32>
    %35 = tpu.reciprocal %34 : vector<64x1xf32> -> vector<64x1xf32>
    %36 = vector.broadcast %35 : vector<64x1xf32> to vector<64x128xf32>
    %37 = arith.mulf %28, %36 : vector<64x128xf32>
    %38 = arith.truncf %37 : vector<64x128xf32> to vector<64x128xbf16>
    %cst_18 = arith.constant dense<0.000000e+00> : vector<64x128xf32>
    %39 = tpu.matmul %38, %4, %cst_18 {dimension_numbers = #tpu.dot_dimension_numbers<[1], [0], [0], [1], [0, 0, 1, 1], [], []>} : vector<64x128xbf16>, vector<128x128xbf16>, vector<64x128xf32> -> vector<64x128xf32>
    %40 = vector.broadcast %5 : vector<1x128xf32> to vector<64x128xf32>
    %41 = arith.addf %39, %40 : vector<64x128xf32>
    %42 = arith.negf %41 : vector<64x128xf32>
    %43 = math.exp %42 : vector<64x128xf32>
    %cst_19 = arith.constant 1.000000e+00 : f32
    %44 = vector.broadcast %cst_19 : f32 to vector<64x128xf32>
    %45 = arith.addf %44, %43 : vector<64x128xf32>
    %46 = arith.divf %44, %45 : vector<64x128xf32>
    %c0_20 = arith.constant 0 : index
    %c0_21 = arith.constant 0 : index
    %47 = vector.load %arg7[%c0_20, %c0_21] : memref<64x128xf32, #tpu.memory_space<vmem>>, vector<64x128xf32>
    tpu.vector_store %arg7[%c0_20, %c0_21], %46 {strides = array<i32>} : memref<64x128xf32, #tpu.memory_space<vmem>>, vector<64x128xf32>,
    return
  }
  func.func @transform_0(%arg0: i32) -> (i32, i32, i32) {
    %c0_i32 = arith.constant 0 : i32
    %c0_i32_0 = arith.constant 0 : i32
    %c0_i32_1 = arith.constant 0 : i32
    return %arg0, %c0_i32, %c0_i32_0 : i32, i32, i32
  }
  func.func @transform_1(%arg0: i32) -> (i32, i32) {
    %c0_i32 = arith.constant 0 : i32
    %c0_i32_0 = arith.constant 0 : i32
    return %arg0, %c0_i32 : i32, i32
  }
  func.func @transform_2(%arg0: i32) -> (i32, i32) {
    %c0_i32 = arith.constant 0 : i32
    %c0_i32_0 = arith.constant 0 : i32
    %c0_i32_1 = arith.constant 0 : i32
    return %c0_i32, %c0_i32_0 : i32, i32
  }
  func.func @transform_3(%arg0: i32) -> (i32, i32) {
    %c0_i32 = arith.constant 0 : i32
    %c0_i32_0 = arith.constant 0 : i32
    %c0_i32_1 = arith.constant 0 : i32
    return %c0_i32, %c0_i32_0 : i32, i32
  }
  func.func @transform_4(%arg0: i32) -> (i32, i32) {
    %c0_i32 = arith.constant 0 : i32
    %c0_i32_0 = arith.constant 0 : i32
    %c0_i32_1 = arith.constant 0 : i32
    return %c0_i32, %c0_i32_0 : i32, i32
  }
  func.func @transform_5(%arg0: i32) -> (i32, i32) {
    %c0_i32 = arith.constant 0 : i32
    %c0_i32_0 = arith.constant 0 : i32
    %c0_i32_1 = arith.constant 0 : i32
    return %c0_i32, %c0_i32_0 : i32, i32
  }
  func.func @transform_6(%arg0: i32) -> (i32, i32) {
    %c0_i32 = arith.constant 0 : i32
    %c0_i32_0 = arith.constant 0 : i32
    return %arg0, %c0_i32 : i32, i32
  }
}

</mosaic_0001>

<llo_original>
// kernel: tpu_custom_call.1
$region0: #{tpu_custom_call.1}
  #allocation0 [shape = 'u32[]', space=smem, size = 0x4, offset = 0x4, fixed_abs, tag = 'smem constant byte address 0x4 - core index']
  #allocation1 [shape = 'u32[144,128]{1,0:T(1,128)}', space=vmem, size = 0x12000, scoped, tag = 'internal scratch']
  %s0 = inlined_call_operand.hbm [shape: bf16[16,16,128], index: 0, kind: input, shape index: {}]
  %s1 = inlined_call_operand.vmem [shape: f32[16,128], index: 1, kind: input, shape index: {}]
  %s2 = inlined_call_operand.vmem [shape: bf16[1,128], index: 2, kind: input, shape index: {}]
  %s3 = inlined_call_operand.vmem [shape: bf16[128,8], index: 3, kind: input, shape index: {}]
  %s4 = inlined_call_operand.vmem [shape: bf16[128,128], index: 4, kind: input, shape index: {}]
  %s5 = inlined_call_operand.vmem [shape: f32[1,128], index: 5, kind: input, shape index: {}]
  %s6 = inlined_call_operand.hbm [shape: f32[128,128], index: 6, kind: output, shape index: {}]
  %s7 = sld [smem:[#allocation0]]
  $region61: #{tpu_custom_call.1} parent=0
    _
  %s9 = ssub.s32 1, %s7
  %s10 = scalar_select 0, %s9, %s7
  $region1: #{tpu_custom_call.1} parent=0
    #allocation2 [shape = 'u8[65536]{0}', space=vmem, size = 0x10000, scoped, tag = 'input window, operand 0']
    #allocation3 [shape = 's32[2]{0}', space=sflag, size = 0x8, scoped, tag = 'scoped memory for tpu_custom_call.1']
    #allocation4 [shape = 's32[2]{0}', space=sflag, size = 0x8, scoped, tag = 'scoped memory for tpu_custom_call.1']
    #allocation5 [shape = 'u8[65536]{0}', space=vmem, size = 0x10000, scoped, tag = 'output window, operand 0']
    %11 = vsyncpa [#allocation3], 0
    %s12 = scalar_lea.sflag [#allocation3], 1
    %13 = vsyncpa %s12, 0
    %14 = vsyncpa [#allocation4], 0
    %s15 = scalar_lea.sflag [#allocation4], 1
    %16 = vsyncpa %s15, 0
    loop: start=0, step=1, limit=4
    $region2: #{tpu_custom_call.1} parent=1 // loop_pre_header
      _
    $region3: #{tpu_custom_call.1} parent=1 // loop_header
      %s18 = sphi 0, %s22
      %p19 = scmp.ge.s32.totalorder %s18, 4
      %s28 = sphi 0, %s30
      %s31 = sphi 0, %s28
      %s32 = sphi 0, %s31
      %s48 = sphi 0, %s32
      %s54 = sphi 0, %s56
      %s57 = sphi 0, %s54
      %s58 = sphi 0, %s57
      %s74 = sphi 0, %s58
      %s78 = sphi 0, %s78
      %s80 = sphi 0, %s78
      %s81 = sphi 0, %s80
      %s95 = sphi 0, %s81
      %s99 = sphi 0, %s99
      %s101 = sphi 0, %s99
      %s102 = sphi 0, %s101
      %s116 = sphi 0, %s102
      %s120 = sphi 0, %s120
      %s122 = sphi 0, %s120
      %s123 = sphi 0, %s122
      %s137 = sphi 0, %s123
      %s141 = sphi 0, %s141
      %s143 = sphi 0, %s141
      %s144 = sphi 0, %s143
      %s158 = sphi 0, %s144
      %s164 = sphi 0, %s166
      %s167 = sphi 0, %s164
      %s168 = sphi 0, %s167
      %s184 = sphi 0, %s168
    $region4: #{tpu_custom_call.1} parent=1 // loop_header_branch
      %21 = sbr.rel (%p19) target = $region8
    $region5: #{tpu_custom_call.1} parent=1 // loop_body
      %s23 = ssub.s32 %s18, 1
      %s24 = ssub.s32 %s18, 2
      %s25 = sadd.s32 %s18, 1
      %s26 = ssub.s32 %s18, %s25
      %p27 = scmp.eq.s32.totalorder %s26, 0
      %s29 = sadd.s32 %s28, 1
      %s30 = scalar_select %p27, %s28, %s29
      %p33 = pneg %p27
      %p34 = scmp.eq.s32.totalorder %s18, 1
      %p35 = por %p33, %p34
      %p36 = scmp.ne.s32.totalorder %s28, %s31
      %p37 = scmp.eq.s32.totalorder %s18, 0
      %p38 = por %p36, %p37
      %p39 = scmp.ne.s32.totalorder %s28, %s31
      %p40 = scmp.eq.s32.totalorder %s23, 1
      %p41 = por %p39, %p40
      %p42 = scmp.ne.s32.totalorder %s31, %s32
      %p43 = scmp.eq.s32.totalorder %s23, 0
      %p44 = por %p42, %p43
      %p45 = scmp.ne.s32.totalorder %s31, %s32
      %p46 = scmp.eq.s32.totalorder %s24, 1
      %p47 = por %p45, %p46
      %p49 = scmp.ne.s32.totalorder %s32, %s48
      %p50 = scmp.eq.s32.totalorder %s24, 0
      %p51 = por %p49, %p50
      %s52 = ssub.s32 %s18, %s25
      %p53 = scmp.eq.s32.totalorder %s52, 0
      %s55 = sadd.s32 %s54, 1
      %s56 = scalar_select %p53, %s54, %s55
      %p59 = pneg %p53
      %p60 = scmp.eq.s32.totalorder %s18, 1
      %p61 = por %p59, %p60
      %p62 = scmp.ne.s32.totalorder %s54, %s57
      %p63 = scmp.eq.s32.totalorder %s18, 0
      %p64 = por %p62, %p63
      %p65 = scmp.ne.s32.totalorder %s54, %s57
      %p66 = scmp.eq.s32.totalorder %s23, 1
      %p67 = por %p65, %p66
      %p68 = scmp.ne.s32.totalorder %s57, %s58
      %p69 = scmp.eq.s32.totalorder %s23, 0
      %p70 = por %p68, %p69
      %p71 = scmp.ne.s32.totalorder %s57, %s58
      %p72 = scmp.eq.s32.totalorder %s24, 1
      %p73 = por %p71, %p72
      %p75 = scmp.ne.s32.totalorder %s58, %s74
      %p76 = scmp.eq.s32.totalorder %s24, 0
      %p77 = por %p75, %p76
      %s79 = sadd.s32 %s78, 1
      %p82 = scmp.eq.s32.totalorder %s18, 1
      %p83 = scmp.ne.s32.totalorder %s78, %s80
      %p84 = scmp.eq.s32.totalorder %s18, 0
      %p85 = por %p83, %p84
      %p86 = scmp.ne.s32.totalorder %s78, %s80
      %p87 = scmp.eq.s32.totalorder %s23, 1
      %p88 = por %p86, %p87
      %p89 = scmp.ne.s32.totalorder %s80, %s81
      %p90 = scmp.eq.s32.totalorder %s23, 0
      %p91 = por %p89, %p90
      %p92 = scmp.ne.s32.totalorder %s80, %s81
      %p93 = scmp.eq.s32.totalorder %s24, 1
      %p94 = por %p92, %p93
      %p96 = scmp.ne.s32.totalorder %s81, %s95
      %p97 = scmp.eq.s32.totalorder %s24, 0
      %p98 = por %p96, %p97
      %s100 = sadd.s32 %s99, 1
      %p103 = scmp.eq.s32.totalorder %s18, 1
      %p104 = scmp.ne.s32.totalorder %s99, %s101
      %p105 = scmp.eq.s32.totalorder %s18, 0
      %p106 = por %p104, %p105
      %p107 = scmp.ne.s32.totalorder %s99, %s101
      %p108 = scmp.eq.s32.totalorder %s23, 1
      %p109 = por %p107, %p108
      %p110 = scmp.ne.s32.totalorder %s101, %s102
      %p111 = scmp.eq.s32.totalorder %s23, 0
      %p112 = por %p110, %p111
      %p113 = scmp.ne.s32.totalorder %s101, %s102
      %p114 = scmp.eq.s32.totalorder %s24, 1
      %p115 = por %p113, %p114
      %p117 = scmp.ne.s32.totalorder %s102, %s116
      %p118 = scmp.eq.s32.totalorder %s24, 0
      %p119 = por %p117, %p118
      %s121 = sadd.s32 %s120, 1
      %p124 = scmp.eq.s32.totalorder %s18, 1
      %p125 = scmp.ne.s32.totalorder %s120, %s122
      %p126 = scmp.eq.s32.totalorder %s18, 0
      %p127 = por %p125, %p126
      %p128 = scmp.ne.s32.totalorder %s120, %s122
      %p129 = scmp.eq.s32.totalorder %s23, 1
      %p130 = por %p128, %p129
      %p131 = scmp.ne.s32.totalorder %s122, %s123
      %p132 = scmp.eq.s32.totalorder %s23, 0
      %p133 = por %p131, %p132
      %p134 = scmp.ne.s32.totalorder %s122, %s123
      %p135 = scmp.eq.s32.totalorder %s24, 1
      %p136 = por %p134, %p135
      %p138 = scmp.ne.s32.totalorder %s123, %s137
      %p139 = scmp.eq.s32.totalorder %s24, 0
      %p140 = por %p138, %p139
      %s142 = sadd.s32 %s141, 1
      %p145 = scmp.eq.s32.totalorder %s18, 1
      %p146 = scmp.ne.s32.totalorder %s141, %s143
      %p147 = scmp.eq.s32.totalorder %s18, 0
      %p148 = por %p146, %p147
      %p149 = scmp.ne.s32.totalorder %s141, %s143
      %p150 = scmp.eq.s32.totalorder %s23, 1
      %p151 = por %p149, %p150
      %p152 = scmp.ne.s32.totalorder %s143, %s144
      %p153 = scmp.eq.s32.totalorder %s23, 0
      %p154 = por %p152, %p153
      %p155 = scmp.ne.s32.totalorder %s143, %s144
      %p156 = scmp.eq.s32.totalorder %s24, 1
      %p157 = por %p155, %p156
      %p159 = scmp.ne.s32.totalorder %s144, %s158
      %p160 = scmp.eq.s32.totalorder %s24, 0
      %p161 = por %p159, %p160
      %s162 = ssub.s32 %s18, %s25
      %p163 = scmp.eq.s32.totalorder %s162, 0
      %s165 = sadd.s32 %s164, 1
      %s166 = scalar_select %p163, %s164, %s165
      %p169 = pneg %p163
      %p170 = scmp.eq.s32.totalorder %s18, 1
      %p171 = por %p169, %p170
      %p172 = scmp.ne.s32.totalorder %s164, %s167
      %p173 = scmp.eq.s32.totalorder %s18, 0
      %p174 = por %p172, %p173
      %p175 = scmp.ne.s32.totalorder %s164, %s167
      %p176 = scmp.eq.s32.totalorder %s23, 1
      %p177 = por %p175, %p176
      %p178 = scmp.ne.s32.totalorder %s167, %s168
      %p179 = scmp.eq.s32.totalorder %s23, 0
      %p180 = por %p178, %p179
      %p181 = scmp.ne.s32.totalorder %s167, %s168
      %p182 = scmp.eq.s32.totalorder %s24, 1
      %p183 = por %p181, %p182
      %p185 = scmp.ne.s32.totalorder %s168, %s184
      %p186 = scmp.eq.s32.totalorder %s24, 0
      %p187 = por %p185, %p186
      %p188 = scmp.le.s32.totalorder 1, %s18
      %p189 = scmp.lt.s32.totalorder %s18, 3
      %p190 = pnand %p188, %p189
      %p191 = pneg %p190
      // Predicated region
      $region9: #{tpu_custom_call.1} parent=5 // pred_check
        _
      $region10: #{tpu_custom_call.1} parent=5 // pred_check_branch
        %193 = sbr.rel (%p190) target = $region12
      $region11: #{tpu_custom_call.1} parent=5 // pred_region
        %s194 = ssub.s32 %s18, 1
        // Predicated region
        $region13: #{tpu_custom_call.1} parent=11 // pred_check
          %p195 = pneg %p91
        $region14: #{tpu_custom_call.1} parent=11 // pred_check_branch
          %197 = sbr.rel (%p195) target = $region16
        $region15: #{tpu_custom_call.1} parent=11 // pred_region
          _
        $region16: #{tpu_custom_call.1} parent=11 // pred_fallthru
          _
        // Predicated region
        $region17: #{tpu_custom_call.1} parent=11 // pred_check
          %p198 = pneg %p112
        $region18: #{tpu_custom_call.1} parent=11 // pred_check_branch
          %200 = sbr.rel (%p198) target = $region20
        $region19: #{tpu_custom_call.1} parent=11 // pred_region
          _
        $region20: #{tpu_custom_call.1} parent=11 // pred_fallthru
          _
        // Predicated region
        $region21: #{tpu_custom_call.1} parent=11 // pred_check
          %p201 = pneg %p133
        $region22: #{tpu_custom_call.1} parent=11 // pred_check_branch
          %203 = sbr.rel (%p201) target = $region24
        $region23: #{tpu_custom_call.1} parent=11 // pred_region
          _
        $region24: #{tpu_custom_call.1} parent=11 // pred_fallthru
          _
        // Predicated region
        $region25: #{tpu_custom_call.1} parent=11 // pred_check
          %p204 = pneg %p154
        $region26: #{tpu_custom_call.1} parent=11 // pred_check_branch
          %206 = sbr.rel (%p204) target = $region28
        $region27: #{tpu_custom_call.1} parent=11 // pred_region
          _
        $region28: #{tpu_custom_call.1} parent=11 // pred_fallthru
          _
      $region12: #{tpu_custom_call.1} parent=5 // pred_fallthru
        _
      %p207 = scmp.lt.s32.totalorder %s18, 2
      // Predicated region
      $region29: #{tpu_custom_call.1} parent=5 // pred_check
        %p208 = pneg %p207
      $region30: #{tpu_custom_call.1} parent=5 // pred_check_branch
        %210 = sbr.rel (%p208) target = $region32
      $region31: #{tpu_custom_call.1} parent=5 // pred_region
        // Predicated region
        $region33: #{tpu_custom_call.1} parent=31 // pred_check
          %p211 = pneg %p38
        $region34: #{tpu_custom_call.1} parent=31 // pred_check_branch
          %213 = sbr.rel (%p211) target = $region36
        $region35: #{tpu_custom_call.1} parent=31 // pred_region
          %s214 = sand.u32 %s28, 1
          %s215 = scalar_lea.sflag [#allocation3], %s214
          %s216 = sand.u32 %s28, 1
          %s217 = smul.addr %s216, 64
          %s218 = scalar_lea.vmem [#allocation2], %s217
          %s219 = smul.u32 8, %s18
          %s221 = ssub.s32 1024, 1024
          %222 = vsyncadd %s215, %s221
          %s223 = smul.addr %s219, 2
          %s224 = smul.addr %s223, 64
          %s225 = scalar_lea.hbm %s0, %s224
          %s226 = sshll.u32 %s218, 4
          %s227 = int_to_ptr.vmem [resolvable:$true] %s226
          %232 = dma.hbm_to_vmem [thread:$0]  %s225, 1024, %s227, %s215, 64, 64, 4
        $region36: #{tpu_custom_call.1} parent=31 // pred_fallthru
          _
        // Predicated region
        $region37: #{tpu_custom_call.1} parent=31 // pred_check
          %p233 = pneg %p64
        $region38: #{tpu_custom_call.1} parent=31 // pred_check_branch
          %235 = sbr.rel (%p233) target = $region40
        $region39: #{tpu_custom_call.1} parent=31 // pred_region
          %p236 = scmp.lt.s32.totalorder %s18, 1
          %s237 = scalar_select %p236, %s18, 1
          %s238 = smul.addr %s237, 8
          %s239 = scalar_lea.vmem %s1, %s238
        $region40: #{tpu_custom_call.1} parent=31 // pred_fallthru
          _
      $region32: #{tpu_custom_call.1} parent=5 // pred_fallthru
        _
      %p240 = scmp.le.s32.totalorder 1, %s18
      %p241 = scmp.lt.s32.totalorder %s18, 3
      %p242 = pnand %p240, %p241
      %p243 = pneg %p242
      // Predicated region
      $region41: #{tpu_custom_call.1} parent=5 // pred_check
        _
      $region42: #{tpu_custom_call.1} parent=5 // pred_check_branch
        %245 = sbr.rel (%p242) target = $region44
      $region43: #{tpu_custom_call.1} parent=5 // pred_region
        %s246 = ssub.s32 %s18, 1
        %s247 = sand.u32 %s31, 1
        %s248 = scalar_lea.sflag [#allocation3], %s247
        %s249 = sand.u32 %s31, 1
        %s250 = smul.addr %s249, 64
        %s251 = scalar_lea.vmem [#allocation2], %s250
        // Predicated region
        $region45: #{tpu_custom_call.1} parent=43 // pred_check
          %p252 = pneg %p44
        $region46: #{tpu_custom_call.1} parent=43 // pred_check_branch
          %254 = sbr.rel (%p252) target = $region48
        $region47: #{tpu_custom_call.1} parent=43 // pred_region
          %255 = dma.done %s248, 1024
        $region48: #{tpu_custom_call.1} parent=43 // pred_fallthru
          _
        %s256 = sand.u32 %s31, 1
        %s257 = scalar_lea.sflag [#allocation3], %s256
        %s258 = sand.u32 %s31, 1
        %s259 = smul.addr %s258, 64
        %s260 = scalar_lea.vmem [#allocation2], %s259
        %p261 = pneg %p44
        %p262 = pneg %p41
        %p263 = scmp.lt.s32.totalorder %s23, 1
        %s264 = scalar_select %p263, %s23, 1
        %s265 = smul.addr %s264, 8
        %s266 = scalar_lea.vmem %s1, %s265
        %p267 = pneg %p70
        %p268 = pneg %p67
        %p269 = pneg %p91
        %p270 = pneg %p88
        %p271 = pneg %p112
        %p272 = pneg %p109
        %p273 = pneg %p133
        %p274 = pneg %p130
        %p275 = pneg %p154
        %p276 = pneg %p151
        %p277 = pneg %p180
        %p278 = pneg %p177
        %s279 = sand.u32 %s167, 1
        %s280 = scalar_lea.sflag [#allocation4], %s279
        %s281 = sand.u32 %s167, 1
        %s282 = smul.addr %s281, 64
        %s283 = scalar_lea.vmem [#allocation5], %s282
        %s284 = smul.u32 8, %s23
        %p285 = scmp.lt.s32.totalorder %s23, 1
        %s286 = scalar_select %p285, %s23, 1
        %s287 = smul.addr %s286, 8
        %s288 = scalar_lea.vmem %s1, %s287
        %s289 = smul.u32 8, %s23
        %v291 = vld [vmem:[%s251] sm:$0xf]
        %v292 = vld [vmem:[%s251 + $0x4] sm:$0xf]
        %v293 = vld [vmem:[%s251 + $0x8] sm:$0xf]
        %v294 = vld [vmem:[%s251 + $0xc] sm:$0xf]
        %v295 = vld [vmem:[%s251 + $0x10] sm:$0xf]
        %v296 = vld [vmem:[%s251 + $0x14] sm:$0xf]
        %v297 = vld [vmem:[%s251 + $0x18] sm:$0xf]
        %v298 = vld [vmem:[%s251 + $0x1c] sm:$0xf]
        %v299 = vld [vmem:[%s251 + $0x20] sm:$0xf]
        %v300 = vld [vmem:[%s251 + $0x24] sm:$0xf]
        %v301 = vld [vmem:[%s251 + $0x28] sm:$0xf]
        %v302 = vld [vmem:[%s251 + $0x2c] sm:$0xf]
        %v303 = vld [vmem:[%s251 + $0x30] sm:$0xf]
        %v304 = vld [vmem:[%s251 + $0x34] sm:$0xf]
        %v305 = vld [vmem:[%s251 + $0x38] sm:$0xf]
        %v306 = vld [vmem:[%s251 + $0x3c] sm:$0xf]
        %v307 = vld [vmem:[%s288] sm:$0xff]
        %v308 = vld [vmem:[%s2] sm:$0x1]
        %v309 = vld [vmem:[%s3] sm:$0xf]
        %v310 = vld [vmem:[%s3 + $0x4] sm:$0xf]
        %v311 = vld [vmem:[%s3 + $0x8] sm:$0xf]
        %v312 = vld [vmem:[%s3 + $0xc] sm:$0xf]
        %v313 = vld [vmem:[%s3 + $0x10] sm:$0xf]
        %v314 = vld [vmem:[%s3 + $0x14] sm:$0xf]
        %v315 = vld [vmem:[%s3 + $0x18] sm:$0xf]
        %v316 = vld [vmem:[%s3 + $0x1c] sm:$0xf]
        %v317 = vld [vmem:[%s3 + $0x20] sm:$0xf]
        %v318 = vld [vmem:[%s3 + $0x24] sm:$0xf]
        %v319 = vld [vmem:[%s3 + $0x28] sm:$0xf]
        %v320 = vld [vmem:[%s3 + $0x2c] sm:$0xf]
        %v321 = vld [vmem:[%s3 + $0x30] sm:$0xf]
        %v322 = vld [vmem:[%s3 + $0x34] sm:$0xf]
        %v323 = vld [vmem:[%s3 + $0x38] sm:$0xf]
        %v324 = vld [vmem:[%s3 + $0x3c] sm:$0xf]
        %v325 = vld [vmem:[%s4] sm:$0xf]
        %v326 = vld [vmem:[%s4 + $0x4] sm:$0xf]
        %v327 = vld [vmem:[%s4 + $0x8] sm:$0xf]
        %v328 = vld [vmem:[%s4 + $0xc] sm:$0xf]
        %v329 = vld [vmem:[%s4 + $0x10] sm:$0xf]
        %v330 = vld [vmem:[%s4 + $0x14] sm:$0xf]
        %v331 = vld [vmem:[%s4 + $0x18] sm:$0xf]
        %v332 = vld [vmem:[%s4 + $0x1c] sm:$0xf]
        %v333 = vld [vmem:[%s4 + $0x20] sm:$0xf]
        %v334 = vld [vmem:[%s4 + $0x24] sm:$0xf]
        %v335 = vld [vmem:[%s4 + $0x28] sm:$0xf]
        %v336 = vld [vmem:[%s4 + $0x2c] sm:$0xf]
        %v337 = vld [vmem:[%s4 + $0x30] sm:$0xf]
        %v338 = vld [vmem:[%s4 + $0x34] sm:$0xf]
        %v339 = vld [vmem:[%s4 + $0x38] sm:$0xf]
        %v340 = vld [vmem:[%s4 + $0x3c] sm:$0xf]
        %v341 = vld [vmem:[%s5] sm:$0x1]
        %v342 = vpack.c.bf16 %v307, %v307
        %v359 = vunpack.c.l.b16 %v309
        %v360 = vunpack.c.l.b16 %v310
        %v361 = vunpack.c.l.b16 %v311
        %v362 = vunpack.c.l.b16 %v312
        %v363 = vunpack.c.l.b16 %v313
        %v364 = vunpack.c.l.b16 %v314
        %v365 = vunpack.c.l.b16 %v315
        %v366 = vunpack.c.l.b16 %v316
        %v367 = vunpack.c.l.b16 %v317
        %v368 = vunpack.c.l.b16 %v318
        %v369 = vunpack.c.l.b16 %v319
        %v370 = vunpack.c.l.b16 %v320
        %v371 = vunpack.c.l.b16 %v321
        %v372 = vunpack.c.l.b16 %v322
        %v373 = vunpack.c.l.b16 %v323
        %v374 = vunpack.c.l.b16 %v324
        %v375 = vpack.c.b16 %v360, %v359
        %v376 = vpack.c.b16 %v362, %v361
        %v377 = vpack.c.b16 %v364, %v363
        %v378 = vpack.c.b16 %v366, %v365
        %v379 = vpack.c.b16 %v368, %v367
        %v380 = vpack.c.b16 %v370, %v369
        %v381 = vpack.c.b16 %v372, %v371
        %v382 = vpack.c.b16 %v374, %v373
        %391 = vmatprep.subr.bf16.mxu0 0
        %392 = vmatpush1.bf16.msra.mxu0 %v375
        %393 = vmatprep.subr.bf16.mxu0 0
        %394 = vmatpush1.bf16.msra.mxu0 %v376
        %395 = vmatprep.subr.bf16.mxu0 0
        %396 = vmatpush1.bf16.msra.mxu0 %v377
        %397 = vmatprep.subr.bf16.mxu0 0
        %398 = vmatpush1.bf16.msra.mxu0 %v378
        %399 = vmatprep.subr.bf16.mxu0 0
        %400 = vmatpush1.bf16.msra.mxu0 %v379
        %401 = vmatprep.subr.bf16.mxu0 0
        %402 = vmatpush1.bf16.msra.mxu0 %v380
        %403 = vmatprep.subr.bf16.mxu0 0
        %404 = vmatpush1.bf16.msra.mxu0 %v381
        %405 = vmatprep.subr.bf16.mxu0 0
        %406 = vmatpush1.bf16.msra.mxu0 %v382
        %407 = vmatprep.subr.bf16.mxu0 0
        %408 = vmatpush1.bf16.msra.mxu0 0
        %409 = vmatprep.subr.bf16.mxu0 0
        %410 = vmatpush1.bf16.msra.mxu0 0
        %411 = vmatprep.subr.bf16.mxu0 0
        %412 = vmatpush1.bf16.msra.mxu0 0
        %413 = vmatprep.subr.bf16.mxu0 0
        %414 = vmatpush1.bf16.msra.mxu0 0
        %415 = vmatprep.subr.bf16.mxu0 0
        %416 = vmatpush1.bf16.msra.mxu0 0
        %417 = vmatprep.subr.bf16.mxu0 0
        %418 = vmatpush1.bf16.msra.mxu0 0
        %419 = vmatprep.subr.bf16.mxu0 0
        %420 = vmatpush1.bf16.msra.mxu0 0
        %421 = vmatprep.subr.bf16.mxu0 0
        %422 = vmatpush1.bf16.msra.mxu0 0
        %423 = vmatprep.mubr.bf16.mxu0 0
        %424 = vmatmul.mubr.bf16.gmra.mrb[0].mxu0 %v342
        %v425 = vpop.f32.mrb[0].mxu0
        %v426 = vadd.f32 0.0, %v425
        %v427 = vpop.f32.mrb[0].mxu0
        %v428 = vpop.f32.mrb[0].mxu0
        %v429 = vpop.f32.mrb[0].mxu0
        %430 = vdwg.mxu0
        %v433 = vunpack.c.l.b16 %v291
        %v434 = vunpack.c.l.b16 %v292
        %v435 = vpack.c.b16 %v434, %v433
        %437 = vmatprep.subr.bf16.mxu0 0
        %438 = vmatpush1.bf16.xpose.msra.mxu0 %v435
        %439 = vmatprep.subr.bf16.mxu0 0
        %440 = vmatpush1.bf16.xpose.msra.mxu0 0
        %441 = vmatprep.subr.bf16.mxu0 0
        %442 = vmatpush1.bf16.xpose.msra.mxu0 0
        %443 = vmatprep.subr.bf16.mxu0 0
        %444 = vmatpush1.bf16.xpose.msra.mxu0 0
        %445 = vmatprep.subr.bf16.mxu0 0
        %446 = vmatpush1.bf16.xpose.msra.mxu0 0
        %447 = vmatprep.subr.bf16.mxu0 0
        %448 = vmatpush1.bf16.xpose.msra.mxu0 0
        %449 = vmatprep.subr.bf16.mxu0 0
        %450 = vmatpush1.bf16.xpose.msra.mxu0 0
        %451 = vmatprep.subr.bf16.mxu0 0
        %452 = vmatpush1.bf16.xpose.msra.mxu0 0
        %453 = vmatprep.subr.bf16.mxu0 0
        %454 = vmatpush1.bf16.xpose.msra.mxu0 0
        %455 = vmatprep.subr.bf16.mxu0 0
        %456 = vmatpush1.bf16.xpose.msra.mxu0 0
        %457 = vmatprep.subr.bf16.mxu0 0
        %458 = vmatpush1.bf16.xpose.msra.mxu0 0
        %459 = vmatprep.subr.bf16.mxu0 0
        %460 = vmatpush1.bf16.xpose.msra.mxu0 0
        %461 = vmatprep.subr.bf16.mxu0 0
        %462 = vmatpush1.bf16.xpose.msra.mxu0 0
        %463 = vmatprep.subr.bf16.mxu0 0
        %464 = vmatpush1.bf16.xpose.msra.mxu0 0
        %465 = vmatprep.subr.bf16.mxu0 0
        %466 = vmatpush1.bf16.xpose.msra.mxu0 0
        %467 = vmatprep.subr.bf16.mxu0 0
        %468 = vmatpush1.bf16.xpose.msra.mxu0 0
        %469 = vmatprep.mubr.bf16.mxu0 0
        %470 = vmatmul.mubr.bf16.gmra.mrb[0].mxu0 %v308
        %v471 = vpop.f32.mrb[0].mxu0
        %v472 = vadd.f32 0.0, %v471
        %v473 = vpop.f32.mrb[0].mxu0
        %v474 = vpop.f32.mrb[0].mxu0
        %v475 = vpop.f32.mrb[0].mxu0
        %476 = vdwg.mxu0
        %v479 = vunpack.c.l.b16 %v293
        %v480 = vunpack.c.l.b16 %v294
        %v481 = vpack.c.b16 %v480, %v479
        %483 = vmatprep.subr.bf16.mxu0 0
        %484 = vmatpush1.bf16.xpose.msra.mxu0 %v481
        %485 = vmatprep.subr.bf16.mxu0 0
        %486 = vmatpush1.bf16.xpose.msra.mxu0 0
        %487 = vmatprep.subr.bf16.mxu0 0
        %488 = vmatpush1.bf16.xpose.msra.mxu0 0
        %489 = vmatprep.subr.bf16.mxu0 0
        %490 = vmatpush1.bf16.xpose.msra.mxu0 0
        %491 = vmatprep.subr.bf16.mxu0 0
        %492 = vmatpush1.bf16.xpose.msra.mxu0 0
        %493 = vmatprep.subr.bf16.mxu0 0
        %494 = vmatpush1.bf16.xpose.msra.mxu0 0
        %495 = vmatprep.subr.bf16.mxu0 0
        %496 = vmatpush1.bf16.xpose.msra.mxu0 0
        %497 = vmatprep.subr.bf16.mxu0 0
        %498 = vmatpush1.bf16.xpose.msra.mxu0 0
        %499 = vmatprep.subr.bf16.mxu0 0
        %500 = vmatpush1.bf16.xpose.msra.mxu0 0
        %501 = vmatprep.subr.bf16.mxu0 0
        %502 = vmatpush1.bf16.xpose.msra.mxu0 0
        %503 = vmatprep.subr.bf16.mxu0 0
        %504 = vmatpush1.bf16.xpose.msra.mxu0 0
        %505 = vmatprep.subr.bf16.mxu0 0
        %506 = vmatpush1.bf16.xpose.msra.mxu0 0
        %507 = vmatprep.subr.bf16.mxu0 0
        %508 = vmatpush1.bf16.xpose.msra.mxu0 0
        %509 = vmatprep.subr.bf16.mxu0 0
        %510 = vmatpush1.bf16.xpose.msra.mxu0 0
        %511 = vmatprep.subr.bf16.mxu0 0
        %512 = vmatpush1.bf16.xpose.msra.mxu0 0
        %513 = vmatprep.subr.bf16.mxu0 0
        %514 = vmatpush1.bf16.xpose.msra.mxu0 0
        %515 = vmatprep.mubr.bf16.mxu0 0
        %516 = vmatmul.mubr.bf16.gmra.mrb[0].mxu0 %v308
        %v517 = vpop.f32.mrb[0].mxu0
        %v518 = vadd.f32 0.0, %v517
        %v519 = vpop.f32.mrb[0].mxu0
        %v520 = vpop.f32.mrb[0].mxu0
        %v521 = vpop.f32.mrb[0].mxu0
        %522 = vdwg.mxu0
        %v525 = vunpack.c.l.b16 %v295
        %v526 = vunpack.c.l.b16 %v296
        %v527 = vpack.c.b16 %v526, %v525
        %529 = vmatprep.subr.bf16.mxu0 0
        %530 = vmatpush1.bf16.xpose.msra.mxu0 %v527
        %531 = vmatprep.subr.bf16.mxu0 0
        %532 = vmatpush1.bf16.xpose.msra.mxu0 0
        %533 = vmatprep.subr.bf16.mxu0 0
        %534 = vmatpush1.bf16.xpose.msra.mxu0 0
        %535 = vmatprep.subr.bf16.mxu0 0
        %536 = vmatpush1.bf16.xpose.msra.mxu0 0
        %537 = vmatprep.subr.bf16.mxu0 0
        %538 = vmatpush1.bf16.xpose.msra.mxu0 0
        %539 = vmatprep.subr.bf16.mxu0 0
        %540 = vmatpush1.bf16.xpose.msra.mxu0 0
        %541 = vmatprep.subr.bf16.mxu0 0
        %542 = vmatpush1.bf16.xpose.msra.mxu0 0
        %543 = vmatprep.subr.bf16.mxu0 0
        %544 = vmatpush1.bf16.xpose.msra.mxu0 0
        %545 = vmatprep.subr.bf16.mxu0 0
        %546 = vmatpush1.bf16.xpose.msra.mxu0 0
        %547 = vmatprep.subr.bf16.mxu0 0
        %548 = vmatpush1.bf16.xpose.msra.mxu0 0
        %549 = vmatprep.subr.bf16.mxu0 0
        %550 = vmatpush1.bf16.xpose.msra.mxu0 0
        %551 = vmatprep.subr.bf16.mxu0 0
        %552 = vmatpush1.bf16.xpose.msra.mxu0 0
        %553 = vmatprep.subr.bf16.mxu0 0
        %554 = vmatpush1.bf16.xpose.msra.mxu0 0
        %555 = vmatprep.subr.bf16.mxu0 0
        %556 = vmatpush1.bf16.xpose.msra.mxu0 0
        %557 = vmatprep.subr.bf16.mxu0 0
        %558 = vmatpush1.bf16.xpose.msra.mxu0 0
        %559 = vmatprep.subr.bf16.mxu0 0
        %560 = vmatpush1.bf16.xpose.msra.mxu0 0
        %561 = vmatprep.mubr.bf16.mxu0 0
        %562 = vmatmul.mubr.bf16.gmra.mrb[0].mxu0 %v308
        %v563 = vpop.f32.mrb[0].mxu0
        %v564 = vadd.f32 0.0, %v563
        %v565 = vpop.f32.mrb[0].mxu0
        %v566 = vpop.f32.mrb[0].mxu0
        %v567 = vpop.f32.mrb[0].mxu0
        %568 = vdwg.mxu0
        %v571 = vunpack.c.l.b16 %v297
        %v572 = vunpack.c.l.b16 %v298
        %v573 = vpack.c.b16 %v572, %v571
        %575 = vmatprep.subr.bf16.mxu0 0
        %576 = vmatpush1.bf16.xpose.msra.mxu0 %v573
        %577 = vmatprep.subr.bf16.mxu0 0
        %578 = vmatpush1.bf16.xpose.msra.mxu0 0
        %579 = vmatprep.subr.bf16.mxu0 0
        %580 = vmatpush1.bf16.xpose.msra.mxu0 0
        %581 = vmatprep.subr.bf16.mxu0 0
        %582 = vmatpush1.bf16.xpose.msra.mxu0 0
        %583 = vmatprep.subr.bf16.mxu0 0
        %584 = vmatpush1.bf16.xpose.msra.mxu0 0
        %585 = vmatprep.subr.bf16.mxu0 0
        %586 = vmatpush1.bf16.xpose.msra.mxu0 0
        %587 = vmatprep.subr.bf16.mxu0 0
        %588 = vmatpush1.bf16.xpose.msra.mxu0 0
        %589 = vmatprep.subr.bf16.mxu0 0
        %590 = vmatpush1.bf16.xpose.msra.mxu0 0
        %591 = vmatprep.subr.bf16.mxu0 0
        %592 = vmatpush1.bf16.xpose.msra.mxu0 0
        %593 = vmatprep.subr.bf16.mxu0 0
        %594 = vmatpush1.bf16.xpose.msra.mxu0 0
        %595 = vmatprep.subr.bf16.mxu0 0
        %596 = vmatpush1.bf16.xpose.msra.mxu0 0
        %597 = vmatprep.subr.bf16.mxu0 0
        %598 = vmatpush1.bf16.xpose.msra.mxu0 0
        %599 = vmatprep.subr.bf16.mxu0 0
        %600 = vmatpush1.bf16.xpose.msra.mxu0 0
        %601 = vmatprep.subr.bf16.mxu0 0
        %602 = vmatpush1.bf16.xpose.msra.mxu0 0
        %603 = vmatprep.subr.bf16.mxu0 0
        %604 = vmatpush1.bf16.xpose.msra.mxu0 0
        %605 = vmatprep.subr.bf16.mxu0 0
        %606 = vmatpush1.bf16.xpose.msra.mxu0 0
        %607 = vmatprep.mubr.bf16.mxu0 0
        %608 = vmatmul.mubr.bf16.gmra.mrb[0].mxu0 %v308
        %v609 = vpop.f32.mrb[0].mxu0
        %v610 = vadd.f32 0.0, %v609
        %v611 = vpop.f32.mrb[0].mxu0
        %v612 = vpop.f32.mrb[0].mxu0
        %v613 = vpop.f32.mrb[0].mxu0
        %614 = vdwg.mxu0
        %v617 = vunpack.c.l.b16 %v299
        %v618 = vunpack.c.l.b16 %v300
        %v619 = vpack.c.b16 %v618, %v617
        %621 = vmatprep.subr.bf16.mxu0 0
        %622 = vmatpush1.bf16.xpose.msra.mxu0 %v619
        %623 = vmatprep.subr.bf16.mxu0 0
        %624 = vmatpush1.bf16.xpose.msra.mxu0 0
        %625 = vmatprep.subr.bf16.mxu0 0
        %626 = vmatpush1.bf16.xpose.msra.mxu0 0
        %627 = vmatprep.subr.bf16.mxu0 0
        %628 = vmatpush1.bf16.xpose.msra.mxu0 0
        %629 = vmatprep.subr.bf16.mxu0 0
        %630 = vmatpush1.bf16.xpose.msra.mxu0 0
        %631 = vmatprep.subr.bf16.mxu0 0
        %632 = vmatpush1.bf16.xpose.msra.mxu0 0
        %633 = vmatprep.subr.bf16.mxu0 0
        %634 = vmatpush1.bf16.xpose.msra.mxu0 0
        %635 = vmatprep.subr.bf16.mxu0 0
        %636 = vmatpush1.bf16.xpose.msra.mxu0 0
        %637 = vmatprep.subr.bf16.mxu0 0
        %638 = vmatpush1.bf16.xpose.msra.mxu0 0
        %639 = vmatprep.subr.bf16.mxu0 0
        %640 = vmatpush1.bf16.xpose.msra.mxu0 0
        %641 = vmatprep.subr.bf16.mxu0 0
        %642 = vmatpush1.bf16.xpose.msra.mxu0 0
        %643 = vmatprep.subr.bf16.mxu0 0
        %644 = vmatpush1.bf16.xpose.msra.mxu0 0
        %645 = vmatprep.subr.bf16.mxu0 0
        %646 = vmatpush1.bf16.xpose.msra.mxu0 0
        %647 = vmatprep.subr.bf16.mxu0 0
        %648 = vmatpush1.bf16.xpose.msra.mxu0 0
        %649 = vmatprep.subr.bf16.mxu0 0
        %650 = vmatpush1.bf16.xpose.msra.mxu0 0
        %651 = vmatprep.subr.bf16.mxu0 0
        %652 = vmatpush1.bf16.xpose.msra.mxu0 0
        %653 = vmatprep.mubr.bf16.mxu0 0
        %654 = vmatmul.mubr.bf16.gmra.mrb[0].mxu0 %v308
        %v655 = vpop.f32.mrb[0].mxu0
        %v656 = vadd.f32 0.0, %v655
        %v657 = vpop.f32.mrb[0].mxu0
        %v658 = vpop.f32.mrb[0].mxu0
        %v659 = vpop.f32.mrb[0].mxu0
        %660 = vdwg.mxu0
        %v663 = vunpack.c.l.b16 %v301
        %v664 = vunpack.c.l.b16 %v302
        %v665 = vpack.c.b16 %v664, %v663
        %667 = vmatprep.subr.bf16.mxu0 0
        %668 = vmatpush1.bf16.xpose.msra.mxu0 %v665
        %669 = vmatprep.subr.bf16.mxu0 0
        %670 = vmatpush1.bf16.xpose.msra.mxu0 0
        %671 = vmatprep.subr.bf16.mxu0 0
        %672 = vmatpush1.bf16.xpose.msra.mxu0 0
        %673 = vmatprep.subr.bf16.mxu0 0
        %674 = vmatpush1.bf16.xpose.msra.mxu0 0
        %675 = vmatprep.subr.bf16.mxu0 0
        %676 = vmatpush1.bf16.xpose.msra.mxu0 0
        %677 = vmatprep.subr.bf16.mxu0 0
        %678 = vmatpush1.bf16.xpose.msra.mxu0 0
        %679 = vmatprep.subr.bf16.mxu0 0
        %680 = vmatpush1.bf16.xpose.msra.mxu0 0
        %681 = vmatprep.subr.bf16.mxu0 0
        %682 = vmatpush1.bf16.xpose.msra.mxu0 0
        %683 = vmatprep.subr.bf16.mxu0 0
        %684 = vmatpush1.bf16.xpose.msra.mxu0 0
        %685 = vmatprep.subr.bf16.mxu0 0
        %686 = vmatpush1.bf16.xpose.msra.mxu0 0
        %687 = vmatprep.subr.bf16.mxu0 0
        %688 = vmatpush1.bf16.xpose.msra.mxu0 0
        %689 = vmatprep.subr.bf16.mxu0 0
        %690 = vmatpush1.bf16.xpose.msra.mxu0 0
        %691 = vmatprep.subr.bf16.mxu0 0
        %692 = vmatpush1.bf16.xpose.msra.mxu0 0
        %693 = vmatprep.subr.bf16.mxu0 0
        %694 = vmatpush1.bf16.xpose.msra.mxu0 0
        %695 = vmatprep.subr.bf16.mxu0 0
        %696 = vmatpush1.bf16.xpose.msra.mxu0 0
        %697 = vmatprep.subr.bf16.mxu0 0
        %698 = vmatpush1.bf16.xpose.msra.mxu0 0
        %699 = vmatprep.mubr.bf16.mxu0 0
        %700 = vmatmul.mubr.bf16.gmra.mrb[0].mxu0 %v308
        %v701 = vpop.f32.mrb[0].mxu0
        %v702 = vadd.f32 0.0, %v701
        %v703 = vpop.f32.mrb[0].mxu0
        %v704 = vpop.f32.mrb[0].mxu0
        %v705 = vpop.f32.mrb[0].mxu0
        %706 = vdwg.mxu0
        %v709 = vunpack.c.l.b16 %v303
        %v710 = vunpack.c.l.b16 %v304
        %v711 = vpack.c.b16 %v710, %v709
        %713 = vmatprep.subr.bf16.mxu0 0
        %714 = vmatpush1.bf16.xpose.msra.mxu0 %v711
        %715 = vmatprep.subr.bf16.mxu0 0
        %716 = vmatpush1.bf16.xpose.msra.mxu0 0
        %717 = vmatprep.subr.bf16.mxu0 0
        %718 = vmatpush1.bf16.xpose.msra.mxu0 0
        %719 = vmatprep.subr.bf16.mxu0 0
        %720 = vmatpush1.bf16.xpose.msra.mxu0 0
        %721 = vmatprep.subr.bf16.mxu0 0
        %722 = vmatpush1.bf16.xpose.msra.mxu0 0
        %723 = vmatprep.subr.bf16.mxu0 0
        %724 = vmatpush1.bf16.xpose.msra.mxu0 0
        %725 = vmatprep.subr.bf16.mxu0 0
        %726 = vmatpush1.bf16.xpose.msra.mxu0 0
        %727 = vmatprep.subr.bf16.mxu0 0
        %728 = vmatpush1.bf16.xpose.msra.mxu0 0
        %729 = vmatprep.subr.bf16.mxu0 0
        %730 = vmatpush1.bf16.xpose.msra.mxu0 0
        %731 = vmatprep.subr.bf16.mxu0 0
        %732 = vmatpush1.bf16.xpose.msra.mxu0 0
        %733 = vmatprep.subr.bf16.mxu0 0
        %734 = vmatpush1.bf16.xpose.msra.mxu0 0
        %735 = vmatprep.subr.bf16.mxu0 0
        %736 = vmatpush1.bf16.xpose.msra.mxu0 0
        %737 = vmatprep.subr.bf16.mxu0 0
        %738 = vmatpush1.bf16.xpose.msra.mxu0 0
        %739 = vmatprep.subr.bf16.mxu0 0
        %740 = vmatpush1.bf16.xpose.msra.mxu0 0
        %741 = vmatprep.subr.bf16.mxu0 0
        %742 = vmatpush1.bf16.xpose.msra.mxu0 0
        %743 = vmatprep.subr.bf16.mxu0 0
        %744 = vmatpush1.bf16.xpose.msra.mxu0 0
        %745 = vmatprep.mubr.bf16.mxu0 0
        %746 = vmatmul.mubr.bf16.gmra.mrb[0].mxu0 %v308
        %v747 = vpop.f32.mrb[0].mxu0
        %v748 = vadd.f32 0.0, %v747
        %v749 = vpop.f32.mrb[0].mxu0
        %v750 = vpop.f32.mrb[0].mxu0
        %v751 = vpop.f32.mrb[0].mxu0
        %752 = vdwg.mxu0
        %v755 = vunpack.c.l.b16 %v305
        %v756 = vunpack.c.l.b16 %v306
        %v757 = vpack.c.b16 %v756, %v755
        %759 = vmatprep.subr.bf16.mxu0 0
        %760 = vmatpush1.bf16.xpose.msra.mxu0 %v757
        %761 = vmatprep.subr.bf16.mxu0 0
        %762 = vmatpush1.bf16.xpose.msra.mxu0 0
        %763 = vmatprep.subr.bf16.mxu0 0
        %764 = vmatpush1.bf16.xpose.msra.mxu0 0
        %765 = vmatprep.subr.bf16.mxu0 0
        %766 = vmatpush1.bf16.xpose.msra.mxu0 0
        %767 = vmatprep.subr.bf16.mxu0 0
        %768 = vmatpush1.bf16.xpose.msra.mxu0 0
        %769 = vmatprep.subr.bf16.mxu0 0
        %770 = vmatpush1.bf16.xpose.msra.mxu0 0
        %771 = vmatprep.subr.bf16.mxu0 0
        %772 = vmatpush1.bf16.xpose.msra.mxu0 0
        %773 = vmatprep.subr.bf16.mxu0 0
        %774 = vmatpush1.bf16.xpose.msra.mxu0 0
        %775 = vmatprep.subr.bf16.mxu0 0
        %776 = vmatpush1.bf16.xpose.msra.mxu0 0
        %777 = vmatprep.subr.bf16.mxu0 0
        %778 = vmatpush1.bf16.xpose.msra.mxu0 0
        %779 = vmatprep.subr.bf16.mxu0 0
        %780 = vmatpush1.bf16.xpose.msra.mxu0 0
        %781 = vmatprep.subr.bf16.mxu0 0
        %782 = vmatpush1.bf16.xpose.msra.mxu0 0
        %783 = vmatprep.subr.bf16.mxu0 0
        %784 = vmatpush1.bf16.xpose.msra.mxu0 0
        %785 = vmatprep.subr.bf16.mxu0 0
        %786 = vmatpush1.bf16.xpose.msra.mxu0 0
        %787 = vmatprep.subr.bf16.mxu0 0
        %788 = vmatpush1.bf16.xpose.msra.mxu0 0
        %789 = vmatprep.subr.bf16.mxu0 0
        %790 = vmatpush1.bf16.xpose.msra.mxu0 0
        %791 = vmatprep.mubr.bf16.mxu0 0
        %792 = vmatmul.mubr.bf16.gmra.mrb[0].mxu0 %v308
        %v793 = vpop.f32.mrb[0].mxu0
        %v794 = vadd.f32 0.0, %v793
        %v795 = vpop.f32.mrb[0].mxu0
        %v796 = vpop.f32.mrb[0].mxu0
        %v797 = vpop.f32.mrb[0].mxu0
        %798 = vdwg.mxu0
        %v799 = vlaneseq
        %v800 = vshrl.u32 %v799, 7
        %v801 = vsub.s32 0, %v800
        %v802 = vrot.slane %v426, %v801
        %804 = vbcast.lane.b32.xlu0 %v802, 256
        %v805 = vpop.permute.xlu0 %804
        %v806 = vlaneseq
        %v807 = vshrl.u32 %v806, 7
        %v808 = vsub.s32 1, %v807
        %v809 = vrot.slane %v426, %v808
        %811 = vbcast.lane.b32.xlu0 %v809, 256
        %v812 = vpop.permute.xlu0 %811
        %v813 = vlaneseq
        %v814 = vshrl.u32 %v813, 7
        %v815 = vsub.s32 2, %v814
        %v816 = vrot.slane %v426, %v815
        %818 = vbcast.lane.b32.xlu0 %v816, 256
        %v819 = vpop.permute.xlu0 %818
        %v820 = vlaneseq
        %v821 = vshrl.u32 %v820, 7
        %v822 = vsub.s32 3, %v821
        %v823 = vrot.slane %v426, %v822
        %825 = vbcast.lane.b32.xlu0 %v823, 256
        %v826 = vpop.permute.xlu0 %825
        %v827 = vlaneseq
        %v828 = vshrl.u32 %v827, 7
        %v829 = vsub.s32 4, %v828
        %v830 = vrot.slane %v426, %v829
        %832 = vbcast.lane.b32.xlu0 %v830, 256
        %v833 = vpop.permute.xlu0 %832
        %v834 = vlaneseq
        %v835 = vshrl.u32 %v834, 7
        %v836 = vsub.s32 5, %v835
        %v837 = vrot.slane %v426, %v836
        %839 = vbcast.lane.b32.xlu0 %v837, 256
        %v840 = vpop.permute.xlu0 %839
        %v841 = vlaneseq
        %v842 = vshrl.u32 %v841, 7
        %v843 = vsub.s32 6, %v842
        %v844 = vrot.slane %v426, %v843
        %846 = vbcast.lane.b32.xlu0 %v844, 256
        %v847 = vpop.permute.xlu0 %846
        %v848 = vlaneseq
        %v849 = vshrl.u32 %v848, 7
        %v850 = vsub.s32 7, %v849
        %v851 = vrot.slane %v426, %v850
        %853 = vbcast.lane.b32.xlu0 %v851, 256
        %v854 = vpop.permute.xlu0 %853
        %v855 = vlaneseq
        %v856 = vshrl.u32 %v855, 7
        %v857 = vsub.s32 0, %v856
        %v858 = vrot.slane %v472, %v857
        %v859 = vlaneseq
        %v860 = vshrl.u32 %v859, 7
        %v861 = vsub.s32 0, %v860
        %v862 = vrot.slane %v518, %v861
        %v863 = vlaneseq
        %v864 = vshrl.u32 %v863, 7
        %v865 = vsub.s32 0, %v864
        %v866 = vrot.slane %v564, %v865
        %v867 = vlaneseq
        %v868 = vshrl.u32 %v867, 7
        %v869 = vsub.s32 0, %v868
        %v870 = vrot.slane %v610, %v869
        %v871 = vlaneseq
        %v872 = vshrl.u32 %v871, 7
        %v873 = vsub.s32 0, %v872
        %v874 = vrot.slane %v656, %v873
        %v875 = vlaneseq
        %v876 = vshrl.u32 %v875, 7
        %v877 = vsub.s32 0, %v876
        %v878 = vrot.slane %v702, %v877
        %v879 = vlaneseq
        %v880 = vshrl.u32 %v879, 7
        %v881 = vsub.s32 0, %v880
        %v882 = vrot.slane %v748, %v881
        %v883 = vlaneseq
        %v884 = vshrl.u32 %v883, 7
        %v885 = vsub.s32 0, %v884
        %v886 = vrot.slane %v794, %v885
        %v887 = vmul.f32 %v805, %v858
        %v888 = vmul.f32 %v812, %v862
        %v889 = vmul.f32 %v819, %v866
        %v890 = vmul.f32 %v826, %v870
        %v891 = vmul.f32 %v833, %v874
        %v892 = vmul.f32 %v840, %v878
        %v893 = vmul.f32 %v847, %v882
        %v894 = vmul.f32 %v854, %v886
        %vm895 = vcmask 130048
        %v896 = vsel %vm895, %v887, -inf
        %897 = vmax.xlane.f32.xlu0 %v896
        %v898 = vpop.xlane.xlu0 %897
        %v899 = vsel %vm895, %v888, -inf
        %900 = vmax.xlane.f32.xlu0 %v899
        %v901 = vpop.xlane.xlu0 %900
        %v902 = vsel %vm895, %v889, -inf
        %903 = vmax.xlane.f32.xlu0 %v902
        %v904 = vpop.xlane.xlu0 %903
        %v905 = vsel %vm895, %v890, -inf
        %906 = vmax.xlane.f32.xlu0 %v905
        %v907 = vpop.xlane.xlu0 %906
        %v908 = vsel %vm895, %v891, -inf
        %909 = vmax.xlane.f32.xlu0 %v908
        %v910 = vpop.xlane.xlu0 %909
        %v911 = vsel %vm895, %v892, -inf
        %912 = vmax.xlane.f32.xlu0 %v911
        %v913 = vpop.xlane.xlu0 %912
        %v914 = vsel %vm895, %v893, -inf
        %915 = vmax.xlane.f32.xlu0 %v914
        %v916 = vpop.xlane.xlu0 %915
        %v917 = vsel %vm895, %v894, -inf
        %918 = vmax.xlane.f32.xlu0 %v917
        %v919 = vpop.xlane.xlu0 %918
        %v920 = vsub.f32 %v887, %v898
        %v921 = vsub.f32 %v888, %v901
        %v922 = vsub.f32 %v889, %v904
        %v923 = vsub.f32 %v890, %v907
        %v924 = vsub.f32 %v891, %v910
        %v925 = vsub.f32 %v892, %v913
        %v926 = vsub.f32 %v893, %v916
        %v927 = vsub.f32 %v894, %v919
        %v928 = vmul.f32 %v920, 1.442695
        %v929 = vpow.pop %v928
        %v930 = vmul.f32 %v921, 1.442695
        %v931 = vpow.pop %v930
        %v932 = vmul.f32 %v922, 1.442695
        %v933 = vpow.pop %v932
        %v934 = vmul.f32 %v923, 1.442695
        %v935 = vpow.pop %v934
        %v936 = vmul.f32 %v924, 1.442695
        %v937 = vpow.pop %v936
        %v938 = vmul.f32 %v925, 1.442695
        %v939 = vpow.pop %v938
        %v940 = vmul.f32 %v926, 1.442695
        %v941 = vpow.pop %v940
        %v942 = vmul.f32 %v927, 1.442695
        %v943 = vpow.pop %v942
        %v944 = vsel %vm895, %v929, 0.0
        %945 = vadd.xlane.f32.xlu0 %v944
        %v946 = vpop.xlane.xlu0 %945
        %v947 = vsel %vm895, %v931, 0.0
        %948 = vadd.xlane.f32.xlu0 %v947
        %v949 = vpop.xlane.xlu0 %948
        %v950 = vsel %vm895, %v933, 0.0
        %951 = vadd.xlane.f32.xlu0 %v950
        %v952 = vpop.xlane.xlu0 %951
        %v953 = vsel %vm895, %v935, 0.0
        %954 = vadd.xlane.f32.xlu0 %v953
        %v955 = vpop.xlane.xlu0 %954
        %v956 = vsel %vm895, %v937, 0.0
        %957 = vadd.xlane.f32.xlu0 %v956
        %v958 = vpop.xlane.xlu0 %957
        %v959 = vsel %vm895, %v939, 0.0
        %960 = vadd.xlane.f32.xlu0 %v959
        %v961 = vpop.xlane.xlu0 %960
        %v962 = vsel %vm895, %v941, 0.0
        %963 = vadd.xlane.f32.xlu0 %v962
        %v964 = vpop.xlane.xlu0 %963
        %v965 = vsel %vm895, %v943, 0.0
        %966 = vadd.xlane.f32.xlu0 %v965
        %v967 = vpop.xlane.xlu0 %966
        %v968 = vrcp.pop %v946
        %v969 = vrcp.pop %v949
        %v970 = vrcp.pop %v952
        %v971 = vrcp.pop %v955
        %v972 = vrcp.pop %v958
        %v973 = vrcp.pop %v961
        %v974 = vrcp.pop %v964
        %v975 = vrcp.pop %v967
        %v976 = vmul.f32 %v929, %v968
        %v977 = vmul.f32 %v931, %v969
        %v978 = vmul.f32 %v933, %v970
        %v979 = vmul.f32 %v935, %v971
        %v980 = vmul.f32 %v937, %v972
        %v981 = vmul.f32 %v939, %v973
        %v982 = vmul.f32 %v941, %v974
        %v983 = vmul.f32 %v943, %v975
        %v984 = vpack.c.bf16 %v976, %v976
        %v985 = vpack.c.bf16 %v977, %v977
        %v986 = vpack.c.bf16 %v978, %v978
        %v987 = vpack.c.bf16 %v979, %v979
        %v988 = vpack.c.bf16 %v980, %v980
        %v989 = vpack.c.bf16 %v981, %v981
        %v990 = vpack.c.bf16 %v982, %v982
        %v991 = vpack.c.bf16 %v983, %v983
        %v993 = vsel %vm895, %v984, 0
        %995 = vmatprep.subr.bf16.mxu0 0
        %996 = vmatpush1.bf16.msra.mxu0 %v435
        %997 = vmatprep.subr.bf16.mxu0 0
        %998 = vmatpush1.bf16.msra.mxu0 0
        %999 = vmatprep.subr.bf16.mxu0 0
        %1000 = vmatpush1.bf16.msra.mxu0 0
        %1001 = vmatprep.subr.bf16.mxu0 0
        %1002 = vmatpush1.bf16.msra.mxu0 0
        %1003 = vmatprep.subr.bf16.mxu0 0
        %1004 = vmatpush1.bf16.msra.mxu0 0
        %1005 = vmatprep.subr.bf16.mxu0 0
        %1006 = vmatpush1.bf16.msra.mxu0 0
        %1007 = vmatprep.subr.bf16.mxu0 0
        %1008 = vmatpush1.bf16.msra.mxu0 0
        %1009 = vmatprep.subr.bf16.mxu0 0
        %1010 = vmatpush1.bf16.msra.mxu0 0
        %1011 = vmatprep.subr.bf16.mxu0 0
        %1012 = vmatpush1.bf16.msra.mxu0 0
        %1013 = vmatprep.subr.bf16.mxu0 0
        %1014 = vmatpush1.bf16.msra.mxu0 0
        %1015 = vmatprep.subr.bf16.mxu0 0
        %1016 = vmatpush1.bf16.msra.mxu0 0
        %1017 = vmatprep.subr.bf16.mxu0 0
        %1018 = vmatpush1.bf16.msra.mxu0 0
        %1019 = vmatprep.subr.bf16.mxu0 0
        %1020 = vmatpush1.bf16.msra.mxu0 0
        %1021 = vmatprep.subr.bf16.mxu0 0
        %1022 = vmatpush1.bf16.msra.mxu0 0
        %1023 = vmatprep.subr.bf16.mxu0 0
        %1024 = vmatpush1.bf16.msra.mxu0 0
        %1025 = vmatprep.subr.bf16.mxu0 0
        %1026 = vmatpush1.bf16.msra.mxu0 0
        %1027 = vmatprep.mubr.bf16.mxu0 0
        %1028 = vmatmul.mubr.bf16.gmra.mrb[0].mxu0 %v993
        %v1029 = vpop.f32.mrb[0].mxu0
        %v1030 = vadd.f32 0.0, %v1029
        %v1031 = vpop.f32.mrb[0].mxu0
        %v1032 = vpop.f32.mrb[0].mxu0
        %v1033 = vpop.f32.mrb[0].mxu0
        %1034 = vdwg.mxu0
        %v1036 = vsel %vm895, %v985, 0
        %1038 = vmatprep.subr.bf16.mxu0 0
        %1039 = vmatpush1.bf16.msra.mxu0 %v481
        %1040 = vmatprep.subr.bf16.mxu0 0
        %1041 = vmatpush1.bf16.msra.mxu0 0
        %1042 = vmatprep.subr.bf16.mxu0 0
        %1043 = vmatpush1.bf16.msra.mxu0 0
        %1044 = vmatprep.subr.bf16.mxu0 0
        %1045 = vmatpush1.bf16.msra.mxu0 0
        %1046 = vmatprep.subr.bf16.mxu0 0
        %1047 = vmatpush1.bf16.msra.mxu0 0
        %1048 = vmatprep.subr.bf16.mxu0 0
        %1049 = vmatpush1.bf16.msra.mxu0 0
        %1050 = vmatprep.subr.bf16.mxu0 0
        %1051 = vmatpush1.bf16.msra.mxu0 0
        %1052 = vmatprep.subr.bf16.mxu0 0
        %1053 = vmatpush1.bf16.msra.mxu0 0
        %1054 = vmatprep.subr.bf16.mxu0 0
        %1055 = vmatpush1.bf16.msra.mxu0 0
        %1056 = vmatprep.subr.bf16.mxu0 0
        %1057 = vmatpush1.bf16.msra.mxu0 0
        %1058 = vmatprep.subr.bf16.mxu0 0
        %1059 = vmatpush1.bf16.msra.mxu0 0
        %1060 = vmatprep.subr.bf16.mxu0 0
        %1061 = vmatpush1.bf16.msra.mxu0 0
        %1062 = vmatprep.subr.bf16.mxu0 0
        %1063 = vmatpush1.bf16.msra.mxu0 0
        %1064 = vmatprep.subr.bf16.mxu0 0
        %1065 = vmatpush1.bf16.msra.mxu0 0
        %1066 = vmatprep.subr.bf16.mxu0 0
        %1067 = vmatpush1.bf16.msra.mxu0 0
        %1068 = vmatprep.subr.bf16.mxu0 0
        %1069 = vmatpush1.bf16.msra.mxu0 0
        %1070 = vmatprep.mubr.bf16.mxu0 0
        %1071 = vmatmul.mubr.bf16.gmra.mrb[0].mxu0 %v1036
        %v1072 = vpop.f32.mrb[0].mxu0
        %v1073 = vadd.f32 0.0, %v1072
        %v1074 = vpop.f32.mrb[0].mxu0
        %v1075 = vpop.f32.mrb[0].mxu0
        %v1076 = vpop.f32.mrb[0].mxu0
        %1077 = vdwg.mxu0
        %v1079 = vsel %vm895, %v986, 0
        %1081 = vmatprep.subr.bf16.mxu0 0
        %1082 = vmatpush1.bf16.msra.mxu0 %v527
        %1083 = vmatprep.subr.bf16.mxu0 0
        %1084 = vmatpush1.bf16.msra.mxu0 0
        %1085 = vmatprep.subr.bf16.mxu0 0
        %1086 = vmatpush1.bf16.msra.mxu0 0
        %1087 = vmatprep.subr.bf16.mxu0 0
        %1088 = vmatpush1.bf16.msra.mxu0 0
        %1089 = vmatprep.subr.bf16.mxu0 0
        %1090 = vmatpush1.bf16.msra.mxu0 0
        %1091 = vmatprep.subr.bf16.mxu0 0
        %1092 = vmatpush1.bf16.msra.mxu0 0
        %1093 = vmatprep.subr.bf16.mxu0 0
        %1094 = vmatpush1.bf16.msra.mxu0 0
        %1095 = vmatprep.subr.bf16.mxu0 0
        %1096 = vmatpush1.bf16.msra.mxu0 0
        %1097 = vmatprep.subr.bf16.mxu0 0
        %1098 = vmatpush1.bf16.msra.mxu0 0
        %1099 = vmatprep.subr.bf16.mxu0 0
        %1100 = vmatpush1.bf16.msra.mxu0 0
        %1101 = vmatprep.subr.bf16.mxu0 0
        %1102 = vmatpush1.bf16.msra.mxu0 0
        %1103 = vmatprep.subr.bf16.mxu0 0
        %1104 = vmatpush1.bf16.msra.mxu0 0
        %1105 = vmatprep.subr.bf16.mxu0 0
        %1106 = vmatpush1.bf16.msra.mxu0 0
        %1107 = vmatprep.subr.bf16.mxu0 0
        %1108 = vmatpush1.bf16.msra.mxu0 0
        %1109 = vmatprep.subr.bf16.mxu0 0
        %1110 = vmatpush1.bf16.msra.mxu0 0
        %1111 = vmatprep.subr.bf16.mxu0 0
        %1112 = vmatpush1.bf16.msra.mxu0 0
        %1113 = vmatprep.mubr.bf16.mxu0 0
        %1114 = vmatmul.mubr.bf16.gmra.mrb[0].mxu0 %v1079
        %v1115 = vpop.f32.mrb[0].mxu0
        %v1116 = vadd.f32 0.0, %v1115
        %v1117 = vpop.f32.mrb[0].mxu0
        %v1118 = vpop.f32.mrb[0].mxu0
        %v1119 = vpop.f32.mrb[0].mxu0
        %1120 = vdwg.mxu0
        %v1122 = vsel %vm895, %v987, 0
        %1124 = vmatprep.subr.bf16.mxu0 0
        %1125 = vmatpush1.bf16.msra.mxu0 %v573
        %1126 = vmatprep.subr.bf16.mxu0 0
        %1127 = vmatpush1.bf16.msra.mxu0 0
        %1128 = vmatprep.subr.bf16.mxu0 0
        %1129 = vmatpush1.bf16.msra.mxu0 0
        %1130 = vmatprep.subr.bf16.mxu0 0
        %1131 = vmatpush1.bf16.msra.mxu0 0
        %1132 = vmatprep.subr.bf16.mxu0 0
        %1133 = vmatpush1.bf16.msra.mxu0 0
        %1134 = vmatprep.subr.bf16.mxu0 0
        %1135 = vmatpush1.bf16.msra.mxu0 0
        %1136 = vmatprep.subr.bf16.mxu0 0
        %1137 = vmatpush1.bf16.msra.mxu0 0
        %1138 = vmatprep.subr.bf16.mxu0 0
        %1139 = vmatpush1.bf16.msra.mxu0 0
        %1140 = vmatprep.subr.bf16.mxu0 0
        %1141 = vmatpush1.bf16.msra.mxu0 0
        %1142 = vmatprep.subr.bf16.mxu0 0
        %1143 = vmatpush1.bf16.msra.mxu0 0
        %1144 = vmatprep.subr.bf16.mxu0 0
        %1145 = vmatpush1.bf16.msra.mxu0 0
        %1146 = vmatprep.subr.bf16.mxu0 0
        %1147 = vmatpush1.bf16.msra.mxu0 0
        %1148 = vmatprep.subr.bf16.mxu0 0
        %1149 = vmatpush1.bf16.msra.mxu0 0
        %1150 = vmatprep.subr.bf16.mxu0 0
        %1151 = vmatpush1.bf16.msra.mxu0 0
        %1152 = vmatprep.subr.bf16.mxu0 0
        %1153 = vmatpush1.bf16.msra.mxu0 0
        %1154 = vmatprep.subr.bf16.mxu0 0
        %1155 = vmatpush1.bf16.msra.mxu0 0
        %1156 = vmatprep.mubr.bf16.mxu0 0
        %1157 = vmatmul.mubr.bf16.gmra.mrb[0].mxu0 %v1122
        %v1158 = vpop.f32.mrb[0].mxu0
        %v1159 = vadd.f32 0.0, %v1158
        %v1160 = vpop.f32.mrb[0].mxu0
        %v1161 = vpop.f32.mrb[0].mxu0
        %v1162 = vpop.f32.mrb[0].mxu0
        %1163 = vdwg.mxu0
        %v1165 = vsel %vm895, %v988, 0
        %1167 = vmatprep.subr.bf16.mxu0 0
        %1168 = vmatpush1.bf16.msra.mxu0 %v619
        %1169 = vmatprep.subr.bf16.mxu0 0
        %1170 = vmatpush1.bf16.msra.mxu0 0
        %1171 = vmatprep.subr.bf16.mxu0 0
        %1172 = vmatpush1.bf16.msra.mxu0 0
        %1173 = vmatprep.subr.bf16.mxu0 0
        %1174 = vmatpush1.bf16.msra.mxu0 0
        %1175 = vmatprep.subr.bf16.mxu0 0
        %1176 = vmatpush1.bf16.msra.mxu0 0
        %1177 = vmatprep.subr.bf16.mxu0 0
        %1178 = vmatpush1.bf16.msra.mxu0 0
        %1179 = vmatprep.subr.bf16.mxu0 0
        %1180 = vmatpush1.bf16.msra.mxu0 0
        %1181 = vmatprep.subr.bf16.mxu0 0
        %1182 = vmatpush1.bf16.msra.mxu0 0
        %1183 = vmatprep.subr.bf16.mxu0 0
        %1184 = vmatpush1.bf16.msra.mxu0 0
        %1185 = vmatprep.subr.bf16.mxu0 0
        %1186 = vmatpush1.bf16.msra.mxu0 0
        %1187 = vmatprep.subr.bf16.mxu0 0
        %1188 = vmatpush1.bf16.msra.mxu0 0
        %1189 = vmatprep.subr.bf16.mxu0 0
        %1190 = vmatpush1.bf16.msra.mxu0 0
        %1191 = vmatprep.subr.bf16.mxu0 0
        %1192 = vmatpush1.bf16.msra.mxu0 0
        %1193 = vmatprep.subr.bf16.mxu0 0
        %1194 = vmatpush1.bf16.msra.mxu0 0
        %1195 = vmatprep.subr.bf16.mxu0 0
        %1196 = vmatpush1.bf16.msra.mxu0 0
        %1197 = vmatprep.subr.bf16.mxu0 0
        %1198 = vmatpush1.bf16.msra.mxu0 0
        %1199 = vmatprep.mubr.bf16.mxu0 0
        %1200 = vmatmul.mubr.bf16.gmra.mrb[0].mxu0 %v1165
        %v1201 = vpop.f32.mrb[0].mxu0
        %v1202 = vadd.f32 0.0, %v1201
        %v1203 = vpop.f32.mrb[0].mxu0
        %v1204 = vpop.f32.mrb[0].mxu0
        %v1205 = vpop.f32.mrb[0].mxu0
        %1206 = vdwg.mxu0
        %v1208 = vsel %vm895, %v989, 0
        %1210 = vmatprep.subr.bf16.mxu0 0
        %1211 = vmatpush1.bf16.msra.mxu0 %v665
        %1212 = vmatprep.subr.bf16.mxu0 0
        %1213 = vmatpush1.bf16.msra.mxu0 0
        %1214 = vmatprep.subr.bf16.mxu0 0
        %1215 = vmatpush1.bf16.msra.mxu0 0
        %1216 = vmatprep.subr.bf16.mxu0 0
        %1217 = vmatpush1.bf16.msra.mxu0 0
        %1218 = vmatprep.subr.bf16.mxu0 0
        %1219 = vmatpush1.bf16.msra.mxu0 0
        %1220 = vmatprep.subr.bf16.mxu0 0
        %1221 = vmatpush1.bf16.msra.mxu0 0
        %1222 = vmatprep.subr.bf16.mxu0 0
        %1223 = vmatpush1.bf16.msra.mxu0 0
        %1224 = vmatprep.subr.bf16.mxu0 0
        %1225 = vmatpush1.bf16.msra.mxu0 0
        %1226 = vmatprep.subr.bf16.mxu0 0
        %1227 = vmatpush1.bf16.msra.mxu0 0
        %1228 = vmatprep.subr.bf16.mxu0 0
        %1229 = vmatpush1.bf16.msra.mxu0 0
        %1230 = vmatprep.subr.bf16.mxu0 0
        %1231 = vmatpush1.bf16.msra.mxu0 0
        %1232 = vmatprep.subr.bf16.mxu0 0
        %1233 = vmatpush1.bf16.msra.mxu0 0
        %1234 = vmatprep.subr.bf16.mxu0 0
        %1235 = vmatpush1.bf16.msra.mxu0 0
        %1236 = vmatprep.subr.bf16.mxu0 0
        %1237 = vmatpush1.bf16.msra.mxu0 0
        %1238 = vmatprep.subr.bf16.mxu0 0
        %1239 = vmatpush1.bf16.msra.mxu0 0
        %1240 = vmatprep.subr.bf16.mxu0 0
        %1241 = vmatpush1.bf16.msra.mxu0 0
        %1242 = vmatprep.mubr.bf16.mxu0 0
        %1243 = vmatmul.mubr.bf16.gmra.mrb[0].mxu0 %v1208
        %v1244 = vpop.f32.mrb[0].mxu0
        %v1245 = vadd.f32 0.0, %v1244
        %v1246 = vpop.f32.mrb[0].mxu0
        %v1247 = vpop.f32.mrb[0].mxu0
        %v1248 = vpop.f32.mrb[0].mxu0
        %1249 = vdwg.mxu0
        %v1251 = vsel %vm895, %v990, 0
        %1253 = vmatprep.subr.bf16.mxu0 0
        %1254 = vmatpush1.bf16.msra.mxu0 %v711
        %1255 = vmatprep.subr.bf16.mxu0 0
        %1256 = vmatpush1.bf16.msra.mxu0 0
        %1257 = vmatprep.subr.bf16.mxu0 0
        %1258 = vmatpush1.bf16.msra.mxu0 0
        %1259 = vmatprep.subr.bf16.mxu0 0
        %1260 = vmatpush1.bf16.msra.mxu0 0
        %1261 = vmatprep.subr.bf16.mxu0 0
        %1262 = vmatpush1.bf16.msra.mxu0 0
        %1263 = vmatprep.subr.bf16.mxu0 0
        %1264 = vmatpush1.bf16.msra.mxu0 0
        %1265 = vmatprep.subr.bf16.mxu0 0
        %1266 = vmatpush1.bf16.msra.mxu0 0
        %1267 = vmatprep.subr.bf16.mxu0 0
        %1268 = vmatpush1.bf16.msra.mxu0 0
        %1269 = vmatprep.subr.bf16.mxu0 0
        %1270 = vmatpush1.bf16.msra.mxu0 0
        %1271 = vmatprep.subr.bf16.mxu0 0
        %1272 = vmatpush1.bf16.msra.mxu0 0
        %1273 = vmatprep.subr.bf16.mxu0 0
        %1274 = vmatpush1.bf16.msra.mxu0 0
        %1275 = vmatprep.subr.bf16.mxu0 0
        %1276 = vmatpush1.bf16.msra.mxu0 0
        %1277 = vmatprep.subr.bf16.mxu0 0
        %1278 = vmatpush1.bf16.msra.mxu0 0
        %1279 = vmatprep.subr.bf16.mxu0 0
        %1280 = vmatpush1.bf16.msra.mxu0 0
        %1281 = vmatprep.subr.bf16.mxu0 0
        %1282 = vmatpush1.bf16.msra.mxu0 0
        %1283 = vmatprep.subr.bf16.mxu0 0
        %1284 = vmatpush1.bf16.msra.mxu0 0
        %1285 = vmatprep.mubr.bf16.mxu0 0
        %1286 = vmatmul.mubr.bf16.gmra.mrb[0].mxu0 %v1251
        %v1287 = vpop.f32.mrb[0].mxu0
        %v1288 = vadd.f32 0.0, %v1287
        %v1289 = vpop.f32.mrb[0].mxu0
        %v1290 = vpop.f32.mrb[0].mxu0
        %v1291 = vpop.f32.mrb[0].mxu0
        %1292 = vdwg.mxu0
        %v1294 = vsel %vm895, %v991, 0
        %1296 = vmatprep.subr.bf16.mxu0 0
        %1297 = vmatpush1.bf16.msra.mxu0 %v757
        %1298 = vmatprep.subr.bf16.mxu0 0
        %1299 = vmatpush1.bf16.msra.mxu0 0
        %1300 = vmatprep.subr.bf16.mxu0 0
        %1301 = vmatpush1.bf16.msra.mxu0 0
        %1302 = vmatprep.subr.bf16.mxu0 0
        %1303 = vmatpush1.bf16.msra.mxu0 0
        %1304 = vmatprep.subr.bf16.mxu0 0
        %1305 = vmatpush1.bf16.msra.mxu0 0
        %1306 = vmatprep.subr.bf16.mxu0 0
        %1307 = vmatpush1.bf16.msra.mxu0 0
        %1308 = vmatprep.subr.bf16.mxu0 0
        %1309 = vmatpush1.bf16.msra.mxu0 0
        %1310 = vmatprep.subr.bf16.mxu0 0
        %1311 = vmatpush1.bf16.msra.mxu0 0
        %1312 = vmatprep.subr.bf16.mxu0 0
        %1313 = vmatpush1.bf16.msra.mxu0 0
        %1314 = vmatprep.subr.bf16.mxu0 0
        %1315 = vmatpush1.bf16.msra.mxu0 0
        %1316 = vmatprep.subr.bf16.mxu0 0
        %1317 = vmatpush1.bf16.msra.mxu0 0
        %1318 = vmatprep.subr.bf16.mxu0 0
        %1319 = vmatpush1.bf16.msra.mxu0 0
        %1320 = vmatprep.subr.bf16.mxu0 0
        %1321 = vmatpush1.bf16.msra.mxu0 0
        %1322 = vmatprep.subr.bf16.mxu0 0
        %1323 = vmatpush1.bf16.msra.mxu0 0
        %1324 = vmatprep.subr.bf16.mxu0 0
        %1325 = vmatpush1.bf16.msra.mxu0 0
        %1326 = vmatprep.subr.bf16.mxu0 0
        %1327 = vmatpush1.bf16.msra.mxu0 0
        %1328 = vmatprep.mubr.bf16.mxu0 0
        %1329 = vmatmul.mubr.bf16.gmra.mrb[0].mxu0 %v1294
        %v1330 = vpop.f32.mrb[0].mxu0
        %v1331 = vadd.f32 0.0, %v1330
        %v1332 = vpop.f32.mrb[0].mxu0
        %v1333 = vpop.f32.mrb[0].mxu0
        %v1334 = vpop.f32.mrb[0].mxu0
        %1335 = vdwg.mxu0
        %v1336 = vmul.f32 %v1030, %v1030
        %v1337 = vmul.f32 %v1073, %v1073
        %v1338 = vmul.f32 %v1116, %v1116
        %v1339 = vmul.f32 %v1159, %v1159
        %v1340 = vmul.f32 %v1202, %v1202
        %v1341 = vmul.f32 %v1245, %v1245
        %v1342 = vmul.f32 %v1288, %v1288
        %v1343 = vmul.f32 %v1331, %v1331
        %1344 = vadd.xlane.f32.xlu0 %v1336
        %v1345 = vpop.xlane.xlu0 %1344
        %1346 = vadd.xlane.f32.xlu0 %v1337
        %v1347 = vpop.xlane.xlu0 %1346
        %1348 = vadd.xlane.f32.xlu0 %v1338
        %v1349 = vpop.xlane.xlu0 %1348
        %1350 = vadd.xlane.f32.xlu0 %v1339
        %v1351 = vpop.xlane.xlu0 %1350
        %1352 = vadd.xlane.f32.xlu0 %v1340
        %v1353 = vpop.xlane.xlu0 %1352
        %1354 = vadd.xlane.f32.xlu0 %v1341
        %v1355 = vpop.xlane.xlu0 %1354
        %1356 = vadd.xlane.f32.xlu0 %v1342
        %v1357 = vpop.xlane.xlu0 %1356
        %1358 = vadd.xlane.f32.xlu0 %v1343
        %v1359 = vpop.xlane.xlu0 %1358
        %v1360 = vrsqrt.pop %v1345
        %v1361 = vmul.f32 %v1345, %v1360
        %vm1362 = vcmp.eq.f32.partialorder %v1345, inf
        %v1363 = vsel %vm1362, %v1345, %v1361
        %vm1364 = vcmp.eq.f32.partialorder %v1345, 0.0
        %v1365 = vand.u32 %v1345, 2147483648
        %v1366 = vsel %vm1364, %v1365, %v1363
        %v1367 = vrsqrt.pop %v1347
        %v1368 = vmul.f32 %v1347, %v1367
        %vm1369 = vcmp.eq.f32.partialorder %v1347, inf
        %v1370 = vsel %vm1369, %v1347, %v1368
        %vm1371 = vcmp.eq.f32.partialorder %v1347, 0.0
        %v1372 = vand.u32 %v1347, 2147483648
        %v1373 = vsel %vm1371, %v1372, %v1370
        %v1374 = vrsqrt.pop %v1349
        %v1375 = vmul.f32 %v1349, %v1374
        %vm1376 = vcmp.eq.f32.partialorder %v1349, inf
        %v1377 = vsel %vm1376, %v1349, %v1375
        %vm1378 = vcmp.eq.f32.partialorder %v1349, 0.0
        %v1379 = vand.u32 %v1349, 2147483648
        %v1380 = vsel %vm1378, %v1379, %v1377
        %v1381 = vrsqrt.pop %v1351
        %v1382 = vmul.f32 %v1351, %v1381
        %vm1383 = vcmp.eq.f32.partialorder %v1351, inf
        %v1384 = vsel %vm1383, %v1351, %v1382
        %vm1385 = vcmp.eq.f32.partialorder %v1351, 0.0
        %v1386 = vand.u32 %v1351, 2147483648
        %v1387 = vsel %vm1385, %v1386, %v1384
        %v1388 = vrsqrt.pop %v1353
        %v1389 = vmul.f32 %v1353, %v1388
        %vm1390 = vcmp.eq.f32.partialorder %v1353, inf
        %v1391 = vsel %vm1390, %v1353, %v1389
        %vm1392 = vcmp.eq.f32.partialorder %v1353, 0.0
        %v1393 = vand.u32 %v1353, 2147483648
        %v1394 = vsel %vm1392, %v1393, %v1391
        %v1395 = vrsqrt.pop %v1355
        %v1396 = vmul.f32 %v1355, %v1395
        %vm1397 = vcmp.eq.f32.partialorder %v1355, inf
        %v1398 = vsel %vm1397, %v1355, %v1396
        %vm1399 = vcmp.eq.f32.partialorder %v1355, 0.0
        %v1400 = vand.u32 %v1355, 2147483648
        %v1401 = vsel %vm1399, %v1400, %v1398
        %v1402 = vrsqrt.pop %v1357
        %v1403 = vmul.f32 %v1357, %v1402
        %vm1404 = vcmp.eq.f32.partialorder %v1357, inf
        %v1405 = vsel %vm1404, %v1357, %v1403
        %vm1406 = vcmp.eq.f32.partialorder %v1357, 0.0
        %v1407 = vand.u32 %v1357, 2147483648
        %v1408 = vsel %vm1406, %v1407, %v1405
        %v1409 = vrsqrt.pop %v1359
        %v1410 = vmul.f32 %v1359, %v1409
        %vm1411 = vcmp.eq.f32.partialorder %v1359, inf
        %v1412 = vsel %vm1411, %v1359, %v1410
        %vm1413 = vcmp.eq.f32.partialorder %v1359, 0.0
        %v1414 = vand.u32 %v1359, 2147483648
        %v1415 = vsel %vm1413, %v1414, %v1412
        %v1416 = vadd.f32 %v1366, 1e-08
        %v1417 = vadd.f32 %v1373, 1e-08
        %v1418 = vadd.f32 %v1380, 1e-08
        %v1419 = vadd.f32 %v1387, 1e-08
        %v1420 = vadd.f32 %v1394, 1e-08
        %v1421 = vadd.f32 %v1401, 1e-08
        %v1422 = vadd.f32 %v1408, 1e-08
        %v1423 = vadd.f32 %v1415, 1e-08
        %v1424 = vrcp.pop %v1416
        %v1425 = vrcp.pop %v1417
        %v1426 = vrcp.pop %v1418
        %v1427 = vrcp.pop %v1419
        %v1428 = vrcp.pop %v1420
        %v1429 = vrcp.pop %v1421
        %v1430 = vrcp.pop %v1422
        %v1431 = vrcp.pop %v1423
        %v1432 = vmul.f32 %v1030, %v1424
        %v1433 = vmul.f32 %v1073, %v1425
        %v1434 = vmul.f32 %v1116, %v1426
        %v1435 = vmul.f32 %v1159, %v1427
        %v1436 = vmul.f32 %v1202, %v1428
        %v1437 = vmul.f32 %v1245, %v1429
        %v1438 = vmul.f32 %v1288, %v1430
        %v1439 = vmul.f32 %v1331, %v1431
        %v1440 = vpack.c.bf16 %v1433, %v1432
        %v1441 = vpack.c.bf16 %v1435, %v1434
        %v1442 = vpack.c.bf16 %v1437, %v1436
        %v1443 = vpack.c.bf16 %v1439, %v1438
        %v1445 = vlaneseq
        %v1446 = vshrl.u32 %v1445, 7
        %v1447 = vsub.s32 0, %v1446
        %v1448 = vrot.slane %v341, %v1447
        %v1466 = vunpack.c.l.b16 %v325
        %v1467 = vunpack.c.l.b16 %v326
        %v1468 = vunpack.c.l.b16 %v327
        %v1469 = vunpack.c.l.b16 %v328
        %v1470 = vunpack.c.l.b16 %v329
        %v1471 = vunpack.c.l.b16 %v330
        %v1472 = vunpack.c.l.b16 %v331
        %v1473 = vunpack.c.l.b16 %v332
        %v1474 = vunpack.c.l.b16 %v333
        %v1475 = vunpack.c.l.b16 %v334
        %v1476 = vunpack.c.l.b16 %v335
        %v1477 = vunpack.c.l.b16 %v336
        %v1478 = vunpack.c.l.b16 %v337
        %v1479 = vunpack.c.l.b16 %v338
        %v1480 = vunpack.c.l.b16 %v339
        %v1481 = vunpack.c.l.b16 %v340
        %v1482 = vpack.c.b16 %v1467, %v1466
        %v1483 = vpack.c.b16 %v1469, %v1468
        %v1484 = vpack.c.b16 %v1471, %v1470
        %v1485 = vpack.c.b16 %v1473, %v1472
        %v1486 = vpack.c.b16 %v1475, %v1474
        %v1487 = vpack.c.b16 %v1477, %v1476
        %v1488 = vpack.c.b16 %v1479, %v1478
        %v1489 = vpack.c.b16 %v1481, %v1480
        %1498 = vmatprep.subr.bf16.mxu0 0
        %1499 = vmatpush1.bf16.msra.mxu0 %v1482
        %1500 = vmatprep.subr.bf16.mxu0 0
        %1501 = vmatpush1.bf16.msra.mxu0 %v1483
        %1502 = vmatprep.subr.bf16.mxu0 0
        %1503 = vmatpush1.bf16.msra.mxu0 %v1484
        %1504 = vmatprep.subr.bf16.mxu0 0
        %1505 = vmatpush1.bf16.msra.mxu0 %v1485
        %1506 = vmatprep.subr.bf16.mxu0 0
        %1507 = vmatpush1.bf16.msra.mxu0 %v1486
        %1508 = vmatprep.subr.bf16.mxu0 0
        %1509 = vmatpush1.bf16.msra.mxu0 %v1487
        %1510 = vmatprep.subr.bf16.mxu0 0
        %1511 = vmatpush1.bf16.msra.mxu0 %v1488
        %1512 = vmatprep.subr.bf16.mxu0 0
        %1513 = vmatpush1.bf16.msra.mxu0 %v1489
        %1514 = vmatprep.subr.bf16.mxu0 0
        %1515 = vmatpush1.bf16.msra.mxu0 0
        %1516 = vmatprep.subr.bf16.mxu0 0
        %1517 = vmatpush1.bf16.msra.mxu0 0
        %1518 = vmatprep.subr.bf16.mxu0 0
        %1519 = vmatpush1.bf16.msra.mxu0 0
        %1520 = vmatprep.subr.bf16.mxu0 0
        %1521 = vmatpush1.bf16.msra.mxu0 0
        %1522 = vmatprep.subr.bf16.mxu0 0
        %1523 = vmatpush1.bf16.msra.mxu0 0
        %1524 = vmatprep.subr.bf16.mxu0 0
        %1525 = vmatpush1.bf16.msra.mxu0 0
        %1526 = vmatprep.subr.bf16.mxu0 0
        %1527 = vmatpush1.bf16.msra.mxu0 0
        %1528 = vmatprep.subr.bf16.mxu0 0
        %1529 = vmatpush1.bf16.msra.mxu0 0
        %1530 = vmatprep.mubr.bf16.mxu0 0
        %1531 = vmatmul.mubr.bf16.gmra.mrb[0].mxu0 %v1440
        %v1532 = vpop.f32.mrb[0].mxu0
        %v1533 = vadd.f32 %v1448, %v1532
        %v1534 = vpop.f32.mrb[0].mxu0
        %v1535 = vpop.f32.mrb[0].mxu0
        %v1536 = vadd.f32 %v1448, %v1535
        %v1537 = vpop.f32.mrb[0].mxu0
        %1538 = vmatprep.mubr.bf16.mxu0 0
        %1539 = vmatmul.mubr.bf16.gmra.mrb[0].mxu0 %v1441
        %v1540 = vpop.f32.mrb[0].mxu0
        %v1541 = vadd.f32 %v1448, %v1540
        %v1542 = vpop.f32.mrb[0].mxu0
        %v1543 = vpop.f32.mrb[0].mxu0
        %v1544 = vadd.f32 %v1448, %v1543
        %v1545 = vpop.f32.mrb[0].mxu0
        %1546 = vmatprep.mubr.bf16.mxu0 0
        %1547 = vmatmul.mubr.bf16.gmra.mrb[0].mxu0 %v1442
        %v1548 = vpop.f32.mrb[0].mxu0
        %v1549 = vadd.f32 %v1448, %v1548
        %v1550 = vpop.f32.mrb[0].mxu0
        %v1551 = vpop.f32.mrb[0].mxu0
        %v1552 = vadd.f32 %v1448, %v1551
        %v1553 = vpop.f32.mrb[0].mxu0
        %1554 = vmatprep.mubr.bf16.mxu0 0
        %1555 = vmatmul.mubr.bf16.gmra.mrb[0].mxu0 %v1443
        %v1556 = vpop.f32.mrb[0].mxu0
        %v1557 = vadd.f32 %v1448, %v1556
        %v1558 = vpop.f32.mrb[0].mxu0
        %v1559 = vpop.f32.mrb[0].mxu0
        %v1560 = vadd.f32 %v1448, %v1559
        %v1561 = vpop.f32.mrb[0].mxu0
        %1562 = vdwg.mxu0
        %v1563 = vxor.u32 %v1533, 2147483648
        %v1564 = vxor.u32 %v1536, 2147483648
        %v1565 = vxor.u32 %v1541, 2147483648
        %v1566 = vxor.u32 %v1544, 2147483648
        %v1567 = vxor.u32 %v1549, 2147483648
        %v1568 = vxor.u32 %v1552, 2147483648
        %v1569 = vxor.u32 %v1557, 2147483648
        %v1570 = vxor.u32 %v1560, 2147483648
        %v1571 = vmul.f32 %v1563, 1.442695
        %v1572 = vpow.pop %v1571
        %v1573 = vmul.f32 %v1564, 1.442695
        %v1574 = vpow.pop %v1573
        %v1575 = vmul.f32 %v1565, 1.442695
        %v1576 = vpow.pop %v1575
        %v1577 = vmul.f32 %v1566, 1.442695
        %v1578 = vpow.pop %v1577
        %v1579 = vmul.f32 %v1567, 1.442695
        %v1580 = vpow.pop %v1579
        %v1581 = vmul.f32 %v1568, 1.442695
        %v1582 = vpow.pop %v1581
        %v1583 = vmul.f32 %v1569, 1.442695
        %v1584 = vpow.pop %v1583
        %v1585 = vmul.f32 %v1570, 1.442695
        %v1586 = vpow.pop %v1585
        %v1587 = vadd.f32 %v1572, 1.0
        %v1588 = vadd.f32 %v1574, 1.0
        %v1589 = vadd.f32 %v1576, 1.0
        %v1590 = vadd.f32 %v1578, 1.0
        %v1591 = vadd.f32 %v1580, 1.0
        %v1592 = vadd.f32 %v1582, 1.0
        %v1593 = vadd.f32 %v1584, 1.0
        %v1594 = vadd.f32 %v1586, 1.0
        %v1595 = vrcp.pop %v1587
        %v1596 = vmul.f32 1.0, %v1595
        %v1597 = vrcp.pop %v1588
        %v1598 = vmul.f32 1.0, %v1597
        %v1599 = vrcp.pop %v1589
        %v1600 = vmul.f32 1.0, %v1599
        %v1601 = vrcp.pop %v1590
        %v1602 = vmul.f32 1.0, %v1601
        %v1603 = vrcp.pop %v1591
        %v1604 = vmul.f32 1.0, %v1603
        %v1605 = vrcp.pop %v1592
        %v1606 = vmul.f32 1.0, %v1605
        %v1607 = vrcp.pop %v1593
        %v1608 = vmul.f32 1.0, %v1607
        %v1609 = vrcp.pop %v1594
        %v1610 = vmul.f32 1.0, %v1609
        %1611 = vst [vmem:[%s283] sm:$0xff] %v1596
        %1612 = vst [vmem:[%s283 + $0x8] sm:$0xff] %v1598
        %1613 = vst [vmem:[%s283 + $0x10] sm:$0xff] %v1600
        %1614 = vst [vmem:[%s283 + $0x18] sm:$0xff] %v1602
        %1615 = vst [vmem:[%s283 + $0x20] sm:$0xff] %v1604
        %1616 = vst [vmem:[%s283 + $0x28] sm:$0xff] %v1606
        %1617 = vst [vmem:[%s283 + $0x30] sm:$0xff] %v1608
        %1618 = vst [vmem:[%s283 + $0x38] sm:$0xff] %v1610
        %s1619 = sand.u32 %s167, 1
        %s1620 = scalar_lea.sflag [#allocation4], %s1619
        %s1621 = sand.u32 %s167, 1
        %s1622 = smul.addr %s1621, 64
        %s1623 = scalar_lea.vmem [#allocation5], %s1622
        // Predicated region
        $region49: #{tpu_custom_call.1} parent=43 // pred_check
          %p1624 = pneg %p177
        $region50: #{tpu_custom_call.1} parent=43 // pred_check_branch
          %1626 = sbr.rel (%p1624) target = $region52
        $region51: #{tpu_custom_call.1} parent=43 // pred_region
          %s1627 = smul.u32 8, %s23
          %s1629 = ssub.s32 1024, 1024
          %1630 = vsyncadd %s1620, %s1629
          %s1631 = smul.addr %s1627, 128
          %s1632 = scalar_lea.hbm %s6, %s1631
          %s1633 = sshll.u32 %s1623, 4
          %s1634 = int_to_ptr.vmem [resolvable:$true] %s1633
          %1639 = dma.vmem_to_hbm [thread:$0]  %s1634, 1024, %s1632, %s1620, 128, 128, 8
        $region52: #{tpu_custom_call.1} parent=43 // pred_fallthru
          _
      $region44: #{tpu_custom_call.1} parent=5 // pred_fallthru
        _
      %p1640 = scmp.le.s32.totalorder 2, %s18
      // Predicated region
      $region53: #{tpu_custom_call.1} parent=5 // pred_check
        %p1641 = pneg %p1640
      $region54: #{tpu_custom_call.1} parent=5 // pred_check_branch
        %1643 = sbr.rel (%p1641) target = $region56
      $region55: #{tpu_custom_call.1} parent=5 // pred_region
        %s1644 = ssub.s32 %s18, 2
        // Predicated region
        $region57: #{tpu_custom_call.1} parent=55 // pred_check
          %p1645 = pneg %p183
        $region58: #{tpu_custom_call.1} parent=55 // pred_check_branch
          %1647 = sbr.rel (%p1645) target = $region60
        $region59: #{tpu_custom_call.1} parent=55 // pred_region
          %s1648 = sand.u32 %s168, 1
          %s1649 = scalar_lea.sflag [#allocation4], %s1648
          %s1650 = sand.u32 %s168, 1
          %s1651 = smul.addr %s1650, 64
          %s1652 = scalar_lea.vmem [#allocation5], %s1651
          %1653 = dma.done %s1649, 1024
        $region60: #{tpu_custom_call.1} parent=55 // pred_fallthru
          _
      $region56: #{tpu_custom_call.1} parent=5 // pred_fallthru
        _
    $region6: #{tpu_custom_call.1} parent=1 // loop_footer
      %s22 = sadd.s32 1, %s18
    $region7: #{tpu_custom_call.1} parent=1 // loop_footer_branch
      %17 = sbr.rel target = $region3
    $region8: #{tpu_custom_call.1} parent=1 // loop_exit
      _
    %1654 = vsyncpa [#allocation3], 1
    %s1655 = scalar_lea.sflag [#allocation3], 1
    %1656 = vsyncpa %s1655, 1
    %1657 = vsyncpa [#allocation4], 1
    %s1658 = scalar_lea.sflag [#allocation4], 1
    %1659 = vsyncpa %s1658, 1

// kernel: tpu_custom_call.1
$region0: #{tpu_custom_call.1}
  #allocation0 [shape = 'u32[]', space=smem, size = 0x4, offset = 0x4, fixed_abs, tag = 'smem constant byte address 0x4 - core index']
  #allocation1 [shape = 'u32[144,128]{1,0:T(1,128)}', space=vmem, size = 0x12000, scoped, tag = 'internal scratch']
  %s0 = inlined_call_operand.hbm [shape: bf16[16,16,128], index: 0, kind: input, shape index: {}]
  %s1 = inlined_call_operand.vmem [shape: f32[16,128], index: 1, kind: input, shape index: {}]
  %s2 = inlined_call_operand.vmem [shape: bf16[1,128], index: 2, kind: input, shape index: {}]
  %s3 = inlined_call_operand.vmem [shape: bf16[128,8], index: 3, kind: input, shape index: {}]
  %s4 = inlined_call_operand.vmem [shape: bf16[128,128], index: 4, kind: input, shape index: {}]
  %s5 = inlined_call_operand.vmem [shape: f32[1,128], index: 5, kind: input, shape index: {}]
  %s6 = inlined_call_operand.hbm [shape: f32[128,128], index: 6, kind: output, shape index: {}]
  %s7 = sld [smem:[#allocation0]]
  $region61: #{tpu_custom_call.1} parent=0
    _
  %s9 = ssub.s32 1, %s7
  %s10 = scalar_select 0, %s9, %s7
  $region1: #{tpu_custom_call.1} parent=0
    #allocation2 [shape = 'u8[65536]{0}', space=vmem, size = 0x10000, scoped, tag = 'input window, operand 0']
    #allocation3 [shape = 's32[2]{0}', space=sflag, size = 0x8, scoped, tag = 'scoped memory for tpu_custom_call.1']
    #allocation4 [shape = 's32[2]{0}', space=sflag, size = 0x8, scoped, tag = 'scoped memory for tpu_custom_call.1']
    #allocation5 [shape = 'u8[65536]{0}', space=vmem, size = 0x10000, scoped, tag = 'output window, operand 0']
    %11 = vsyncpa [#allocation3], 0
    %s12 = scalar_lea.sflag [#allocation3], 1
    %13 = vsyncpa %s12, 0
    %14 = vsyncpa [#allocation4], 0
    %s15 = scalar_lea.sflag [#allocation4], 1
    %16 = vsyncpa %s15, 0
    loop: start=0, step=1, limit=4
    $region2: #{tpu_custom_call.1} parent=1 // loop_pre_header
      _
    $region3: #{tpu_custom_call.1} parent=1 // loop_header
      %s18 = sphi 0, %s22
      %p19 = scmp.ge.s32.totalorder %s18, 4
      %s28 = sphi 0, %s30
      %s31 = sphi 0, %s28
      %s32 = sphi 0, %s31
      %s48 = sphi 0, %s32
      %s54 = sphi 0, %s56
      %s57 = sphi 0, %s54
      %s58 = sphi 0, %s57
      %s74 = sphi 0, %s58
      %s78 = sphi 0, %s78
      %s80 = sphi 0, %s78
      %s81 = sphi 0, %s80
      %s95 = sphi 0, %s81
      %s99 = sphi 0, %s99
      %s101 = sphi 0, %s99
      %s102 = sphi 0, %s101
      %s116 = sphi 0, %s102
      %s120 = sphi 0, %s120
      %s122 = sphi 0, %s120
      %s123 = sphi 0, %s122
      %s137 = sphi 0, %s123
      %s141 = sphi 0, %s141
      %s143 = sphi 0, %s141
      %s144 = sphi 0, %s143
      %s158 = sphi 0, %s144
      %s164 = sphi 0, %s166
      %s167 = sphi 0, %s164
      %s168 = sphi 0, %s167
      %s184 = sphi 0, %s168
    $region4: #{tpu_custom_call.1} parent=1 // loop_header_branch
      %21 = sbr.rel (%p19) target = $region8
    $region5: #{tpu_custom_call.1} parent=1 // loop_body
      %s23 = ssub.s32 %s18, 1
      %s24 = ssub.s32 %s18, 2
      %s25 = sadd.s32 %s18, 1
      %s26 = ssub.s32 %s18, %s25
      %p27 = scmp.eq.s32.totalorder %s26, 0
      %s29 = sadd.s32 %s28, 1
      %s30 = scalar_select %p27, %s28, %s29
      %p33 = pneg %p27
      %p34 = scmp.eq.s32.totalorder %s18, 1
      %p35 = por %p33, %p34
      %p36 = scmp.ne.s32.totalorder %s28, %s31
      %p37 = scmp.eq.s32.totalorder %s18, 0
      %p38 = por %p36, %p37
      %p39 = scmp.ne.s32.totalorder %s28, %s31
      %p40 = scmp.eq.s32.totalorder %s23, 1
      %p41 = por %p39, %p40
      %p42 = scmp.ne.s32.totalorder %s31, %s32
      %p43 = scmp.eq.s32.totalorder %s23, 0
      %p44 = por %p42, %p43
      %p45 = scmp.ne.s32.totalorder %s31, %s32
      %p46 = scmp.eq.s32.totalorder %s24, 1
      %p47 = por %p45, %p46
      %p49 = scmp.ne.s32.totalorder %s32, %s48
      %p50 = scmp.eq.s32.totalorder %s24, 0
      %p51 = por %p49, %p50
      %s52 = ssub.s32 %s18, %s25
      %p53 = scmp.eq.s32.totalorder %s52, 0
      %s55 = sadd.s32 %s54, 1
      %s56 = scalar_select %p53, %s54, %s55
      %p59 = pneg %p53
      %p60 = scmp.eq.s32.totalorder %s18, 1
      %p61 = por %p59, %p60
      %p62 = scmp.ne.s32.totalorder %s54, %s57
      %p63 = scmp.eq.s32.totalorder %s18, 0
      %p64 = por %p62, %p63
      %p65 = scmp.ne.s32.totalorder %s54, %s57
      %p66 = scmp.eq.s32.totalorder %s23, 1
      %p67 = por %p65, %p66
      %p68 = scmp.ne.s32.totalorder %s57, %s58
      %p69 = scmp.eq.s32.totalorder %s23, 0
      %p70 = por %p68, %p69
      %p71 = scmp.ne.s32.totalorder %s57, %s58
      %p72 = scmp.eq.s32.totalorder %s24, 1
      %p73 = por %p71, %p72
      %p75 = scmp.ne.s32.totalorder %s58, %s74
      %p76 = scmp.eq.s32.totalorder %s24, 0
      %p77 = por %p75, %p76
      %s79 = sadd.s32 %s78, 1
      %p82 = scmp.eq.s32.totalorder %s18, 1
      %p83 = scmp.ne.s32.totalorder %s78, %s80
      %p84 = scmp.eq.s32.totalorder %s18, 0
      %p85 = por %p83, %p84
      %p86 = scmp.ne.s32.totalorder %s78, %s80
      %p87 = scmp.eq.s32.totalorder %s23, 1
      %p88 = por %p86, %p87
      %p89 = scmp.ne.s32.totalorder %s80, %s81
      %p90 = scmp.eq.s32.totalorder %s23, 0
      %p91 = por %p89, %p90
      %p92 = scmp.ne.s32.totalorder %s80, %s81
      %p93 = scmp.eq.s32.totalorder %s24, 1
      %p94 = por %p92, %p93
      %p96 = scmp.ne.s32.totalorder %s81, %s95
      %p97 = scmp.eq.s32.totalorder %s24, 0
      %p98 = por %p96, %p97
      %s100 = sadd.s32 %s99, 1
      %p103 = scmp.eq.s32.totalorder %s18, 1
      %p104 = scmp.ne.s32.totalorder %s99, %s101
      %p105 = scmp.eq.s32.totalorder %s18, 0
      %p106 = por %p104, %p105
      %p107 = scmp.ne.s32.totalorder %s99, %s101
      %p108 = scmp.eq.s32.totalorder %s23, 1
      %p109 = por %p107, %p108
      %p110 = scmp.ne.s32.totalorder %s101, %s102
      %p111 = scmp.eq.s32.totalorder %s23, 0
      %p112 = por %p110, %p111
      %p113 = scmp.ne.s32.totalorder %s101, %s102
      %p114 = scmp.eq.s32.totalorder %s24, 1
      %p115 = por %p113, %p114
      %p117 = scmp.ne.s32.totalorder %s102, %s116
      %p118 = scmp.eq.s32.totalorder %s24, 0
      %p119 = por %p117, %p118
      %s121 = sadd.s32 %s120, 1
      %p124 = scmp.eq.s32.totalorder %s18, 1
      %p125 = scmp.ne.s32.totalorder %s120, %s122
      %p126 = scmp.eq.s32.totalorder %s18, 0
      %p127 = por %p125, %p126
      %p128 = scmp.ne.s32.totalorder %s120, %s122
      %p129 = scmp.eq.s32.totalorder %s23, 1
      %p130 = por %p128, %p129
      %p131 = scmp.ne.s32.totalorder %s122, %s123
      %p132 = scmp.eq.s32.totalorder %s23, 0
      %p133 = por %p131, %p132
      %p134 = scmp.ne.s32.totalorder %s122, %s123
      %p135 = scmp.eq.s32.totalorder %s24, 1
      %p136 = por %p134, %p135
      %p138 = scmp.ne.s32.totalorder %s123, %s137
      %p139 = scmp.eq.s32.totalorder %s24, 0
      %p140 = por %p138, %p139
      %s142 = sadd.s32 %s141, 1
      %p145 = scmp.eq.s32.totalorder %s18, 1
      %p146 = scmp.ne.s32.totalorder %s141, %s143
      %p147 = scmp.eq.s32.totalorder %s18, 0
      %p148 = por %p146, %p147
      %p149 = scmp.ne.s32.totalorder %s141, %s143
      %p150 = scmp.eq.s32.totalorder %s23, 1
      %p151 = por %p149, %p150
      %p152 = scmp.ne.s32.totalorder %s143, %s144
      %p153 = scmp.eq.s32.totalorder %s23, 0
      %p154 = por %p152, %p153
      %p155 = scmp.ne.s32.totalorder %s143, %s144
      %p156 = scmp.eq.s32.totalorder %s24, 1
      %p157 = por %p155, %p156
      %p159 = scmp.ne.s32.totalorder %s144, %s158
      %p160 = scmp.eq.s32.totalorder %s24, 0
      %p161 = por %p159, %p160
      %s162 = ssub.s32 %s18, %s25
      %p163 = scmp.eq.s32.totalorder %s162, 0
      %s165 = sadd.s32 %s164, 1
      %s166 = scalar_select %p163, %s164, %s165
      %p169 = pneg %p163
      %p170 = scmp.eq.s32.totalorder %s18, 1
      %p171 = por %p169, %p170
      %p172 = scmp.ne.s32.totalorder %s164, %s167
      %p173 = scmp.eq.s32.totalorder %s18, 0
      %p174 = por %p172, %p173
      %p175 = scmp.ne.s32.totalorder %s164, %s167
      %p176 = scmp.eq.s32.totalorder %s23, 1
      %p177 = por %p175, %p176
      %p178 = scmp.ne.s32.totalorder %s167, %s168
      %p179 = scmp.eq.s32.totalorder %s23, 0
      %p180 = por %p178, %p179
      %p181 = scmp.ne.s32.totalorder %s167, %s168
      %p182 = scmp.eq.s32.totalorder %s24, 1
      %p183 = por %p181, %p182
      %p185 = scmp.ne.s32.totalorder %s168, %s184
      %p186 = scmp.eq.s32.totalorder %s24, 0
      %p187 = por %p185, %p186
      %p188 = scmp.le.s32.totalorder 1, %s18
      %p189 = scmp.lt.s32.totalorder %s18, 3
      %p190 = pnand %p188, %p189
      %p191 = pneg %p190
      // Predicated region
      $region9: #{tpu_custom_call.1} parent=5 // pred_check
        _
      $region10: #{tpu_custom_call.1} parent=5 // pred_check_branch
        %193 = sbr.rel (%p190) target = $region12
      $region11: #{tpu_custom_call.1} parent=5 // pred_region
        %s194 = ssub.s32 %s18, 1
        // Predicated region
        $region13: #{tpu_custom_call.1} parent=11 // pred_check
          %p195 = pneg %p91
        $region14: #{tpu_custom_call.1} parent=11 // pred_check_branch
          %197 = sbr.rel (%p195) target = $region16
        $region15: #{tpu_custom_call.1} parent=11 // pred_region
          _
        $region16: #{tpu_custom_call.1} parent=11 // pred_fallthru
          _
        // Predicated region
        $region17: #{tpu_custom_call.1} parent=11 // pred_check
          %p198 = pneg %p112
        $region18: #{tpu_custom_call.1} parent=11 // pred_check_branch
          %200 = sbr.rel (%p198) target = $region20
        $region19: #{tpu_custom_call.1} parent=11 // pred_region
          _
        $region20: #{tpu_custom_call.1} parent=11 // pred_fallthru
          _
        // Predicated region
        $region21: #{tpu_custom_call.1} parent=11 // pred_check
          %p201 = pneg %p133
        $region22: #{tpu_custom_call.1} parent=11 // pred_check_branch
          %203 = sbr.rel (%p201) target = $region24
        $region23: #{tpu_custom_call.1} parent=11 // pred_region
          _
        $region24: #{tpu_custom_call.1} parent=11 // pred_fallthru
          _
        // Predicated region
        $region25: #{tpu_custom_call.1} parent=11 // pred_check
          %p204 = pneg %p154
        $region26: #{tpu_custom_call.1} parent=11 // pred_check_branch
          %206 = sbr.rel (%p204) target = $region28
        $region27: #{tpu_custom_call.1} parent=11 // pred_region
          _
        $region28: #{tpu_custom_call.1} parent=11 // pred_fallthru
          _
      $region12: #{tpu_custom_call.1} parent=5 // pred_fallthru
        _
      %p207 = scmp.lt.s32.totalorder %s18, 2
      // Predicated region
      $region29: #{tpu_custom_call.1} parent=5 // pred_check
        %p208 = pneg %p207
      $region30: #{tpu_custom_call.1} parent=5 // pred_check_branch
        %210 = sbr.rel (%p208) target = $region32
      $region31: #{tpu_custom_call.1} parent=5 // pred_region
        // Predicated region
        $region33: #{tpu_custom_call.1} parent=31 // pred_check
          %p211 = pneg %p38
        $region34: #{tpu_custom_call.1} parent=31 // pred_check_branch
          %213 = sbr.rel (%p211) target = $region36
        $region35: #{tpu_custom_call.1} parent=31 // pred_region
          %s214 = sand.u32 %s28, 1
          %s215 = scalar_lea.sflag [#allocation3], %s214
          %s216 = sand.u32 %s28, 1
          %s217 = smul.addr %s216, 64
          %s218 = scalar_lea.vmem [#allocation2], %s217
          %s219 = smul.u32 8, %s18
          %s221 = ssub.s32 1024, 1024
          %222 = vsyncadd %s215, %s221
          %s223 = smul.addr %s219, 2
          %s224 = smul.addr %s223, 64
          %s225 = scalar_lea.hbm %s0, %s224
          %s226 = sshll.u32 %s218, 4
          %s227 = int_to_ptr.vmem [resolvable:$true] %s226
          %232 = dma.hbm_to_vmem [thread:$0]  %s225, 1024, %s227, %s215, 64, 64, 4
        $region36: #{tpu_custom_call.1} parent=31 // pred_fallthru
          _
        // Predicated region
        $region37: #{tpu_custom_call.1} parent=31 // pred_check
          %p233 = pneg %p64
        $region38: #{tpu_custom_call.1} parent=31 // pred_check_branch
          %235 = sbr.rel (%p233) target = $region40
        $region39: #{tpu_custom_call.1} parent=31 // pred_region
          %p236 = scmp.lt.s32.totalorder %s18, 1
          %s237 = scalar_select %p236, %s18, 1
          %s238 = smul.addr %s237, 8
          %s239 = scalar_lea.vmem %s1, %s238
        $region40: #{tpu_custom_call.1} parent=31 // pred_fallthru
          _
      $region32: #{tpu_custom_call.1} parent=5 // pred_fallthru
        _
      %p240 = scmp.le.s32.totalorder 1, %s18
      %p241 = scmp.lt.s32.totalorder %s18, 3
      %p242 = pnand %p240, %p241
      %p243 = pneg %p242
      // Predicated region
      $region41: #{tpu_custom_call.1} parent=5 // pred_check
        _
      $region42: #{tpu_custom_call.1} parent=5 // pred_check_branch
        %245 = sbr.rel (%p242) target = $region44
      $region43: #{tpu_custom_call.1} parent=5 // pred_region
        %s246 = ssub.s32 %s18, 1
        %s247 = sand.u32 %s31, 1
        %s248 = scalar_lea.sflag [#allocation3], %s247
        %s249 = sand.u32 %s31, 1
        %s250 = smul.addr %s249, 64
        %s251 = scalar_lea.vmem [#allocation2], %s250
        // Predicated region
        $region45: #{tpu_custom_call.1} parent=43 // pred_check
          %p252 = pneg %p44
        $region46: #{tpu_custom_call.1} parent=43 // pred_check_branch
          %254 = sbr.rel (%p252) target = $region48
        $region47: #{tpu_custom_call.1} parent=43 // pred_region
          %255 = dma.done %s248, 1024
        $region48: #{tpu_custom_call.1} parent=43 // pred_fallthru
          _
        %s256 = sand.u32 %s31, 1
        %s257 = scalar_lea.sflag [#allocation3], %s256
        %s258 = sand.u32 %s31, 1
        %s259 = smul.addr %s258, 64
        %s260 = scalar_lea.vmem [#allocation2], %s259
        %p261 = pneg %p44
        %p262 = pneg %p41
        %p263 = scmp.lt.s32.totalorder %s23, 1
        %s264 = scalar_select %p263, %s23, 1
        %s265 = smul.addr %s264, 8
        %s266 = scalar_lea.vmem %s1, %s265
        %p267 = pneg %p70
        %p268 = pneg %p67
        %p269 = pneg %p91
        %p270 = pneg %p88
        %p271 = pneg %p112
        %p272 = pneg %p109
        %p273 = pneg %p133
        %p274 = pneg %p130
        %p275 = pneg %p154
        %p276 = pneg %p151
        %p277 = pneg %p180
        %p278 = pneg %p177
        %s279 = sand.u32 %s167, 1
        %s280 = scalar_lea.sflag [#allocation4], %s279
        %s281 = sand.u32 %s167, 1
        %s282 = smul.addr %s281, 64
        %s283 = scalar_lea.vmem [#allocation5], %s282
        %s284 = smul.u32 8, %s23
        %p285 = scmp.lt.s32.totalorder %s23, 1
        %s286 = scalar_select %p285, %s23, 1
        %s287 = smul.addr %s286, 8
        %s288 = scalar_lea.vmem %s1, %s287
        %s289 = smul.u32 8, %s23
        %v291 = vld [vmem:[%s251] sm:$0xf]
        %v292 = vld [vmem:[%s251 + $0x4] sm:$0xf]
        %v293 = vld [vmem:[%s251 + $0x8] sm:$0xf]
        %v294 = vld [vmem:[%s251 + $0xc] sm:$0xf]
        %v295 = vld [vmem:[%s251 + $0x10] sm:$0xf]
        %v296 = vld [vmem:[%s251 + $0x14] sm:$0xf]
        %v297 = vld [vmem:[%s251 + $0x18] sm:$0xf]
        %v298 = vld [vmem:[%s251 + $0x1c] sm:$0xf]
        %v299 = vld [vmem:[%s251 + $0x20] sm:$0xf]
        %v300 = vld [vmem:[%s251 + $0x24] sm:$0xf]
        %v301 = vld [vmem:[%s251 + $0x28] sm:$0xf]
        %v302 = vld [vmem:[%s251 + $0x2c] sm:$0xf]
        %v303 = vld [vmem:[%s251 + $0x30] sm:$0xf]
        %v304 = vld [vmem:[%s251 + $0x34] sm:$0xf]
        %v305 = vld [vmem:[%s251 + $0x38] sm:$0xf]
        %v306 = vld [vmem:[%s251 + $0x3c] sm:$0xf]
        %v307 = vld [vmem:[%s288] sm:$0xff]
        %v308 = vld [vmem:[%s2] sm:$0x1]
        %v309 = vld [vmem:[%s3] sm:$0xf]
        %v310 = vld [vmem:[%s3 + $0x4] sm:$0xf]
        %v311 = vld [vmem:[%s3 + $0x8] sm:$0xf]
        %v312 = vld [vmem:[%s3 + $0xc] sm:$0xf]
        %v313 = vld [vmem:[%s3 + $0x10] sm:$0xf]
        %v314 = vld [vmem:[%s3 + $0x14] sm:$0xf]
        %v315 = vld [vmem:[%s3 + $0x18] sm:$0xf]
        %v316 = vld [vmem:[%s3 + $0x1c] sm:$0xf]
        %v317 = vld [vmem:[%s3 + $0x20] sm:$0xf]
        %v318 = vld [vmem:[%s3 + $0x24] sm:$0xf]
        %v319 = vld [vmem:[%s3 + $0x28] sm:$0xf]
        %v320 = vld [vmem:[%s3 + $0x2c] sm:$0xf]
        %v321 = vld [vmem:[%s3 + $0x30] sm:$0xf]
        %v322 = vld [vmem:[%s3 + $0x34] sm:$0xf]
        %v323 = vld [vmem:[%s3 + $0x38] sm:$0xf]
        %v324 = vld [vmem:[%s3 + $0x3c] sm:$0xf]
        %v325 = vld [vmem:[%s4] sm:$0xf]
        %v326 = vld [vmem:[%s4 + $0x4] sm:$0xf]
        %v327 = vld [vmem:[%s4 + $0x8] sm:$0xf]
        %v328 = vld [vmem:[%s4 + $0xc] sm:$0xf]
        %v329 = vld [vmem:[%s4 + $0x10] sm:$0xf]
        %v330 = vld [vmem:[%s4 + $0x14] sm:$0xf]
        %v331 = vld [vmem:[%s4 + $0x18] sm:$0xf]
        %v332 = vld [vmem:[%s4 + $0x1c] sm:$0xf]
        %v333 = vld [vmem:[%s4 + $0x20] sm:$0xf]
        %v334 = vld [vmem:[%s4 + $0x24] sm:$0xf]
        %v335 = vld [vmem:[%s4 + $0x28] sm:$0xf]
        %v336 = vld [vmem:[%s4 + $0x2c] sm:$0xf]
        %v337 = vld [vmem:[%s4 + $0x30] sm:$0xf]
        %v338 = vld [vmem:[%s4 + $0x34] sm:$0xf]
        %v339 = vld [vmem:[%s4 + $0x38] sm:$0xf]
        %v340 = vld [vmem:[%s4 + $0x3c] sm:$0xf]
        %v341 = vld [vmem:[%s5] sm:$0x1]
        %v342 = vpack.c.bf16 %v307, %v307
        %v359 = vunpack.c.l.b16 %v309
        %v360 = vunpack.c.l.b16 %v310
        %v361 = vunpack.c.l.b16 %v311
        %v362 = vunpack.c.l.b16 %v312
        %v363 = vunpack.c.l.b16 %v313
        %v364 = vunpack.c.l.b16 %v314
        %v365 = vunpack.c.l.b16 %v315
        %v366 = vunpack.c.l.b16 %v316
        %v367 = vunpack.c.l.b16 %v317
        %v368 = vunpack.c.l.b16 %v318
        %v369 = vunpack.c.l.b16 %v319
        %v370 = vunpack.c.l.b16 %v320
        %v371 = vunpack.c.l.b16 %v321
        %v372 = vunpack.c.l.b16 %v322
        %v373 = vunpack.c.l.b16 %v323
        %v374 = vunpack.c.l.b16 %v324
        %v375 = vpack.c.b16 %v360, %v359
        %v376 = vpack.c.b16 %v362, %v361
        %v377 = vpack.c.b16 %v364, %v363
        %v378 = vpack.c.b16 %v366, %v365
        %v379 = vpack.c.b16 %v368, %v367
        %v380 = vpack.c.b16 %v370, %v369
        %v381 = vpack.c.b16 %v372, %v371
        %v382 = vpack.c.b16 %v374, %v373
        %391 = vmatprep.subr.bf16.mxu0 0
        %392 = vmatpush1.bf16.msra.mxu0 %v375
        %393 = vmatprep.subr.bf16.mxu0 0
        %394 = vmatpush1.bf16.msra.mxu0 %v376
        %395 = vmatprep.subr.bf16.mxu0 0
        %396 = vmatpush1.bf16.msra.mxu0 %v377
        %397 = vmatprep.subr.bf16.mxu0 0
        %398 = vmatpush1.bf16.msra.mxu0 %v378
        %399 = vmatprep.subr.bf16.mxu0 0
        %400 = vmatpush1.bf16.msra.mxu0 %v379
        %401 = vmatprep.subr.bf16.mxu0 0
        %402 = vmatpush1.bf16.msra.mxu0 %v380
        %403 = vmatprep.subr.bf16.mxu0 0
        %404 = vmatpush1.bf16.msra.mxu0 %v381
        %405 = vmatprep.subr.bf16.mxu0 0
        %406 = vmatpush1.bf16.msra.mxu0 %v382
        %407 = vmatprep.subr.bf16.mxu0 0
        %408 = vmatpush1.bf16.msra.mxu0 0
        %409 = vmatprep.subr.bf16.mxu0 0
        %410 = vmatpush1.bf16.msra.mxu0 0
        %411 = vmatprep.subr.bf16.mxu0 0
        %412 = vmatpush1.bf16.msra.mxu0 0
        %413 = vmatprep.subr.bf16.mxu0 0
        %414 = vmatpush1.bf16.msra.mxu0 0
        %415 = vmatprep.subr.bf16.mxu0 0
        %416 = vmatpush1.bf16.msra.mxu0 0
        %417 = vmatprep.subr.bf16.mxu0 0
        %418 = vmatpush1.bf16.msra.mxu0 0
        %419 = vmatprep.subr.bf16.mxu0 0
        %420 = vmatpush1.bf16.msra.mxu0 0
        %421 = vmatprep.subr.bf16.mxu0 0
        %422 = vmatpush1.bf16.msra.mxu0 0
        %423 = vmatprep.mubr.bf16.mxu0 0
        %424 = vmatmul.mubr.bf16.gmra.mrb[0].mxu0 %v342
        %v425 = vpop.f32.mrb[0].mxu0
        %v426 = vadd.f32 0.0, %v425
        %v427 = vpop.f32.mrb[0].mxu0
        %v428 = vpop.f32.mrb[0].mxu0
        %v429 = vpop.f32.mrb[0].mxu0
        %430 = vdwg.mxu0
        %v433 = vunpack.c.l.b16 %v291
        %v434 = vunpack.c.l.b16 %v292
        %v435 = vpack.c.b16 %v434, %v433
        %437 = vmatprep.subr.bf16.mxu0 0
        %438 = vmatpush1.bf16.xpose.msra.mxu0 %v435
        %439 = vmatprep.subr.bf16.mxu0 0
        %440 = vmatpush1.bf16.xpose.msra.mxu0 0
        %441 = vmatprep.subr.bf16.mxu0 0
        %442 = vmatpush1.bf16.xpose.msra.mxu0 0
        %443 = vmatprep.subr.bf16.mxu0 0
        %444 = vmatpush1.bf16.xpose.msra.mxu0 0
        %445 = vmatprep.subr.bf16.mxu0 0
        %446 = vmatpush1.bf16.xpose.msra.mxu0 0
        %447 = vmatprep.subr.bf16.mxu0 0
        %448 = vmatpush1.bf16.xpose.msra.mxu0 0
        %449 = vmatprep.subr.bf16.mxu0 0
        %450 = vmatpush1.bf16.xpose.msra.mxu0 0
        %451 = vmatprep.subr.bf16.mxu0 0
        %452 = vmatpush1.bf16.xpose.msra.mxu0 0
        %453 = vmatprep.subr.bf16.mxu0 0
        %454 = vmatpush1.bf16.xpose.msra.mxu0 0
        %455 = vmatprep.subr.bf16.mxu0 0
        %456 = vmatpush1.bf16.xpose.msra.mxu0 0
        %457 = vmatprep.subr.bf16.mxu0 0
        %458 = vmatpush1.bf16.xpose.msra.mxu0 0
        %459 = vmatprep.subr.bf16.mxu0 0
        %460 = vmatpush1.bf16.xpose.msra.mxu0 0
        %461 = vmatprep.subr.bf16.mxu0 0
        %462 = vmatpush1.bf16.xpose.msra.mxu0 0
        %463 = vmatprep.subr.bf16.mxu0 0
        %464 = vmatpush1.bf16.xpose.msra.mxu0 0
        %465 = vmatprep.subr.bf16.mxu0 0
        %466 = vmatpush1.bf16.xpose.msra.mxu0 0
        %467 = vmatprep.subr.bf16.mxu0 0
        %468 = vmatpush1.bf16.xpose.msra.mxu0 0
        %469 = vmatprep.mubr.bf16.mxu0 0
        %470 = vmatmul.mubr.bf16.gmra.mrb[0].mxu0 %v308
        %v471 = vpop.f32.mrb[0].mxu0
        %v472 = vadd.f32 0.0, %v471
        %v473 = vpop.f32.mrb[0].mxu0
        %v474 = vpop.f32.mrb[0].mxu0
        %v475 = vpop.f32.mrb[0].mxu0
        %476 = vdwg.mxu0
        %v479 = vunpack.c.l.b16 %v293
        %v480 = vunpack.c.l.b16 %v294
        %v481 = vpack.c.b16 %v480, %v479
        %483 = vmatprep.subr.bf16.mxu0 0
        %484 = vmatpush1.bf16.xpose.msra.mxu0 %v481
        %485 = vmatprep.subr.bf16.mxu0 0
        %486 = vmatpush1.bf16.xpose.msra.mxu0 0
        %487 = vmatprep.subr.bf16.mxu0 0
        %488 = vmatpush1.bf16.xpose.msra.mxu0 0
        %489 = vmatprep.subr.bf16.mxu0 0
        %490 = vmatpush1.bf16.xpose.msra.mxu0 0
        %491 = vmatprep.subr.bf16.mxu0 0
        %492 = vmatpush1.bf16.xpose.msra.mxu0 0
        %493 = vmatprep.subr.bf16.mxu0 0
        %494 = vmatpush1.bf16.xpose.msra.mxu0 0
        %495 = vmatprep.subr.bf16.mxu0 0
        %496 = vmatpush1.bf16.xpose.msra.mxu0 0
        %497 = vmatprep.subr.bf16.mxu0 0
        %498 = vmatpush1.bf16.xpose.msra.mxu0 0
        %499 = vmatprep.subr.bf16.mxu0 0
        %500 = vmatpush1.bf16.xpose.msra.mxu0 0
        %501 = vmatprep.subr.bf16.mxu0 0
        %502 = vmatpush1.bf16.xpose.msra.mxu0 0
        %503 = vmatprep.subr.bf16.mxu0 0
        %504 = vmatpush1.bf16.xpose.msra.mxu0 0
        %505 = vmatprep.subr.bf16.mxu0 0
        %506 = vmatpush1.bf16.xpose.msra.mxu0 0
        %507 = vmatprep.subr.bf16.mxu0 0
        %508 = vmatpush1.bf16.xpose.msra.mxu0 0
        %509 = vmatprep.subr.bf16.mxu0 0
        %510 = vmatpush1.bf16.xpose.msra.mxu0 0
        %511 = vmatprep.subr.bf16.mxu0 0
        %512 = vmatpush1.bf16.xpose.msra.mxu0 0
        %513 = vmatprep.subr.bf16.mxu0 0
        %514 = vmatpush1.bf16.xpose.msra.mxu0 0
        %515 = vmatprep.mubr.bf16.mxu0 0
        %516 = vmatmul.mubr.bf16.gmra.mrb[0].mxu0 %v308
        %v517 = vpop.f32.mrb[0].mxu0
        %v518 = vadd.f32 0.0, %v517
        %v519 = vpop.f32.mrb[0].mxu0
        %v520 = vpop.f32.mrb[0].mxu0
        %v521 = vpop.f32.mrb[0].mxu0
        %522 = vdwg.mxu0
        %v525 = vunpack.c.l.b16 %v295
        %v526 = vunpack.c.l.b16 %v296
        %v527 = vpack.c.b16 %v526, %v525
        %529 = vmatprep.subr.bf16.mxu0 0
        %530 = vmatpush1.bf16.xpose.msra.mxu0 %v527
        %531 = vmatprep.subr.bf16.mxu0 0
        %532 = vmatpush1.bf16.xpose.msra.mxu0 0
        %533 = vmatprep.subr.bf16.mxu0 0
        %534 = vmatpush1.bf16.xpose.msra.mxu0 0
        %535 = vmatprep.subr.bf16.mxu0 0
        %536 = vmatpush1.bf16.xpose.msra.mxu0 0
        %537 = vmatprep.subr.bf16.mxu0 0
        %538 = vmatpush1.bf16.xpose.msra.mxu0 0
        %539 = vmatprep.subr.bf16.mxu0 0
        %540 = vmatpush1.bf16.xpose.msra.mxu0 0
        %541 = vmatprep.subr.bf16.mxu0 0
        %542 = vmatpush1.bf16.xpose.msra.mxu0 0
        %543 = vmatprep.subr.bf16.mxu0 0
        %544 = vmatpush1.bf16.xpose.msra.mxu0 0
        %545 = vmatprep.subr.bf16.mxu0 0
        %546 = vmatpush1.bf16.xpose.msra.mxu0 0
        %547 = vmatprep.subr.bf16.mxu0 0
        %548 = vmatpush1.bf16.xpose.msra.mxu0 0
        %549 = vmatprep.subr.bf16.mxu0 0
        %550 = vmatpush1.bf16.xpose.msra.mxu0 0
        %551 = vmatprep.subr.bf16.mxu0 0
        %552 = vmatpush1.bf16.xpose.msra.mxu0 0
        %553 = vmatprep.subr.bf16.mxu0 0
        %554 = vmatpush1.bf16.xpose.msra.mxu0 0
        %555 = vmatprep.subr.bf16.mxu0 0
        %556 = vmatpush1.bf16.xpose.msra.mxu0 0
        %557 = vmatprep.subr.bf16.mxu0 0
        %558 = vmatpush1.bf16.xpose.msra.mxu0 0
        %559 = vmatprep.subr.bf16.mxu0 0
        %560 = vmatpush1.bf16.xpose.msra.mxu0 0
        %561 = vmatprep.mubr.bf16.mxu0 0
        %562 = vmatmul.mubr.bf16.gmra.mrb[0].mxu0 %v308
        %v563 = vpop.f32.mrb[0].mxu0
        %v564 = vadd.f32 0.0, %v563
        %v565 = vpop.f32.mrb[0].mxu0
        %v566 = vpop.f32.mrb[0].mxu0
        %v567 = vpop.f32.mrb[0].mxu0
        %568 = vdwg.mxu0
        %v571 = vunpack.c.l.b16 %v297
        %v572 = vunpack.c.l.b16 %v298
        %v573 = vpack.c.b16 %v572, %v571
        %575 = vmatprep.subr.bf16.mxu0 0
        %576 = vmatpush1.bf16.xpose.msra.mxu0 %v573
        %577 = vmatprep.subr.bf16.mxu0 0
        %578 = vmatpush1.bf16.xpose.msra.mxu0 0
        %579 = vmatprep.subr.bf16.mxu0 0
        %580 = vmatpush1.bf16.xpose.msra.mxu0 0
        %581 = vmatprep.subr.bf16.mxu0 0
        %582 = vmatpush1.bf16.xpose.msra.mxu0 0
        %583 = vmatprep.subr.bf16.mxu0 0
        %584 = vmatpush1.bf16.xpose.msra.mxu0 0
        %585 = vmatprep.subr.bf16.mxu0 0
        %586 = vmatpush1.bf16.xpose.msra.mxu0 0
        %587 = vmatprep.subr.bf16.mxu0 0
        %588 = vmatpush1.bf16.xpose.msra.mxu0 0
        %589 = vmatprep.subr.bf16.mxu0 0
        %590 = vmatpush1.bf16.xpose.msra.mxu0 0
        %591 = vmatprep.subr.bf16.mxu0 0
        %592 = vmatpush1.bf16.xpose.msra.mxu0 0
        %593 = vmatprep.subr.bf16.mxu0 0
        %594 = vmatpush1.bf16.xpose.msra.mxu0 0
        %595 = vmatprep.subr.bf16.mxu0 0
        %596 = vmatpush1.bf16.xpose.msra.mxu0 0
        %597 = vmatprep.subr.bf16.mxu0 0
        %598 = vmatpush1.bf16.xpose.msra.mxu0 0
        %599 = vmatprep.subr.bf16.mxu0 0
        %600 = vmatpush1.bf16.xpose.msra.mxu0 0
        %601 = vmatprep.subr.bf16.mxu0 0
        %602 = vmatpush1.bf16.xpose.msra.mxu0 0
        %603 = vmatprep.subr.bf16.mxu0 0
        %604 = vmatpush1.bf16.xpose.msra.mxu0 0
        %605 = vmatprep.subr.bf16.mxu0 0
        %606 = vmatpush1.bf16.xpose.msra.mxu0 0
        %607 = vmatprep.mubr.bf16.mxu0 0
        %608 = vmatmul.mubr.bf16.gmra.mrb[0].mxu0 %v308
        %v609 = vpop.f32.mrb[0].mxu0
        %v610 = vadd.f32 0.0, %v609
        %v611 = vpop.f32.mrb[0].mxu0
        %v612 = vpop.f32.mrb[0].mxu0
        %v613 = vpop.f32.mrb[0].mxu0
        %614 = vdwg.mxu0
        %v617 = vunpack.c.l.b16 %v299
        %v618 = vunpack.c.l.b16 %v300
        %v619 = vpack.c.b16 %v618, %v617
        %621 = vmatprep.subr.bf16.mxu0 0
        %622 = vmatpush1.bf16.xpose.msra.mxu0 %v619
        %623 = vmatprep.subr.bf16.mxu0 0
        %624 = vmatpush1.bf16.xpose.msra.mxu0 0
        %625 = vmatprep.subr.bf16.mxu0 0
        %626 = vmatpush1.bf16.xpose.msra.mxu0 0
        %627 = vmatprep.subr.bf16.mxu0 0
        %628 = vmatpush1.bf16.xpose.msra.mxu0 0
        %629 = vmatprep.subr.bf16.mxu0 0
        %630 = vmatpush1.bf16.xpose.msra.mxu0 0
        %631 = vmatprep.subr.bf16.mxu0 0
        %632 = vmatpush1.bf16.xpose.msra.mxu0 0
        %633 = vmatprep.subr.bf16.mxu0 0
        %634 = vmatpush1.bf16.xpose.msra.mxu0 0
        %635 = vmatprep.subr.bf16.mxu0 0
        %636 = vmatpush1.bf16.xpose.msra.mxu0 0
        %637 = vmatprep.subr.bf16.mxu0 0
        %638 = vmatpush1.bf16.xpose.msra.mxu0 0
        %639 = vmatprep.subr.bf16.mxu0 0
        %640 = vmatpush1.bf16.xpose.msra.mxu0 0
        %641 = vmatprep.subr.bf16.mxu0 0
        %642 = vmatpush1.bf16.xpose.msra.mxu0 0
        %643 = vmatprep.subr.bf16.mxu0 0
        %644 = vmatpush1.bf16.xpose.msra.mxu0 0
        %645 = vmatprep.subr.bf16.mxu0 0
        %646 = vmatpush1.bf16.xpose.msra.mxu0 0
        %647 = vmatprep.subr.bf16.mxu0 0
        %648 = vmatpush1.bf16.xpose.msra.mxu0 0
        %649 = vmatprep.subr.bf16.mxu0 0
        %650 = vmatpush1.bf16.xpose.msra.mxu0 0
        %651 = vmatprep.subr.bf16.mxu0 0
        %652 = vmatpush1.bf16.xpose.msra.mxu0 0
        %653 = vmatprep.mubr.bf16.mxu0 0
        %654 = vmatmul.mubr.bf16.gmra.mrb[0].mxu0 %v308
        %v655 = vpop.f32.mrb[0].mxu0
        %v656 = vadd.f32 0.0, %v655
        %v657 = vpop.f32.mrb[0].mxu0
        %v658 = vpop.f32.mrb[0].mxu0
        %v659 = vpop.f32.mrb[0].mxu0
        %660 = vdwg.mxu0
        %v663 = vunpack.c.l.b16 %v301
        %v664 = vunpack.c.l.b16 %v302
        %v665 = vpack.c.b16 %v664, %v663
        %667 = vmatprep.subr.bf16.mxu0 0
        %668 = vmatpush1.bf16.xpose.msra.mxu0 %v665
        %669 = vmatprep.subr.bf16.mxu0 0
        %670 = vmatpush1.bf16.xpose.msra.mxu0 0
        %671 = vmatprep.subr.bf16.mxu0 0
        %672 = vmatpush1.bf16.xpose.msra.mxu0 0
        %673 = vmatprep.subr.bf16.mxu0 0
        %674 = vmatpush1.bf16.xpose.msra.mxu0 0
        %675 = vmatprep.subr.bf16.mxu0 0
        %676 = vmatpush1.bf16.xpose.msra.mxu0 0
        %677 = vmatprep.subr.bf16.mxu0 0
        %678 = vmatpush1.bf16.xpose.msra.mxu0 0
        %679 = vmatprep.subr.bf16.mxu0 0
        %680 = vmatpush1.bf16.xpose.msra.mxu0 0
        %681 = vmatprep.subr.bf16.mxu0 0
        %682 = vmatpush1.bf16.xpose.msra.mxu0 0
        %683 = vmatprep.subr.bf16.mxu0 0
        %684 = vmatpush1.bf16.xpose.msra.mxu0 0
        %685 = vmatprep.subr.bf16.mxu0 0
        %686 = vmatpush1.bf16.xpose.msra.mxu0 0
        %687 = vmatprep.subr.bf16.mxu0 0
        %688 = vmatpush1.bf16.xpose.msra.mxu0 0
        %689 = vmatprep.subr.bf16.mxu0 0
        %690 = vmatpush1.bf16.xpose.msra.mxu0 0
        %691 = vmatprep.subr.bf16.mxu0 0
        %692 = vmatpush1.bf16.xpose.msra.mxu0 0
        %693 = vmatprep.subr.bf16.mxu0 0
        %694 = vmatpush1.bf16.xpose.msra.mxu0 0
        %695 = vmatprep.subr.bf16.mxu0 0
        %696 = vmatpush1.bf16.xpose.msra.mxu0 0
        %697 = vmatprep.subr.bf16.mxu0 0
        %698 = vmatpush1.bf16.xpose.msra.mxu0 0
        %699 = vmatprep.mubr.bf16.mxu0 0
        %700 = vmatmul.mubr.bf16.gmra.mrb[0].mxu0 %v308
        %v701 = vpop.f32.mrb[0].mxu0
        %v702 = vadd.f32 0.0, %v701
        %v703 = vpop.f32.mrb[0].mxu0
        %v704 = vpop.f32.mrb[0].mxu0
        %v705 = vpop.f32.mrb[0].mxu0
        %706 = vdwg.mxu0
        %v709 = vunpack.c.l.b16 %v303
        %v710 = vunpack.c.l.b16 %v304
        %v711 = vpack.c.b16 %v710, %v709
        %713 = vmatprep.subr.bf16.mxu0 0
        %714 = vmatpush1.bf16.xpose.msra.mxu0 %v711
        %715 = vmatprep.subr.bf16.mxu0 0
        %716 = vmatpush1.bf16.xpose.msra.mxu0 0
        %717 = vmatprep.subr.bf16.mxu0 0
        %718 = vmatpush1.bf16.xpose.msra.mxu0 0
        %719 = vmatprep.subr.bf16.mxu0 0
        %720 = vmatpush1.bf16.xpose.msra.mxu0 0
        %721 = vmatprep.subr.bf16.mxu0 0
        %722 = vmatpush1.bf16.xpose.msra.mxu0 0
        %723 = vmatprep.subr.bf16.mxu0 0
        %724 = vmatpush1.bf16.xpose.msra.mxu0 0
        %725 = vmatprep.subr.bf16.mxu0 0
        %726 = vmatpush1.bf16.xpose.msra.mxu0 0
        %727 = vmatprep.subr.bf16.mxu0 0
        %728 = vmatpush1.bf16.xpose.msra.mxu0 0
        %729 = vmatprep.subr.bf16.mxu0 0
        %730 = vmatpush1.bf16.xpose.msra.mxu0 0
        %731 = vmatprep.subr.bf16.mxu0 0
        %732 = vmatpush1.bf16.xpose.msra.mxu0 0
        %733 = vmatprep.subr.bf16.mxu0 0
        %734 = vmatpush1.bf16.xpose.msra.mxu0 0
        %735 = vmatprep.subr.bf16.mxu0 0
        %736 = vmatpush1.bf16.xpose.msra.mxu0 0
        %737 = vmatprep.subr.bf16.mxu0 0
        %738 = vmatpush1.bf16.xpose.msra.mxu0 0
        %739 = vmatprep.subr.bf16.mxu0 0
        %740 = vmatpush1.bf16.xpose.msra.mxu0 0
        %741 = vmatprep.subr.bf16.mxu0 0
        %742 = vmatpush1.bf16.xpose.msra.mxu0 0
        %743 = vmatprep.subr.bf16.mxu0 0
        %744 = vmatpush1.bf16.xpose.msra.mxu0 0
        %745 = vmatprep.mubr.bf16.mxu0 0
        %746 = vmatmul.mubr.bf16.gmra.mrb[0].mxu0 %v308
        %v747 = vpop.f32.mrb[0].mxu0
        %v748 = vadd.f32 0.0, %v747
        %v749 = vpop.f32.mrb[0].mxu0
        %v750 = vpop.f32.mrb[0].mxu0
        %v751 = vpop.f32.mrb[0].mxu0
        %752 = vdwg.mxu0
        %v755 = vunpack.c.l.b16 %v305
        %v756 = vunpack.c.l.b16 %v306
        %v757 = vpack.c.b16 %v756, %v755
        %759 = vmatprep.subr.bf16.mxu0 0
        %760 = vmatpush1.bf16.xpose.msra.mxu0 %v757
        %761 = vmatprep.subr.bf16.mxu0 0
        %762 = vmatpush1.bf16.xpose.msra.mxu0 0
        %763 = vmatprep.subr.bf16.mxu0 0
        %764 = vmatpush1.bf16.xpose.msra.mxu0 0
        %765 = vmatprep.subr.bf16.mxu0 0
        %766 = vmatpush1.bf16.xpose.msra.mxu0 0
        %767 = vmatprep.subr.bf16.mxu0 0
        %768 = vmatpush1.bf16.xpose.msra.mxu0 0
        %769 = vmatprep.subr.bf16.mxu0 0
        %770 = vmatpush1.bf16.xpose.msra.mxu0 0
        %771 = vmatprep.subr.bf16.mxu0 0
        %772 = vmatpush1.bf16.xpose.msra.mxu0 0
        %773 = vmatprep.subr.bf16.mxu0 0
        %774 = vmatpush1.bf16.xpose.msra.mxu0 0
        %775 = vmatprep.subr.bf16.mxu0 0
        %776 = vmatpush1.bf16.xpose.msra.mxu0 0
        %777 = vmatprep.subr.bf16.mxu0 0
        %778 = vmatpush1.bf16.xpose.msra.mxu0 0
        %779 = vmatprep.subr.bf16.mxu0 0
        %780 = vmatpush1.bf16.xpose.msra.mxu0 0
        %781 = vmatprep.subr.bf16.mxu0 0
        %782 = vmatpush1.bf16.xpose.msra.mxu0 0
        %783 = vmatprep.subr.bf16.mxu0 0
        %784 = vmatpush1.bf16.xpose.msra.mxu0 0
        %785 = vmatprep.subr.bf16.mxu0 0
        %786 = vmatpush1.bf16.xpose.msra.mxu0 0
        %787 = vmatprep.subr.bf16.mxu0 0
        %788 = vmatpush1.bf16.xpose.msra.mxu0 0
        %789 = vmatprep.subr.bf16.mxu0 0
        %790 = vmatpush1.bf16.xpose.msra.mxu0 0
        %791 = vmatprep.mubr.bf16.mxu0 0
        %792 = vmatmul.mubr.bf16.gmra.mrb[0].mxu0 %v308
        %v793 = vpop.f32.mrb[0].mxu0
        %v794 = vadd.f32 0.0, %v793
        %v795 = vpop.f32.mrb[0].mxu0
        %v796 = vpop.f32.mrb[0].mxu0
        %v797 = vpop.f32.mrb[0].mxu0
        %798 = vdwg.mxu0
        %v799 = vlaneseq
        %v800 = vshrl.u32 %v799, 7
        %v801 = vsub.s32 0, %v800
        %v802 = vrot.slane %v426, %v801
        %804 = vbcast.lane.b32.xlu0 %v802, 256
        %v805 = vpop.permute.xlu0 %804
        %v806 = vlaneseq
        %v807 = vshrl.u32 %v806, 7
        %v808 = vsub.s32 1, %v807
        %v809 = vrot.slane %v426, %v808
        %811 = vbcast.lane.b32.xlu0 %v809, 256
        %v812 = vpop.permute.xlu0 %811
        %v813 = vlaneseq
        %v814 = vshrl.u32 %v813, 7
        %v815 = vsub.s32 2, %v814
        %v816 = vrot.slane %v426, %v815
        %818 = vbcast.lane.b32.xlu0 %v816, 256
        %v819 = vpop.permute.xlu0 %818
        %v820 = vlaneseq
        %v821 = vshrl.u32 %v820, 7
        %v822 = vsub.s32 3, %v821
        %v823 = vrot.slane %v426, %v822
        %825 = vbcast.lane.b32.xlu0 %v823, 256
        %v826 = vpop.permute.xlu0 %825
        %v827 = vlaneseq
        %v828 = vshrl.u32 %v827, 7
        %v829 = vsub.s32 4, %v828
        %v830 = vrot.slane %v426, %v829
        %832 = vbcast.lane.b32.xlu0 %v830, 256
        %v833 = vpop.permute.xlu0 %832
        %v834 = vlaneseq
        %v835 = vshrl.u32 %v834, 7
        %v836 = vsub.s32 5, %v835
        %v837 = vrot.slane %v426, %v836
        %839 = vbcast.lane.b32.xlu0 %v837, 256
        %v840 = vpop.permute.xlu0 %839
        %v841 = vlaneseq
        %v842 = vshrl.u32 %v841, 7
        %v843 = vsub.s32 6, %v842
        %v844 = vrot.slane %v426, %v843
        %846 = vbcast.lane.b32.xlu0 %v844, 256
        %v847 = vpop.permute.xlu0 %846
        %v848 = vlaneseq
        %v849 = vshrl.u32 %v848, 7
        %v850 = vsub.s32 7, %v849
        %v851 = vrot.slane %v426, %v850
        %853 = vbcast.lane.b32.xlu0 %v851, 256
        %v854 = vpop.permute.xlu0 %853
        %v855 = vlaneseq
        %v856 = vshrl.u32 %v855, 7
        %v857 = vsub.s32 0, %v856
        %v858 = vrot.slane %v472, %v857
        %v859 = vlaneseq
        %v860 = vshrl.u32 %v859, 7
        %v861 = vsub.s32 0, %v860
        %v862 = vrot.slane %v518, %v861
        %v863 = vlaneseq
        %v864 = vshrl.u32 %v863, 7
        %v865 = vsub.s32 0, %v864
        %v866 = vrot.slane %v564, %v865
        %v867 = vlaneseq
        %v868 = vshrl.u32 %v867, 7
        %v869 = vsub.s32 0, %v868
        %v870 = vrot.slane %v610, %v869
        %v871 = vlaneseq
        %v872 = vshrl.u32 %v871, 7
        %v873 = vsub.s32 0, %v872
        %v874 = vrot.slane %v656, %v873
        %v875 = vlaneseq
        %v876 = vshrl.u32 %v875, 7
        %v877 = vsub.s32 0, %v876
        %v878 = vrot.slane %v702, %v877
        %v879 = vlaneseq
        %v880 = vshrl.u32 %v879, 7
        %v881 = vsub.s32 0, %v880
        %v882 = vrot.slane %v748, %v881
        %v883 = vlaneseq
        %v884 = vshrl.u32 %v883, 7
        %v885 = vsub.s32 0, %v884
        %v886 = vrot.slane %v794, %v885
        %v887 = vmul.f32 %v805, %v858
        %v888 = vmul.f32 %v812, %v862
        %v889 = vmul.f32 %v819, %v866
        %v890 = vmul.f32 %v826, %v870
        %v891 = vmul.f32 %v833, %v874
        %v892 = vmul.f32 %v840, %v878
        %v893 = vmul.f32 %v847, %v882
        %v894 = vmul.f32 %v854, %v886
        %vm895 = vcmask 130048
        %v896 = vsel %vm895, %v887, -inf
        %897 = vmax.xlane.f32.xlu0 %v896
        %v898 = vpop.xlane.xlu0 %897
        %v899 = vsel %vm895, %v888, -inf
        %900 = vmax.xlane.f32.xlu0 %v899
        %v901 = vpop.xlane.xlu0 %900
        %v902 = vsel %vm895, %v889, -inf
        %903 = vmax.xlane.f32.xlu0 %v902
        %v904 = vpop.xlane.xlu0 %903
        %v905 = vsel %vm895, %v890, -inf
        %906 = vmax.xlane.f32.xlu0 %v905
        %v907 = vpop.xlane.xlu0 %906
        %v908 = vsel %vm895, %v891, -inf
        %909 = vmax.xlane.f32.xlu0 %v908
        %v910 = vpop.xlane.xlu0 %909
        %v911 = vsel %vm895, %v892, -inf
        %912 = vmax.xlane.f32.xlu0 %v911
        %v913 = vpop.xlane.xlu0 %912
        %v914 = vsel %vm895, %v893, -inf
        %915 = vmax.xlane.f32.xlu0 %v914
        %v916 = vpop.xlane.xlu0 %915
        %v917 = vsel %vm895, %v894, -inf
        %918 = vmax.xlane.f32.xlu0 %v917
        %v919 = vpop.xlane.xlu0 %918
        %v920 = vsub.f32 %v887, %v898
        %v921 = vsub.f32 %v888, %v901
        %v922 = vsub.f32 %v889, %v904
        %v923 = vsub.f32 %v890, %v907
        %v924 = vsub.f32 %v891, %v910
        %v925 = vsub.f32 %v892, %v913
        %v926 = vsub.f32 %v893, %v916
        %v927 = vsub.f32 %v894, %v919
        %v928 = vmul.f32 %v920, 1.442695
        %v929 = vpow.pop %v928
        %v930 = vmul.f32 %v921, 1.442695
        %v931 = vpow.pop %v930
        %v932 = vmul.f32 %v922, 1.442695
        %v933 = vpow.pop %v932
        %v934 = vmul.f32 %v923, 1.442695
        %v935 = vpow.pop %v934
        %v936 = vmul.f32 %v924, 1.442695
        %v937 = vpow.pop %v936
        %v938 = vmul.f32 %v925, 1.442695
        %v939 = vpow.pop %v938
        %v940 = vmul.f32 %v926, 1.442695
        %v941 = vpow.pop %v940
        %v942 = vmul.f32 %v927, 1.442695
        %v943 = vpow.pop %v942
        %v944 = vsel %vm895, %v929, 0.0
        %945 = vadd.xlane.f32.xlu0 %v944
        %v946 = vpop.xlane.xlu0 %945
        %v947 = vsel %vm895, %v931, 0.0
        %948 = vadd.xlane.f32.xlu0 %v947
        %v949 = vpop.xlane.xlu0 %948
        %v950 = vsel %vm895, %v933, 0.0
        %951 = vadd.xlane.f32.xlu0 %v950
        %v952 = vpop.xlane.xlu0 %951
        %v953 = vsel %vm895, %v935, 0.0
        %954 = vadd.xlane.f32.xlu0 %v953
        %v955 = vpop.xlane.xlu0 %954
        %v956 = vsel %vm895, %v937, 0.0
        %957 = vadd.xlane.f32.xlu0 %v956
        %v958 = vpop.xlane.xlu0 %957
        %v959 = vsel %vm895, %v939, 0.0
        %960 = vadd.xlane.f32.xlu0 %v959
        %v961 = vpop.xlane.xlu0 %960
        %v962 = vsel %vm895, %v941, 0.0
        %963 = vadd.xlane.f32.xlu0 %v962
        %v964 = vpop.xlane.xlu0 %963
        %v965 = vsel %vm895, %v943, 0.0
        %966 = vadd.xlane.f32.xlu0 %v965
        %v967 = vpop.xlane.xlu0 %966
        %v968 = vrcp.pop %v946
        %v969 = vrcp.pop %v949
        %v970 = vrcp.pop %v952
        %v971 = vrcp.pop %v955
        %v972 = vrcp.pop %v958
        %v973 = vrcp.pop %v961
        %v974 = vrcp.pop %v964
        %v975 = vrcp.pop %v967
        %v976 = vmul.f32 %v929, %v968
        %v977 = vmul.f32 %v931, %v969
        %v978 = vmul.f32 %v933, %v970
        %v979 = vmul.f32 %v935, %v971
        %v980 = vmul.f32 %v937, %v972
        %v981 = vmul.f32 %v939, %v973
        %v982 = vmul.f32 %v941, %v974
        %v983 = vmul.f32 %v943, %v975
        %v984 = vpack.c.bf16 %v976, %v976
        %v985 = vpack.c.bf16 %v977, %v977
        %v986 = vpack.c.bf16 %v978, %v978
        %v987 = vpack.c.bf16 %v979, %v979
        %v988 = vpack.c.bf16 %v980, %v980
        %v989 = vpack.c.bf16 %v981, %v981
        %v990 = vpack.c.bf16 %v982, %v982
        %v991 = vpack.c.bf16 %v983, %v983
        %v993 = vsel %vm895, %v984, 0
        %995 = vmatprep.subr.bf16.mxu0 0
        %996 = vmatpush1.bf16.msra.mxu0 %v435
        %997 = vmatprep.subr.bf16.mxu0 0
        %998 = vmatpush1.bf16.msra.mxu0 0
        %999 = vmatprep.subr.bf16.mxu0 0
        %1000 = vmatpush1.bf16.msra.mxu0 0
        %1001 = vmatprep.subr.bf16.mxu0 0
        %1002 = vmatpush1.bf16.msra.mxu0 0
        %1003 = vmatprep.subr.bf16.mxu0 0
        %1004 = vmatpush1.bf16.msra.mxu0 0
        %1005 = vmatprep.subr.bf16.mxu0 0
        %1006 = vmatpush1.bf16.msra.mxu0 0
        %1007 = vmatprep.subr.bf16.mxu0 0
        %1008 = vmatpush1.bf16.msra.mxu0 0
        %1009 = vmatprep.subr.bf16.mxu0 0
        %1010 = vmatpush1.bf16.msra.mxu0 0
        %1011 = vmatprep.subr.bf16.mxu0 0
        %1012 = vmatpush1.bf16.msra.mxu0 0
        %1013 = vmatprep.subr.bf16.mxu0 0
        %1014 = vmatpush1.bf16.msra.mxu0 0
        %1015 = vmatprep.subr.bf16.mxu0 0
        %1016 = vmatpush1.bf16.msra.mxu0 0
        %1017 = vmatprep.subr.bf16.mxu0 0
        %1018 = vmatpush1.bf16.msra.mxu0 0
        %1019 = vmatprep.subr.bf16.mxu0 0
        %1020 = vmatpush1.bf16.msra.mxu0 0
        %1021 = vmatprep.subr.bf16.mxu0 0
        %1022 = vmatpush1.bf16.msra.mxu0 0
        %1023 = vmatprep.subr.bf16.mxu0 0
        %1024 = vmatpush1.bf16.msra.mxu0 0
        %1025 = vmatprep.subr.bf16.mxu0 0
        %1026 = vmatpush1.bf16.msra.mxu0 0
        %1027 = vmatprep.mubr.bf16.mxu0 0
        %1028 = vmatmul.mubr.bf16.gmra.mrb[0].mxu0 %v993
        %v1029 = vpop.f32.mrb[0].mxu0
        %v1030 = vadd.f32 0.0, %v1029
        %v1031 = vpop.f32.mrb[0].mxu0
        %v1032 = vpop.f32.mrb[0].mxu0
        %v1033 = vpop.f32.mrb[0].mxu0
        %1034 = vdwg.mxu0
        %v1036 = vsel %vm895, %v985, 0
        %1038 = vmatprep.subr.bf16.mxu0 0
        %1039 = vmatpush1.bf16.msra.mxu0 %v481
        %1040 = vmatprep.subr.bf16.mxu0 0
        %1041 = vmatpush1.bf16.msra.mxu0 0
        %1042 = vmatprep.subr.bf16.mxu0 0
        %1043 = vmatpush1.bf16.msra.mxu0 0
        %1044 = vmatprep.subr.bf16.mxu0 0
        %1045 = vmatpush1.bf16.msra.mxu0 0
        %1046 = vmatprep.subr.bf16.mxu0 0
        %1047 = vmatpush1.bf16.msra.mxu0 0
        %1048 = vmatprep.subr.bf16.mxu0 0
        %1049 = vmatpush1.bf16.msra.mxu0 0
        %1050 = vmatprep.subr.bf16.mxu0 0
        %1051 = vmatpush1.bf16.msra.mxu0 0
        %1052 = vmatprep.subr.bf16.mxu0 0
        %1053 = vmatpush1.bf16.msra.mxu0 0
        %1054 = vmatprep.subr.bf16.mxu0 0
        %1055 = vmatpush1.bf16.msra.mxu0 0
        %1056 = vmatprep.subr.bf16.mxu0 0
        %1057 = vmatpush1.bf16.msra.mxu0 0
        %1058 = vmatprep.subr.bf16.mxu0 0
        %1059 = vmatpush1.bf16.msra.mxu0 0
        %1060 = vmatprep.subr.bf16.mxu0 0
        %1061 = vmatpush1.bf16.msra.mxu0 0
        %1062 = vmatprep.subr.bf16.mxu0 0
        %1063 = vmatpush1.bf16.msra.mxu0 0
        %1064 = vmatprep.subr.bf16.mxu0 0
        %1065 = vmatpush1.bf16.msra.mxu0 0
        %1066 = vmatprep.subr.bf16.mxu0 0
        %1067 = vmatpush1.bf16.msra.mxu0 0
        %1068 = vmatprep.subr.bf16.mxu0 0
        %1069 = vmatpush1.bf16.msra.mxu0 0
        %1070 = vmatprep.mubr.bf16.mxu0 0
        %1071 = vmatmul.mubr.bf16.gmra.mrb[0].mxu0 %v1036
        %v1072 = vpop.f32.mrb[0].mxu0
        %v1073 = vadd.f32 0.0, %v1072
        %v1074 = vpop.f32.mrb[0].mxu0
        %v1075 = vpop.f32.mrb[0].mxu0
        %v1076 = vpop.f32.mrb[0].mxu0
        %1077 = vdwg.mxu0
        %v1079 = vsel %vm895, %v986, 0
        %1081 = vmatprep.subr.bf16.mxu0 0
        %1082 = vmatpush1.bf16.msra.mxu0 %v527
        %1083 = vmatprep.subr.bf16.mxu0 0
        %1084 = vmatpush1.bf16.msra.mxu0 0
        %1085 = vmatprep.subr.bf16.mxu0 0
        %1086 = vmatpush1.bf16.msra.mxu0 0
        %1087 = vmatprep.subr.bf16.mxu0 0
        %1088 = vmatpush1.bf16.msra.mxu0 0
        %1089 = vmatprep.subr.bf16.mxu0 0
        %1090 = vmatpush1.bf16.msra.mxu0 0
        %1091 = vmatprep.subr.bf16.mxu0 0
        %1092 = vmatpush1.bf16.msra.mxu0 0
        %1093 = vmatprep.subr.bf16.mxu0 0
        %1094 = vmatpush1.bf16.msra.mxu0 0
        %1095 = vmatprep.subr.bf16.mxu0 0
        %1096 = vmatpush1.bf16.msra.mxu0 0
        %1097 = vmatprep.subr.bf16.mxu0 0
        %1098 = vmatpush1.bf16.msra.mxu0 0
        %1099 = vmatprep.subr.bf16.mxu0 0
        %1100 = vmatpush1.bf16.msra.mxu0 0
        %1101 = vmatprep.subr.bf16.mxu0 0
        %1102 = vmatpush1.bf16.msra.mxu0 0
        %1103 = vmatprep.subr.bf16.mxu0 0
        %1104 = vmatpush1.bf16.msra.mxu0 0
        %1105 = vmatprep.subr.bf16.mxu0 0
        %1106 = vmatpush1.bf16.msra.mxu0 0
        %1107 = vmatprep.subr.bf16.mxu0 0
        %1108 = vmatpush1.bf16.msra.mxu0 0
        %1109 = vmatprep.subr.bf16.mxu0 0
        %1110 = vmatpush1.bf16.msra.mxu0 0
        %1111 = vmatprep.subr.bf16.mxu0 0
        %1112 = vmatpush1.bf16.msra.mxu0 0
        %1113 = vmatprep.mubr.bf16.mxu0 0
        %1114 = vmatmul.mubr.bf16.gmra.mrb[0].mxu0 %v1079
        %v1115 = vpop.f32.mrb[0].mxu0
        %v1116 = vadd.f32 0.0, %v1115
        %v1117 = vpop.f32.mrb[0].mxu0
        %v1118 = vpop.f32.mrb[0].mxu0
        %v1119 = vpop.f32.mrb[0].mxu0
        %1120 = vdwg.mxu0
        %v1122 = vsel %vm895, %v987, 0
        %1124 = vmatprep.subr.bf16.mxu0 0
        %1125 = vmatpush1.bf16.msra.mxu0 %v573
        %1126 = vmatprep.subr.bf16.mxu0 0
        %1127 = vmatpush1.bf16.msra.mxu0 0
        %1128 = vmatprep.subr.bf16.mxu0 0
        %1129 = vmatpush1.bf16.msra.mxu0 0
        %1130 = vmatprep.subr.bf16.mxu0 0
        %1131 = vmatpush1.bf16.msra.mxu0 0
        %1132 = vmatprep.subr.bf16.mxu0 0
        %1133 = vmatpush1.bf16.msra.mxu0 0
        %1134 = vmatprep.subr.bf16.mxu0 0
        %1135 = vmatpush1.bf16.msra.mxu0 0
        %1136 = vmatprep.subr.bf16.mxu0 0
        %1137 = vmatpush1.bf16.msra.mxu0 0
        %1138 = vmatprep.subr.bf16.mxu0 0
        %1139 = vmatpush1.bf16.msra.mxu0 0
        %1140 = vmatprep.subr.bf16.mxu0 0
        %1141 = vmatpush1.bf16.msra.mxu0 0
        %1142 = vmatprep.subr.bf16.mxu0 0
        %1143 = vmatpush1.bf16.msra.mxu0 0
        %1144 = vmatprep.subr.bf16.mxu0 0
        %1145 = vmatpush1.bf16.msra.mxu0 0
        %1146 = vmatprep.subr.bf16.mxu0 0
        %1147 = vmatpush1.bf16.msra.mxu0 0
        %1148 = vmatprep.subr.bf16.mxu0 0
        %1149 = vmatpush1.bf16.msra.mxu0 0
        %1150 = vmatprep.subr.bf16.mxu0 0
        %1151 = vmatpush1.bf16.msra.mxu0 0
        %1152 = vmatprep.subr.bf16.mxu0 0
        %1153 = vmatpush1.bf16.msra.mxu0 0
        %1154 = vmatprep.subr.bf16.mxu0 0
        %1155 = vmatpush1.bf16.msra.mxu0 0
        %1156 = vmatprep.mubr.bf16.mxu0 0
        %1157 = vmatmul.mubr.bf16.gmra.mrb[0].mxu0 %v1122
        %v1158 = vpop.f32.mrb[0].mxu0
        %v1159 = vadd.f32 0.0, %v1158
        %v1160 = vpop.f32.mrb[0].mxu0
        %v1161 = vpop.f32.mrb[0].mxu0
        %v1162 = vpop.f32.mrb[0].mxu0
        %1163 = vdwg.mxu0
        %v1165 = vsel %vm895, %v988, 0
        %1167 = vmatprep.subr.bf16.mxu0 0
        %1168 = vmatpush1.bf16.msra.mxu0 %v619
        %1169 = vmatprep.subr.bf16.mxu0 0
        %1170 = vmatpush1.bf16.msra.mxu0 0
        %1171 = vmatprep.subr.bf16.mxu0 0
        %1172 = vmatpush1.bf16.msra.mxu0 0
        %1173 = vmatprep.subr.bf16.mxu0 0
        %1174 = vmatpush1.bf16.msra.mxu0 0
        %1175 = vmatprep.subr.bf16.mxu0 0
        %1176 = vmatpush1.bf16.msra.mxu0 0
        %1177 = vmatprep.subr.bf16.mxu0 0
        %1178 = vmatpush1.bf16.msra.mxu0 0
        %1179 = vmatprep.subr.bf16.mxu0 0
        %1180 = vmatpush1.bf16.msra.mxu0 0
        %1181 = vmatprep.subr.bf16.mxu0 0
        %1182 = vmatpush1.bf16.msra.mxu0 0
        %1183 = vmatprep.subr.bf16.mxu0 0
        %1184 = vmatpush1.bf16.msra.mxu0 0
        %1185 = vmatprep.subr.bf16.mxu0 0
        %1186 = vmatpush1.bf16.msra.mxu0 0
        %1187 = vmatprep.subr.bf16.mxu0 0
        %1188 = vmatpush1.bf16.msra.mxu0 0
        %1189 = vmatprep.subr.bf16.mxu0 0
        %1190 = vmatpush1.bf16.msra.mxu0 0
        %1191 = vmatprep.subr.bf16.mxu0 0
        %1192 = vmatpush1.bf16.msra.mxu0 0
        %1193 = vmatprep.subr.bf16.mxu0 0
        %1194 = vmatpush1.bf16.msra.mxu0 0
        %1195 = vmatprep.subr.bf16.mxu0 0
        %1196 = vmatpush1.bf16.msra.mxu0 0
        %1197 = vmatprep.subr.bf16.mxu0 0
        %1198 = vmatpush1.bf16.msra.mxu0 0
        %1199 = vmatprep.mubr.bf16.mxu0 0
        %1200 = vmatmul.mubr.bf16.gmra.mrb[0].mxu0 %v1165
        %v1201 = vpop.f32.mrb[0].mxu0
        %v1202 = vadd.f32 0.0, %v1201
        %v1203 = vpop.f32.mrb[0].mxu0
        %v1204 = vpop.f32.mrb[0].mxu0
        %v1205 = vpop.f32.mrb[0].mxu0
        %1206 = vdwg.mxu0
        %v1208 = vsel %vm895, %v989, 0
        %1210 = vmatprep.subr.bf16.mxu0 0
        %1211 = vmatpush1.bf16.msra.mxu0 %v665
        %1212 = vmatprep.subr.bf16.mxu0 0
        %1213 = vmatpush1.bf16.msra.mxu0 0
        %1214 = vmatprep.subr.bf16.mxu0 0
        %1215 = vmatpush1.bf16.msra.mxu0 0
        %1216 = vmatprep.subr.bf16.mxu0 0
        %1217 = vmatpush1.bf16.msra.mxu0 0
        %1218 = vmatprep.subr.bf16.mxu0 0
        %1219 = vmatpush1.bf16.msra.mxu0 0
        %1220 = vmatprep.subr.bf16.mxu0 0
        %1221 = vmatpush1.bf16.msra.mxu0 0
        %1222 = vmatprep.subr.bf16.mxu0 0
        %1223 = vmatpush1.bf16.msra.mxu0 0
        %1224 = vmatprep.subr.bf16.mxu0 0
        %1225 = vmatpush1.bf16.msra.mxu0 0
        %1226 = vmatprep.subr.bf16.mxu0 0
        %1227 = vmatpush1.bf16.msra.mxu0 0
        %1228 = vmatprep.subr.bf16.mxu0 0
        %1229 = vmatpush1.bf16.msra.mxu0 0
        %1230 = vmatprep.subr.bf16.mxu0 0
        %1231 = vmatpush1.bf16.msra.mxu0 0
        %1232 = vmatprep.subr.bf16.mxu0 0
        %1233 = vmatpush1.bf16.msra.mxu0 0
        %1234 = vmatprep.subr.bf16.mxu0 0
        %1235 = vmatpush1.bf16.msra.mxu0 0
        %1236 = vmatprep.subr.bf16.mxu0 0
        %1237 = vmatpush1.bf16.msra.mxu0 0
        %1238 = vmatprep.subr.bf16.mxu0 0
        %1239 = vmatpush1.bf16.msra.mxu0 0
        %1240 = vmatprep.subr.bf16.mxu0 0
        %1241 = vmatpush1.bf16.msra.mxu0 0
        %1242 = vmatprep.mubr.bf16.mxu0 0
        %1243 = vmatmul.mubr.bf16.gmra.mrb[0].mxu0 %v1208
        %v1244 = vpop.f32.mrb[0].mxu0
        %v1245 = vadd.f32 0.0, %v1244
        %v1246 = vpop.f32.mrb[0].mxu0
        %v1247 = vpop.f32.mrb[0].mxu0
        %v1248 = vpop.f32.mrb[0].mxu0
        %1249 = vdwg.mxu0
        %v1251 = vsel %vm895, %v990, 0
        %1253 = vmatprep.subr.bf16.mxu0 0
        %1254 = vmatpush1.bf16.msra.mxu0 %v711
        %1255 = vmatprep.subr.bf16.mxu0 0
        %1256 = vmatpush1.bf16.msra.mxu0 0
        %1257 = vmatprep.subr.bf16.mxu0 0
        %1258 = vmatpush1.bf16.msra.mxu0 0
        %1259 = vmatprep.subr.bf16.mxu0 0
        %1260 = vmatpush1.bf16.msra.mxu0 0
        %1261 = vmatprep.subr.bf16.mxu0 0
        %1262 = vmatpush1.bf16.msra.mxu0 0
        %1263 = vmatprep.subr.bf16.mxu0 0
        %1264 = vmatpush1.bf16.msra.mxu0 0
        %1265 = vmatprep.subr.bf16.mxu0 0
        %1266 = vmatpush1.bf16.msra.mxu0 0
        %1267 = vmatprep.subr.bf16.mxu0 0
        %1268 = vmatpush1.bf16.msra.mxu0 0
        %1269 = vmatprep.subr.bf16.mxu0 0
        %1270 = vmatpush1.bf16.msra.mxu0 0
        %1271 = vmatprep.subr.bf16.mxu0 0
        %1272 = vmatpush1.bf16.msra.mxu0 0
        %1273 = vmatprep.subr.bf16.mxu0 0
        %1274 = vmatpush1.bf16.msra.mxu0 0
        %1275 = vmatprep.subr.bf16.mxu0 0
        %1276 = vmatpush1.bf16.msra.mxu0 0
        %1277 = vmatprep.subr.bf16.mxu0 0
        %1278 = vmatpush1.bf16.msra.mxu0 0
        %1279 = vmatprep.subr.bf16.mxu0 0
        %1280 = vmatpush1.bf16.msra.mxu0 0
        %1281 = vmatprep.subr.bf16.mxu0 0
        %1282 = vmatpush1.bf16.msra.mxu0 0
        %1283 = vmatprep.subr.bf16.mxu0 0
        %1284 = vmatpush1.bf16.msra.mxu0 0
        %1285 = vmatprep.mubr.bf16.mxu0 0
        %1286 = vmatmul.mubr.bf16.gmra.mrb[0].mxu0 %v1251
        %v1287 = vpop.f32.mrb[0].mxu0
        %v1288 = vadd.f32 0.0, %v1287
        %v1289 = vpop.f32.mrb[0].mxu0
        %v1290 = vpop.f32.mrb[0].mxu0
        %v1291 = vpop.f32.mrb[0].mxu0
        %1292 = vdwg.mxu0
        %v1294 = vsel %vm895, %v991, 0
        %1296 = vmatprep.subr.bf16.mxu0 0
        %1297 = vmatpush1.bf16.msra.mxu0 %v757
        %1298 = vmatprep.subr.bf16.mxu0 0
        %1299 = vmatpush1.bf16.msra.mxu0 0
        %1300 = vmatprep.subr.bf16.mxu0 0
        %1301 = vmatpush1.bf16.msra.mxu0 0
        %1302 = vmatprep.subr.bf16.mxu0 0
        %1303 = vmatpush1.bf16.msra.mxu0 0
        %1304 = vmatprep.subr.bf16.mxu0 0
        %1305 = vmatpush1.bf16.msra.mxu0 0
        %1306 = vmatprep.subr.bf16.mxu0 0
        %1307 = vmatpush1.bf16.msra.mxu0 0
        %1308 = vmatprep.subr.bf16.mxu0 0
        %1309 = vmatpush1.bf16.msra.mxu0 0
        %1310 = vmatprep.subr.bf16.mxu0 0
        %1311 = vmatpush1.bf16.msra.mxu0 0
        %1312 = vmatprep.subr.bf16.mxu0 0
        %1313 = vmatpush1.bf16.msra.mxu0 0
        %1314 = vmatprep.subr.bf16.mxu0 0
        %1315 = vmatpush1.bf16.msra.mxu0 0
        %1316 = vmatprep.subr.bf16.mxu0 0
        %1317 = vmatpush1.bf16.msra.mxu0 0
        %1318 = vmatprep.subr.bf16.mxu0 0
        %1319 = vmatpush1.bf16.msra.mxu0 0
        %1320 = vmatprep.subr.bf16.mxu0 0
        %1321 = vmatpush1.bf16.msra.mxu0 0
        %1322 = vmatprep.subr.bf16.mxu0 0
        %1323 = vmatpush1.bf16.msra.mxu0 0
        %1324 = vmatprep.subr.bf16.mxu0 0
        %1325 = vmatpush1.bf16.msra.mxu0 0
        %1326 = vmatprep.subr.bf16.mxu0 0
        %1327 = vmatpush1.bf16.msra.mxu0 0
        %1328 = vmatprep.mubr.bf16.mxu0 0
        %1329 = vmatmul.mubr.bf16.gmra.mrb[0].mxu0 %v1294
        %v1330 = vpop.f32.mrb[0].mxu0
        %v1331 = vadd.f32 0.0, %v1330
        %v1332 = vpop.f32.mrb[0].mxu0
        %v1333 = vpop.f32.mrb[0].mxu0
        %v1334 = vpop.f32.mrb[0].mxu0
        %1335 = vdwg.mxu0
        %v1336 = vmul.f32 %v1030, %v1030
        %v1337 = vmul.f32 %v1073, %v1073
        %v1338 = vmul.f32 %v1116, %v1116
        %v1339 = vmul.f32 %v1159, %v1159
        %v1340 = vmul.f32 %v1202, %v1202
        %v1341 = vmul.f32 %v1245, %v1245
        %v1342 = vmul.f32 %v1288, %v1288
        %v1343 = vmul.f32 %v1331, %v1331
        %1344 = vadd.xlane.f32.xlu0 %v1336
        %v1345 = vpop.xlane.xlu0 %1344
        %1346 = vadd.xlane.f32.xlu0 %v1337
        %v1347 = vpop.xlane.xlu0 %1346
        %1348 = vadd.xlane.f32.xlu0 %v1338
        %v1349 = vpop.xlane.xlu0 %1348
        %1350 = vadd.xlane.f32.xlu0 %v1339
        %v1351 = vpop.xlane.xlu0 %1350
        %1352 = vadd.xlane.f32.xlu0 %v1340
        %v1353 = vpop.xlane.xlu0 %1352
        %1354 = vadd.xlane.f32.xlu0 %v1341
        %v1355 = vpop.xlane.xlu0 %1354
        %1356 = vadd.xlane.f32.xlu0 %v1342
        %v1357 = vpop.xlane.xlu0 %1356
        %1358 = vadd.xlane.f32.xlu0 %v1343
        %v1359 = vpop.xlane.xlu0 %1358
        %v1360 = vrsqrt.pop %v1345
        %v1361 = vmul.f32 %v1345, %v1360
        %vm1362 = vcmp.eq.f32.partialorder %v1345, inf
        %v1363 = vsel %vm1362, %v1345, %v1361
        %vm1364 = vcmp.eq.f32.partialorder %v1345, 0.0
        %v1365 = vand.u32 %v1345, 2147483648
        %v1366 = vsel %vm1364, %v1365, %v1363
        %v1367 = vrsqrt.pop %v1347
        %v1368 = vmul.f32 %v1347, %v1367
        %vm1369 = vcmp.eq.f32.partialorder %v1347, inf
        %v1370 = vsel %vm1369, %v1347, %v1368
        %vm1371 = vcmp.eq.f32.partialorder %v1347, 0.0
        %v1372 = vand.u32 %v1347, 2147483648
        %v1373 = vsel %vm1371, %v1372, %v1370
        %v1374 = vrsqrt.pop %v1349
        %v1375 = vmul.f32 %v1349, %v1374
        %vm1376 = vcmp.eq.f32.partialorder %v1349, inf
        %v1377 = vsel %vm1376, %v1349, %v1375
        %vm1378 = vcmp.eq.f32.partialorder %v1349, 0.0
        %v1379 = vand.u32 %v1349, 2147483648
        %v1380 = vsel %vm1378, %v1379, %v1377
        %v1381 = vrsqrt.pop %v1351
        %v1382 = vmul.f32 %v1351, %v1381
        %vm1383 = vcmp.eq.f32.partialorder %v1351, inf
        %v1384 = vsel %vm1383, %v1351, %v1382
        %vm1385 = vcmp.eq.f32.partialorder %v1351, 0.0
        %v1386 = vand.u32 %v1351, 2147483648
        %v1387 = vsel %vm1385, %v1386, %v1384
        %v1388 = vrsqrt.pop %v1353
        %v1389 = vmul.f32 %v1353, %v1388
        %vm1390 = vcmp.eq.f32.partialorder %v1353, inf
        %v1391 = vsel %vm1390, %v1353, %v1389
        %vm1392 = vcmp.eq.f32.partialorder %v1353, 0.0
        %v1393 = vand.u32 %v1353, 2147483648
        %v1394 = vsel %vm1392, %v1393, %v1391
        %v1395 = vrsqrt.pop %v1355
        %v1396 = vmul.f32 %v1355, %v1395
        %vm1397 = vcmp.eq.f32.partialorder %v1355, inf
        %v1398 = vsel %vm1397, %v1355, %v1396
        %vm1399 = vcmp.eq.f32.partialorder %v1355, 0.0
        %v1400 = vand.u32 %v1355, 2147483648
        %v1401 = vsel %vm1399, %v1400, %v1398
        %v1402 = vrsqrt.pop %v1357
        %v1403 = vmul.f32 %v1357, %v1402
        %vm1404 = vcmp.eq.f32.partialorder %v1357, inf
        %v1405 = vsel %vm1404, %v1357, %v1403
        %vm1406 = vcmp.eq.f32.partialorder %v1357, 0.0
        %v1407 = vand.u32 %v1357, 2147483648
        %v1408 = vsel %vm1406, %v1407, %v1405
        %v1409 = vrsqrt.pop %v1359
        %v1410 = vmul.f32 %v1359, %v1409
        %vm1411 = vcmp.eq.f32.partialorder %v1359, inf
        %v1412 = vsel %vm1411, %v1359, %v1410
        %vm1413 = vcmp.eq.f32.partialorder %v1359, 0.0
        %v1414 = vand.u32 %v1359, 2147483648
        %v1415 = vsel %vm1413, %v1414, %v1412
        %v1416 = vadd.f32 %v1366, 1e-08
        %v1417 = vadd.f32 %v1373, 1e-08
        %v1418 = vadd.f32 %v1380, 1e-08
        %v1419 = vadd.f32 %v1387, 1e-08
        %v1420 = vadd.f32 %v1394, 1e-08
        %v1421 = vadd.f32 %v1401, 1e-08
        %v1422 = vadd.f32 %v1408, 1e-08
        %v1423 = vadd.f32 %v1415, 1e-08
        %v1424 = vrcp.pop %v1416
        %v1425 = vrcp.pop %v1417
        %v1426 = vrcp.pop %v1418
        %v1427 = vrcp.pop %v1419
        %v1428 = vrcp.pop %v1420
        %v1429 = vrcp.pop %v1421
        %v1430 = vrcp.pop %v1422
        %v1431 = vrcp.pop %v1423
        %v1432 = vmul.f32 %v1030, %v1424
        %v1433 = vmul.f32 %v1073, %v1425
        %v1434 = vmul.f32 %v1116, %v1426
        %v1435 = vmul.f32 %v1159, %v1427
        %v1436 = vmul.f32 %v1202, %v1428
        %v1437 = vmul.f32 %v1245, %v1429
        %v1438 = vmul.f32 %v1288, %v1430
        %v1439 = vmul.f32 %v1331, %v1431
        %v1440 = vpack.c.bf16 %v1433, %v1432
        %v1441 = vpack.c.bf16 %v1435, %v1434
        %v1442 = vpack.c.bf16 %v1437, %v1436
        %v1443 = vpack.c.bf16 %v1439, %v1438
        %v1445 = vlaneseq
        %v1446 = vshrl.u32 %v1445, 7
        %v1447 = vsub.s32 0, %v1446
        %v1448 = vrot.slane %v341, %v1447
        %v1466 = vunpack.c.l.b16 %v325
        %v1467 = vunpack.c.l.b16 %v326
        %v1468 = vunpack.c.l.b16 %v327
        %v1469 = vunpack.c.l.b16 %v328
        %v1470 = vunpack.c.l.b16 %v329
        %v1471 = vunpack.c.l.b16 %v330
        %v1472 = vunpack.c.l.b16 %v331
        %v1473 = vunpack.c.l.b16 %v332
        %v1474 = vunpack.c.l.b16 %v333
        %v1475 = vunpack.c.l.b16 %v334
        %v1476 = vunpack.c.l.b16 %v335
        %v1477 = vunpack.c.l.b16 %v336
        %v1478 = vunpack.c.l.b16 %v337
        %v1479 = vunpack.c.l.b16 %v338
        %v1480 = vunpack.c.l.b16 %v339
        %v1481 = vunpack.c.l.b16 %v340
        %v1482 = vpack.c.b16 %v1467, %v1466
        %v1483 = vpack.c.b16 %v1469, %v1468
        %v1484 = vpack.c.b16 %v1471, %v1470
        %v1485 = vpack.c.b16 %v1473, %v1472
        %v1486 = vpack.c.b16 %v1475, %v1474
        %v1487 = vpack.c.b16 %v1477, %v1476
        %v1488 = vpack.c.b16 %v1479, %v1478
        %v1489 = vpack.c.b16 %v1481, %v1480
        %1498 = vmatprep.subr.bf16.mxu0 0
        %1499 = vmatpush1.bf16.msra.mxu0 %v1482
        %1500 = vmatprep.subr.bf16.mxu0 0
        %1501 = vmatpush1.bf16.msra.mxu0 %v1483
        %1502 = vmatprep.subr.bf16.mxu0 0
        %1503 = vmatpush1.bf16.msra.mxu0 %v1484
        %1504 = vmatprep.subr.bf16.mxu0 0
        %1505 = vmatpush1.bf16.msra.mxu0 %v1485
        %1506 = vmatprep.subr.bf16.mxu0 0
        %1507 = vmatpush1.bf16.msra.mxu0 %v1486
        %1508 = vmatprep.subr.bf16.mxu0 0
        %1509 = vmatpush1.bf16.msra.mxu0 %v1487
        %1510 = vmatprep.subr.bf16.mxu0 0
        %1511 = vmatpush1.bf16.msra.mxu0 %v1488
        %1512 = vmatprep.subr.bf16.mxu0 0
        %1513 = vmatpush1.bf16.msra.mxu0 %v1489
        %1514 = vmatprep.subr.bf16.mxu0 0
        %1515 = vmatpush1.bf16.msra.mxu0 0
        %1516 = vmatprep.subr.bf16.mxu0 0
        %1517 = vmatpush1.bf16.msra.mxu0 0
        %1518 = vmatprep.subr.bf16.mxu0 0
        %1519 = vmatpush1.bf16.msra.mxu0 0
        %1520 = vmatprep.subr.bf16.mxu0 0
        %1521 = vmatpush1.bf16.msra.mxu0 0
        %1522 = vmatprep.subr.bf16.mxu0 0
        %1523 = vmatpush1.bf16.msra.mxu0 0
        %1524 = vmatprep.subr.bf16.mxu0 0
        %1525 = vmatpush1.bf16.msra.mxu0 0
        %1526 = vmatprep.subr.bf16.mxu0 0
        %1527 = vmatpush1.bf16.msra.mxu0 0
        %1528 = vmatprep.subr.bf16.mxu0 0
        %1529 = vmatpush1.bf16.msra.mxu0 0
        %1530 = vmatprep.mubr.bf16.mxu0 0
        %1531 = vmatmul.mubr.bf16.gmra.mrb[0].mxu0 %v1440
        %v1532 = vpop.f32.mrb[0].mxu0
        %v1533 = vadd.f32 %v1448, %v1532
        %v1534 = vpop.f32.mrb[0].mxu0
        %v1535 = vpop.f32.mrb[0].mxu0
        %v1536 = vadd.f32 %v1448, %v1535
        %v1537 = vpop.f32.mrb[0].mxu0
        %1538 = vmatprep.mubr.bf16.mxu0 0
        %1539 = vmatmul.mubr.bf16.gmra.mrb[0].mxu0 %v1441
        %v1540 = vpop.f32.mrb[0].mxu0
        %v1541 = vadd.f32 %v1448, %v1540
        %v1542 = vpop.f32.mrb[0].mxu0
        %v1543 = vpop.f32.mrb[0].mxu0
        %v1544 = vadd.f32 %v1448, %v1543
        %v1545 = vpop.f32.mrb[0].mxu0
        %1546 = vmatprep.mubr.bf16.mxu0 0
        %1547 = vmatmul.mubr.bf16.gmra.mrb[0].mxu0 %v1442
        %v1548 = vpop.f32.mrb[0].mxu0
        %v1549 = vadd.f32 %v1448, %v1548
        %v1550 = vpop.f32.mrb[0].mxu0
        %v1551 = vpop.f32.mrb[0].mxu0
        %v1552 = vadd.f32 %v1448, %v1551
        %v1553 = vpop.f32.mrb[0].mxu0
        %1554 = vmatprep.mubr.bf16.mxu0 0
        %1555 = vmatmul.mubr.bf16.gmra.mrb[0].mxu0 %v1443
        %v1556 = vpop.f32.mrb[0].mxu0
        %v1557 = vadd.f32 %v1448, %v1556
        %v1558 = vpop.f32.mrb[0].mxu0
        %v1559 = vpop.f32.mrb[0].mxu0
        %v1560 = vadd.f32 %v1448, %v1559
        %v1561 = vpop.f32.mrb[0].mxu0
        %1562 = vdwg.mxu0
        %v1563 = vxor.u32 %v1533, 2147483648
        %v1564 = vxor.u32 %v1536, 2147483648
        %v1565 = vxor.u32 %v1541, 2147483648
        %v1566 = vxor.u32 %v1544, 2147483648
        %v1567 = vxor.u32 %v1549, 2147483648
        %v1568 = vxor.u32 %v1552, 2147483648
        %v1569 = vxor.u32 %v1557, 2147483648
        %v1570 = vxor.u32 %v1560, 2147483648
        %v1571 = vmul.f32 %v1563, 1.442695
        %v1572 = vpow.pop %v1571
        %v1573 = vmul.f32 %v1564, 1.442695
        %v1574 = vpow.pop %v1573
        %v1575 = vmul.f32 %v1565, 1.442695
        %v1576 = vpow.pop %v1575
        %v1577 = vmul.f32 %v1566, 1.442695
        %v1578 = vpow.pop %v1577
        %v1579 = vmul.f32 %v1567, 1.442695
        %v1580 = vpow.pop %v1579
        %v1581 = vmul.f32 %v1568, 1.442695
        %v1582 = vpow.pop %v1581
        %v1583 = vmul.f32 %v1569, 1.442695
        %v1584 = vpow.pop %v1583
        %v1585 = vmul.f32 %v1570, 1.442695
        %v1586 = vpow.pop %v1585
        %v1587 = vadd.f32 %v1572, 1.0
        %v1588 = vadd.f32 %v1574, 1.0
        %v1589 = vadd.f32 %v1576, 1.0
        %v1590 = vadd.f32 %v1578, 1.0
        %v1591 = vadd.f32 %v1580, 1.0
        %v1592 = vadd.f32 %v1582, 1.0
        %v1593 = vadd.f32 %v1584, 1.0
        %v1594 = vadd.f32 %v1586, 1.0
        %v1595 = vrcp.pop %v1587
        %v1596 = vmul.f32 1.0, %v1595
        %v1597 = vrcp.pop %v1588
        %v1598 = vmul.f32 1.0, %v1597
        %v1599 = vrcp.pop %v1589
        %v1600 = vmul.f32 1.0, %v1599
        %v1601 = vrcp.pop %v1590
        %v1602 = vmul.f32 1.0, %v1601
        %v1603 = vrcp.pop %v1591
        %v1604 = vmul.f32 1.0, %v1603
        %v1605 = vrcp.pop %v1592
        %v1606 = vmul.f32 1.0, %v1605
        %v1607 = vrcp.pop %v1593
        %v1608 = vmul.f32 1.0, %v1607
        %v1609 = vrcp.pop %v1594
        %v1610 = vmul.f32 1.0, %v1609
        %1611 = vst [vmem:[%s283] sm:$0xff] %v1596
        %1612 = vst [vmem:[%s283 + $0x8] sm:$0xff] %v1598
        %1613 = vst [vmem:[%s283 + $0x10] sm:$0xff] %v1600
        %1614 = vst [vmem:[%s283 + $0x18] sm:$0xff] %v1602
        %1615 = vst [vmem:[%s283 + $0x20] sm:$0xff] %v1604
        %1616 = vst [vmem:[%s283 + $0x28] sm:$0xff] %v1606
        %1617 = vst [vmem:[%s283 + $0x30] sm:$0xff] %v1608
        %1618 = vst [vmem:[%s283 + $0x38] sm:$0xff] %v1610
        %s1619 = sand.u32 %s167, 1
        %s1620 = scalar_lea.sflag [#allocation4], %s1619
        %s1621 = sand.u32 %s167, 1
        %s1622 = smul.addr %s1621, 64
        %s1623 = scalar_lea.vmem [#allocation5], %s1622
        // Predicated region
        $region49: #{tpu_custom_call.1} parent=43 // pred_check
          %p1624 = pneg %p177
        $region50: #{tpu_custom_call.1} parent=43 // pred_check_branch
          %1626 = sbr.rel (%p1624) target = $region52
        $region51: #{tpu_custom_call.1} parent=43 // pred_region
          %s1627 = smul.u32 8, %s23
          %s1629 = ssub.s32 1024, 1024
          %1630 = vsyncadd %s1620, %s1629
          %s1631 = smul.addr %s1627, 128
          %s1632 = scalar_lea.hbm %s6, %s1631
          %s1633 = sshll.u32 %s1623, 4
          %s1634 = int_to_ptr.vmem [resolvable:$true] %s1633
          %1639 = dma.vmem_to_hbm [thread:$0]  %s1634, 1024, %s1632, %s1620, 128, 128, 8
        $region52: #{tpu_custom_call.1} parent=43 // pred_fallthru
          _
      $region44: #{tpu_custom_call.1} parent=5 // pred_fallthru
        _
      %p1640 = scmp.le.s32.totalorder 2, %s18
      // Predicated region
      $region53: #{tpu_custom_call.1} parent=5 // pred_check
        %p1641 = pneg %p1640
      $region54: #{tpu_custom_call.1} parent=5 // pred_check_branch
        %1643 = sbr.rel (%p1641) target = $region56
      $region55: #{tpu_custom_call.1} parent=5 // pred_region
        %s1644 = ssub.s32 %s18, 2
        // Predicated region
        $region57: #{tpu_custom_call.1} parent=55 // pred_check
          %p1645 = pneg %p183
        $region58: #{tpu_custom_call.1} parent=55 // pred_check_branch
          %1647 = sbr.rel (%p1645) target = $region60
        $region59: #{tpu_custom_call.1} parent=55 // pred_region
          %s1648 = sand.u32 %s168, 1
          %s1649 = scalar_lea.sflag [#allocation4], %s1648
          %s1650 = sand.u32 %s168, 1
          %s1651 = smul.addr %s1650, 64
          %s1652 = scalar_lea.vmem [#allocation5], %s1651
          %1653 = dma.done %s1649, 1024
        $region60: #{tpu_custom_call.1} parent=55 // pred_fallthru
          _
      $region56: #{tpu_custom_call.1} parent=5 // pred_fallthru
        _
    $region6: #{tpu_custom_call.1} parent=1 // loop_footer
      %s22 = sadd.s32 1, %s18
    $region7: #{tpu_custom_call.1} parent=1 // loop_footer_branch
      %17 = sbr.rel target = $region3
    $region8: #{tpu_custom_call.1} parent=1 // loop_exit
      _
    %1654 = vsyncpa [#allocation3], 1
    %s1655 = scalar_lea.sflag [#allocation3], 1
    %1656 = vsyncpa %s1655, 1
    %1657 = vsyncpa [#allocation4], 1
    %s1658 = scalar_lea.sflag [#allocation4], 1
    %1659 = vsyncpa %s1658, 1

</llo_original>
